<compile_context>
chip_gen: v7x
topology: tpu7x:2x2x1
jax: 0.10.0
libtpu: 0.0.40
codegen_flags: <defaults>
</compile_context>

<pallas_src>
import numpy as np
import jax
import jax.numpy as jnp
from jax import lax
from jax.experimental import pallas as pl
from jax.experimental.pallas import tpu as pltpu

OUT_HW = 224   # hard-coded F.interpolate(size=(224, 224)) target
PATCH = 4      # p = q = 4 in rearrange 'b h w (p q) -> b (h p) (w q)'

# MXU operand dtype.  float32 keeps the 5e-3 parity check vs the f32 reference; flip
# to jnp.bfloat16 for 2-4x MXU throughput once the head stops being launch/HBM bound
# (costs ~1e-3..1e-2 abs error, too close to the tolerance used here).
MXU_DTYPE = jnp.float32

# Output-channel permutation: new channel c' = 4q + p holds original channel 4p + q
# (the rearrange uses c = 4p + q).  Wrapper permutes nn.Linear weight rows + bias; the
# host-built A_cat factor matrices use the matching column order (see _factor_matrices).
_PERM = np.arange(16).reshape(4, 4).T.reshape(-1)   # [0,4,8,12,1,5,9,13,...]


# ----------------------------------------------------------------------------
# Exact GELU (erf form, matching nn.GELU default).  erf via Abramowitz&Stegun
# 7.1.26 (|err| < 1.5e-7), built only from ops guaranteed to lower in Mosaic.
# The divide could be pl.reciprocal(..., approx=True) (EUP slot) but this kernel
# is launch/HBM bound, not EUP bound, so the exact divide is kept for bit margin.
# ----------------------------------------------------------------------------
def _gelu_erf(x):
    z = x * 0.7071067811865476              # x / sqrt(2)
    az = jnp.abs(z)
    t = 1.0 / (1.0 + 0.3275911 * az)
    poly = t * (0.254829592 + t * (-0.284496736 + t * (1.421413741
               + t * (-1.453152027 + t * 1.061405429))))
    erf_abs = 1.0 - poly * jnp.exp(-az * az)
    erf_z = jnp.where(z < 0.0, -erf_abs, erf_abs)
    return 0.5 * x * (1.0 + erf_z)


# ----------------------------------------------------------------------------
# Kernel 1: all three NonLinearLayers (Linear dims->16 + GELU), channel-major,
# with the final 1x1-conv weight wf[k] folded in.  One launch, grid=(batch,).
# ----------------------------------------------------------------------------
def _stage_a_kernel(wf_ref, x1_ref, x2_ref, x3_ref,
                    w1_ref, b1_ref, w2_ref, b2_ref, w3_ref, b3_ref,
                    y1_ref, y2_ref, y3_ref):
    blocks = ((x1_ref, w1_ref, b1_ref, y1_ref, 0),
              (x2_ref, w2_ref, b2_ref, y2_ref, 1),
              (x3_ref, w3_ref, b3_ref, y3_ref, 2))
    for x_ref, w_ref, b_ref, y_ref, k in blocks:
        x = x_ref[0].astype(MXU_DTYPE)        # (hw, C)
        w = w_ref[...].astype(MXU_DTYPE)      # (16, C), channel-permuted torch layout
        # NT matmul: contract the last dim of both operands -> (16, hw) channel-major.
        # (Same formulation that lowered cleanly in v2.  If a bundle dump ever shows
        #  Mosaic materializing a transpose of the big x tile, switch to x @ w.T plus
        #  an in-kernel transpose of the small (hw,16) result.)
        z = lax.dot_general(w, x, (((1,), (1,)), ((), ())),
                            preferred_element_type=jnp.float32)
        z = z + b_ref[...]                    # (16, 1) bias broadcast along lanes
        y_ref[0] = _gelu_erf(z) * wf_ref[k]   # fold 1x1-conv weight here (smallest array)


def _stage_a(xs, ws, bs, wf):
    """xs: three (b,h,w,c) inputs. Returns three channel-major (b,16,h*w) f32 arrays."""
    bsz = xs[0].shape[0]
    xf = [x.reshape(bsz, x.shape[1] * x.shape[2], x.shape[3]) for x in xs]  # free reshape
    hws = [x.shape[1] for x in xf]
    cs = [x.shape[2] for x in xf]

    in_specs = [pl.BlockSpec(memory_space=pltpu.MemorySpace.SMEM)]          # wf (3,)
    in_specs += [pl.BlockSpec((1, hw, c), lambda i: (i, 0, 0))
                 for hw, c in zip(hws, cs)]
    for c in cs:
        in_specs += [pl.BlockSpec((16, c), lambda i: (0, 0)),
                     pl.BlockSpec((16, 1), lambda i: (0, 0))]

    out_shape = tuple(jax.ShapeDtypeStruct((bsz, 16, hw), jnp.float32) for hw in hws)
    out_specs = tuple(pl.BlockSpec((1, 16, hw), lambda i: (i, 0, 0)) for hw in hws)

    args = [wf] + xf
    for w, b in zip(ws, bs):
        args += [w, b.reshape(16, 1)]

    return pl.pallas_call(
        _stage_a_kernel,
        out_shape=out_shape,
        grid=(bsz,),
        in_specs=in_specs,
        out_specs=out_specs,
        compiler_params=pltpu.CompilerParams(dimension_semantics=("parallel",)),
    )(*args)


# ----------------------------------------------------------------------------
# Kernel 2: fused rearrange + bilinear resize (or identity) + 1x1 conv combine.
#   T_all[:, cols(k,q)] = A_cat_k (224,4h) @ Y_q (4h,w)      (12 MXU matmuls)
#   out               = T_all (224,392) @ B_all (392,224)    (1 MXU matmul, 1 store)
# ----------------------------------------------------------------------------
def _tail_kernel(y1_ref, y2_ref, y3_ref, a1_ref, a2_ref, a3_ref, ball_ref,
                 o_ref, t_ref):
    col = 0
    for y_ref, a_ref in ((y1_ref, a1_ref), (y2_ref, a2_ref), (y3_ref, a3_ref)):
        a = a_ref[...]                         # (224, 4h)
        w = y_ref.shape[3]
        for q in range(PATCH):
            # Y_q is a contiguous (4h, w) slice thanks to the channel permutation.
            t_ref[:, col:col + w] = jnp.dot(a, y_ref[0, q],
                                            preferred_element_type=jnp.float32)
            col += w
    # Single K=392 matmul finishes rearrange+resize+conv for all three heads; the
    # (224,224) output block is written exactly once (no RMW accumulation).
    o_ref[0] = jnp.dot(t_ref[...], ball_ref[...],
                       preferred_element_type=jnp.float32)


def _fused_tail(y1r, y2r, y3r, a1, a2, a3, b_all):
    bsz = y1r.shape[0]
    total_cols = sum(PATCH * y.shape[3] for y in (y1r, y2r, y3r))   # 392
    y_specs = [pl.BlockSpec((1,) + y.shape[1:], lambda i: (i, 0, 0, 0))
               for y in (y1r, y2r, y3r)]
    c_specs = [pl.BlockSpec(f.shape, lambda i: (0, 0))
               for f in (a1, a2, a3, b_all)]
    return pl.pallas_call(
        _tail_kernel,
        out_shape=jax.ShapeDtypeStruct((bsz, OUT_HW, OUT_HW), jnp.float32),
        grid=(bsz,),
        in_specs=y_specs + c_specs,
        out_specs=pl.BlockSpec((1, OUT_HW, OUT_HW), lambda i: (i, 0, 0)),
        scratch_shapes=[pltpu.VMEM((OUT_HW, total_cols), jnp.float32)],
        compiler_params=pltpu.CompilerParams(dimension_semantics=("parallel",)),
    )(y1r, y2r, y3r, a1, a2, a3, b_all)


# ----------------------------------------------------------------------------
# Compile-time constants (numpy): bilinear / selection factor matrices.
# ----------------------------------------------------------------------------
def _bilinear_matrix(out_size, in_size):
    """Dense interpolation matrix matching F.interpolate(mode='bilinear',
    align_corners=False, half-pixel centers) along one axis."""
    scale = in_size / out_size
    dst = np.arange(out_size, dtype=np.float64)
    src = np.clip((dst + 0.5) * scale - 0.5, 0.0, None)
    i0 = np.minimum(np.floor(src).astype(np.int64), in_size - 1)
    i1 = np.minimum(i0 + 1, in_size - 1)
    w1 = src - i0
    w0 = 1.0 - w1
    m = np.zeros((out_size, in_size), dtype=np.float64)
    np.add.at(m, (np.arange(out_size), i0), w0)
    np.add.at(m, (np.arange(out_size), i1), w1)
    return m.astype(np.float32)


def _factor_matrices(h, w, up_sample):
    """A_cat (224, 4h) with columns ordered (p, h') to match the permuted/stacked Y_q;
    B block (4w, 224) with rows ordered (q, w') to match the T_all column layout.
    For the no-upsample block Rh = Rw = I_224 (pure selection = rearrange)."""
    if up_sample:
        rh = _bilinear_matrix(OUT_HW, PATCH * h)
        rw = _bilinear_matrix(OUT_HW, PATCH * w)
    else:
        assert PATCH * h == OUT_HW and PATCH * w == OUT_HW
        rh = rw = np.eye(OUT_HW, dtype=np.float32)
    # A_cat[o, p*h + h'] = Rh[o, 4h' + p]
    a_cat = rh.reshape(OUT_HW, h, PATCH).transpose(0, 2, 1).reshape(OUT_HW, PATCH * h)
    # B[q*w + w', o]    = Rw[o, 4w' + q]
    b_blk = rw.reshape(OUT_HW, w, PATCH).transpose(2, 1, 0).reshape(PATCH * w, OUT_HW)
    return (np.ascontiguousarray(a_cat, dtype=np.float32),
            np.ascontiguousarray(b_blk, dtype=np.float32))


# ----------------------------------------------------------------------------
# Full head
# ----------------------------------------------------------------------------
def segmentation_head(inputs, params):
    (w1, b1), (w2, b2), (w3, b3), wf = params
    # Permute Linear out-channels (free: 16 rows) so c' = 4q + p.
    ws = [w[_PERM] for w in (w1, w2, w3)]
    bs = [b[_PERM] for b in (b1, b2, b3)]

    y1, y2, y3 = _stage_a(inputs, ws, bs, wf)          # (b, 16, h*w) channel-major, *wf

    bsz = inputs[0].shape[0]
    hs = [x.shape[1] for x in inputs]
    wds = [x.shape[2] for x in inputs]
    # Free HBM metadata reshape: (b, 16, h*w) -> (b, 4[q], 4h[(p,h')], w).
    yr = [y.reshape(bsz, PATCH, PATCH * h, wd)
          for y, h, wd in zip((y1, y2, y3), hs, wds)]

    facs = [_factor_matrices(hs[0], wds[0], True),
            _factor_matrices(hs[1], wds[1], True),
            _factor_matrices(hs[2], wds[2], False)]
    a1, a2, a3 = (jnp.asarray(f[0]) for f in facs)
    b_all = jnp.asarray(np.concatenate([f[1] for f in facs], axis=0))   # (392, 224)

    out = _fused_tail(yr[0], yr[1], yr[2], a1, a2, a3, b_all)           # (b, 224, 224)
    return out[:, None, :, :]                                           # (b, 1, 224, 224)


def init_params(key, in_dims=(192, 96, 48)):
    ks = jax.random.split(key, 7)
    params = []
    for i, d in enumerate(in_dims):
        # torch nn.Linear layout: weight (out_features, in_features), bias (out,)
        w = jax.random.normal(ks[2 * i], (16, d), jnp.float32) / np.sqrt(d)
        b = jax.random.normal(ks[2 * i + 1], (16,), jnp.float32) * 0.01
        params.append((w, b))
    # Conv2d(3, 1, kernel_size=1, bias=False).weight reshaped to (3,)
    wf = jax.random.normal(ks[6], (3,), jnp.float32) / np.sqrt(3.0)
    return (*params, wf)


# ----------------------------------------------------------------------------
# Pure-JAX reference (XLA, unpermuted weights) for a numerical sanity check.
# ----------------------------------------------------------------------------
def _reference(inputs, params):
    (w1, b1), (w2, b2), (w3, b3), wf = params
    heads = []
    for x, (w, bb), up in ((inputs[0], (w1, b1), True),
                           (inputs[1], (w2, b2), True),
                           (inputs[2], (w3, b3), False)):
        bsz, h, wd, _ = x.shape
        y = jax.nn.gelu(jnp.einsum('bhwc,oc->bhwo', x, w) + bb, approximate=False)
        y = (y.reshape(bsz, h, wd, PATCH, PATCH)
              .transpose(0, 1, 3, 2, 4)
              .reshape(bsz, PATCH * h, PATCH * wd))
        if up:
            rh = jnp.asarray(_bilinear_matrix(OUT_HW, PATCH * h))
            rw = jnp.asarray(_bilinear_matrix(OUT_HW, PATCH * wd))
            y = jnp.einsum('ar,brs->bas', rh, y)
            y = jnp.einsum('bas,cs->bac', y, rw)
        heads.append(y)
    out = heads[0] * wf[0] + heads[1] * wf[1] + heads[2] * wf[2]
    return out[:, None, :, :]


if __name__ == "__main__":
    key = jax.random.PRNGKey(0)
    kx1, kx2, kx3, kp = jax.random.split(key, 4)

    # shapes implied by the module docstring (batch = 2)
    x1 = jax.random.normal(kx1, (2, 14, 14, 192), jnp.float32)
    x2 = jax.random.normal(kx2, (2, 28, 28, 96), jnp.float32)
    x3 = jax.random.normal(kx3, (2, 56, 56, 48), jnp.float32)

    params = init_params(kp)
    out = segmentation_head((x1, x2, x3), params)
    out = jax.block_until_ready(out)

    assert out.shape == (2, 1, 224, 224), out.shape
    assert out.dtype == jnp.float32
    assert bool(jnp.all(jnp.isfinite(out)))

    ref = jax.block_until_ready(_reference((x1, x2, x3), params))
    max_err = float(jnp.max(jnp.abs(out - ref)))
    assert max_err < 5e-3, f"mismatch vs reference: {max_err}"

    print("KERNEL_OK")
</pallas_src>

<mosaic_0001>
module attributes {stable_mosaic.version = 11 : i64} {
  func.func @_stage_a_kernel(%arg0: i32, %arg1: memref<3xf32, #tpu.memory_space<smem>>, %arg2: memref<1x196x192xf32, #tpu.memory_space<vmem>>, %arg3: memref<1x784x96xf32, #tpu.memory_space<vmem>>, %arg4: memref<1x3136x48xf32, #tpu.memory_space<vmem>>, %arg5: memref<16x192xf32, #tpu.memory_space<vmem>>, %arg6: memref<16x1xf32, #tpu.memory_space<vmem>>, %arg7: memref<16x96xf32, #tpu.memory_space<vmem>>, %arg8: memref<16x1xf32, #tpu.memory_space<vmem>>, %arg9: memref<16x48xf32, #tpu.memory_space<vmem>>, %arg10: memref<16x1xf32, #tpu.memory_space<vmem>>, %arg11: memref<1x16x196xf32, #tpu.memory_space<vmem>>, %arg12: memref<1x16x784xf32, #tpu.memory_space<vmem>>, %arg13: memref<1x16x3136xf32, #tpu.memory_space<vmem>>) attributes {dimension_semantics = [#tpu.dimension_semantics<parallel>], iteration_bounds = array<i64: 2>, scalar_prefetch = 0 : i64, scratch_operands = 0 : i64, tpu.core_type = #tpu.core_type<tc>, window_params = [{transform_indices = @transform_0, window_bounds = array<i64: 3>}, {transform_indices = @transform_1, window_bounds = array<i64: 1, 196, 192>}, {transform_indices = @transform_2, window_bounds = array<i64: 1, 784, 96>}, {transform_indices = @transform_3, window_bounds = array<i64: 1, 3136, 48>}, {pipeline_mode = #tpu.pipeline_mode<synchronous>, transform_indices = @transform_4, window_bounds = array<i64: 16, 192>}, {pipeline_mode = #tpu.pipeline_mode<synchronous>, transform_indices = @transform_5, window_bounds = array<i64: 16, 1>}, {pipeline_mode = #tpu.pipeline_mode<synchronous>, transform_indices = @transform_6, window_bounds = array<i64: 16, 96>}, {pipeline_mode = #tpu.pipeline_mode<synchronous>, transform_indices = @transform_7, window_bounds = array<i64: 16, 1>}, {pipeline_mode = #tpu.pipeline_mode<synchronous>, transform_indices = @transform_8, window_bounds = array<i64: 16, 48>}, {pipeline_mode = #tpu.pipeline_mode<synchronous>, transform_indices = @transform_9, window_bounds = array<i64: 16, 1>}, {transform_indices = @transform_10, window_bounds = array<i64: 1, 16, 196>}, {transform_indices = @transform_11, window_bounds = array<i64: 1, 16, 784>}, {transform_indices = @transform_12, window_bounds = array<i64: 1, 16, 3136>}]} {
    %c0 = arith.constant 0 : index
    %c0_0 = arith.constant 0 : index
    %c0_1 = arith.constant 0 : index
    %0 = vector.load %arg2[%c0, %c0_0, %c0_1] : memref<1x196x192xf32, #tpu.memory_space<vmem>>, vector<1x196x192xf32>
    %1 = vector.shape_cast %0 : vector<1x196x192xf32> to vector<196x192xf32>
    %c0_2 = arith.constant 0 : index
    %c0_3 = arith.constant 0 : index
    %2 = vector.load %arg5[%c0_2, %c0_3] : memref<16x192xf32, #tpu.memory_space<vmem>>, vector<16x192xf32>
    %cst = arith.constant dense<0.000000e+00> : vector<16x196xf32>
    %3 = tpu.matmul %2, %1, %cst {dimension_numbers = #tpu.dot_dimension_numbers<[1], [1], [0], [0], [0, 0, 1, 0], [], []>} : vector<16x192xf32>, vector<196x192xf32>, vector<16x196xf32> -> vector<16x196xf32>
    %c0_4 = arith.constant 0 : index
    %c0_5 = arith.constant 0 : index
    %4 = vector.load %arg6[%c0_4, %c0_5] : memref<16x1xf32, #tpu.memory_space<vmem>>, vector<16x1xf32>
    %5 = vector.broadcast %4 : vector<16x1xf32> to vector<16x196xf32>
    %6 = arith.addf %3, %5 : vector<16x196xf32>
    %cst_6 = arith.constant 0.707106769 : f32
    %7 = vector.broadcast %cst_6 : f32 to vector<16x196xf32>
    %8 = arith.mulf %6, %7 : vector<16x196xf32>
    %9 = math.absf %8 : vector<16x196xf32>
    %cst_7 = arith.constant 0.327591091 : f32
    %10 = vector.broadcast %cst_7 : f32 to vector<16x196xf32>
    %11 = arith.mulf %10, %9 : vector<16x196xf32>
    %cst_8 = arith.constant 1.000000e+00 : f32
    %12 = vector.broadcast %cst_8 : f32 to vector<16x196xf32>
    %13 = arith.addf %12, %11 : vector<16x196xf32>
    %cst_9 = arith.constant 1.000000e+00 : f32
    %14 = vector.broadcast %cst_9 : f32 to vector<16x196xf32>
    %15 = arith.divf %14, %13 : vector<16x196xf32>
    %cst_10 = arith.constant 1.06140542 : f32
    %16 = vector.broadcast %cst_10 : f32 to vector<16x196xf32>
    %17 = arith.mulf %15, %16 : vector<16x196xf32>
    %cst_11 = arith.constant -1.45315206 : f32
    %18 = vector.broadcast %cst_11 : f32 to vector<16x196xf32>
    %19 = arith.addf %18, %17 : vector<16x196xf32>
    %20 = arith.mulf %15, %19 : vector<16x196xf32>
    %cst_12 = arith.constant 1.42141378 : f32
    %21 = vector.broadcast %cst_12 : f32 to vector<16x196xf32>
    %22 = arith.addf %21, %20 : vector<16x196xf32>
    %23 = arith.mulf %15, %22 : vector<16x196xf32>
    %cst_13 = arith.constant -0.284496725 : f32
    %24 = vector.broadcast %cst_13 : f32 to vector<16x196xf32>
    %25 = arith.addf %24, %23 : vector<16x196xf32>
    %26 = arith.mulf %15, %25 : vector<16x196xf32>
    %cst_14 = arith.constant 0.254829586 : f32
    %27 = vector.broadcast %cst_14 : f32 to vector<16x196xf32>
    %28 = arith.addf %27, %26 : vector<16x196xf32>
    %29 = arith.mulf %15, %28 : vector<16x196xf32>
    %cst_15 = arith.constant 0.000000e+00 : f32
    %30 = vector.broadcast %cst_15 : f32 to vector<16x196xf32>
    %31 = arith.subf %30, %9 : vector<16x196xf32>
    %32 = arith.mulf %31, %9 : vector<16x196xf32>
    %33 = math.exp %32 : vector<16x196xf32>
    %34 = arith.mulf %29, %33 : vector<16x196xf32>
    %cst_16 = arith.constant 1.000000e+00 : f32
    %35 = vector.broadcast %cst_16 : f32 to vector<16x196xf32>
    %36 = arith.subf %35, %34 : vector<16x196xf32>
    %cst_17 = arith.constant 0.000000e+00 : f32
    %37 = vector.broadcast %cst_17 : f32 to vector<16x196xf32>
    %38 = arith.cmpf olt, %8, %37 : vector<16x196xf32>
    %cst_18 = arith.constant 0.000000e+00 : f32
    %39 = vector.broadcast %cst_18 : f32 to vector<16x196xf32>
    %40 = arith.subf %39, %36 : vector<16x196xf32>
    %41 = arith.select %38, %40, %36 : vector<16x196xi1>, vector<16x196xf32>
    %cst_19 = arith.constant 5.000000e-01 : f32
    %42 = vector.broadcast %cst_19 : f32 to vector<16x196xf32>
    %43 = arith.mulf %42, %6 : vector<16x196xf32>
    %cst_20 = arith.constant 1.000000e+00 : f32
    %44 = vector.broadcast %cst_20 : f32 to vector<16x196xf32>
    %45 = arith.addf %44, %41 : vector<16x196xf32>
    %46 = arith.mulf %43, %45 : vector<16x196xf32>
    %c0_21 = arith.constant 0 : index
    %47 = memref.load %arg1[%c0_21] : memref<3xf32, #tpu.memory_space<smem>>
    %48 = vector.broadcast %47 : f32 to vector<16x196xf32>
    %49 = arith.mulf %46, %48 : vector<16x196xf32>
    %c0_22 = arith.constant 0 : index
    %c0_23 = arith.constant 0 : index
    %c0_24 = arith.constant 0 : index
    %50 = vector.load %arg11[%c0_22, %c0_23, %c0_24] : memref<1x16x196xf32, #tpu.memory_space<vmem>>, vector<1x16x196xf32>
    %51 = vector.shape_cast %50 : vector<1x16x196xf32> to vector<16x196xf32>
    %52 = vector.shape_cast %49 : vector<16x196xf32> to vector<1x16x196xf32>
    tpu.vector_store %arg11[%c0_22, %c0_23, %c0_24], %52 {strides = array<i32>} : memref<1x16x196xf32, #tpu.memory_space<vmem>>, vector<1x16x196xf32>,
    %c0_25 = arith.constant 0 : index
    %c0_26 = arith.constant 0 : index
    %c0_27 = arith.constant 0 : index
    %53 = vector.load %arg3[%c0_25, %c0_26, %c0_27] : memref<1x784x96xf32, #tpu.memory_space<vmem>>, vector<1x784x96xf32>
    %54 = vector.shape_cast %53 : vector<1x784x96xf32> to vector<784x96xf32>
    %c0_28 = arith.constant 0 : index
    %c0_29 = arith.constant 0 : index
    %55 = vector.load %arg7[%c0_28, %c0_29] : memref<16x96xf32, #tpu.memory_space<vmem>>, vector<16x96xf32>
    %cst_30 = arith.constant dense<0.000000e+00> : vector<16x784xf32>
    %56 = tpu.matmul %55, %54, %cst_30 {dimension_numbers = #tpu.dot_dimension_numbers<[1], [1], [0], [0], [0, 0, 1, 0], [], []>} : vector<16x96xf32>, vector<784x96xf32>, vector<16x784xf32> -> vector<16x784xf32>
    %c0_31 = arith.constant 0 : index
    %c0_32 = arith.constant 0 : index
    %57 = vector.load %arg8[%c0_31, %c0_32] : memref<16x1xf32, #tpu.memory_space<vmem>>, vector<16x1xf32>
    %58 = vector.broadcast %57 : vector<16x1xf32> to vector<16x784xf32>
    %59 = arith.addf %56, %58 : vector<16x784xf32>
    %cst_33 = arith.constant 0.707106769 : f32
    %60 = vector.broadcast %cst_33 : f32 to vector<16x784xf32>
    %61 = arith.mulf %59, %60 : vector<16x784xf32>
    %62 = math.absf %61 : vector<16x784xf32>
    %cst_34 = arith.constant 0.327591091 : f32
    %63 = vector.broadcast %cst_34 : f32 to vector<16x784xf32>
    %64 = arith.mulf %63, %62 : vector<16x784xf32>
    %cst_35 = arith.constant 1.000000e+00 : f32
    %65 = vector.broadcast %cst_35 : f32 to vector<16x784xf32>
    %66 = arith.addf %65, %64 : vector<16x784xf32>
    %cst_36 = arith.constant 1.000000e+00 : f32
    %67 = vector.broadcast %cst_36 : f32 to vector<16x784xf32>
    %68 = arith.divf %67, %66 : vector<16x784xf32>
    %cst_37 = arith.constant 1.06140542 : f32
    %69 = vector.broadcast %cst_37 : f32 to vector<16x784xf32>
    %70 = arith.mulf %68, %69 : vector<16x784xf32>
    %cst_38 = arith.constant -1.45315206 : f32
    %71 = vector.broadcast %cst_38 : f32 to vector<16x784xf32>
    %72 = arith.addf %71, %70 : vector<16x784xf32>
    %73 = arith.mulf %68, %72 : vector<16x784xf32>
    %cst_39 = arith.constant 1.42141378 : f32
    %74 = vector.broadcast %cst_39 : f32 to vector<16x784xf32>
    %75 = arith.addf %74, %73 : vector<16x784xf32>
    %76 = arith.mulf %68, %75 : vector<16x784xf32>
    %cst_40 = arith.constant -0.284496725 : f32
    %77 = vector.broadcast %cst_40 : f32 to vector<16x784xf32>
    %78 = arith.addf %77, %76 : vector<16x784xf32>
    %79 = arith.mulf %68, %78 : vector<16x784xf32>
    %cst_41 = arith.constant 0.254829586 : f32
    %80 = vector.broadcast %cst_41 : f32 to vector<16x784xf32>
    %81 = arith.addf %80, %79 : vector<16x784xf32>
    %82 = arith.mulf %68, %81 : vector<16x784xf32>
    %cst_42 = arith.constant 0.000000e+00 : f32
    %83 = vector.broadcast %cst_42 : f32 to vector<16x784xf32>
    %84 = arith.subf %83, %62 : vector<16x784xf32>
    %85 = arith.mulf %84, %62 : vector<16x784xf32>
    %86 = math.exp %85 : vector<16x784xf32>
    %87 = arith.mulf %82, %86 : vector<16x784xf32>
    %cst_43 = arith.constant 1.000000e+00 : f32
    %88 = vector.broadcast %cst_43 : f32 to vector<16x784xf32>
    %89 = arith.subf %88, %87 : vector<16x784xf32>
    %cst_44 = arith.constant 0.000000e+00 : f32
    %90 = vector.broadcast %cst_44 : f32 to vector<16x784xf32>
    %91 = arith.cmpf olt, %61, %90 : vector<16x784xf32>
    %cst_45 = arith.constant 0.000000e+00 : f32
    %92 = vector.broadcast %cst_45 : f32 to vector<16x784xf32>
    %93 = arith.subf %92, %89 : vector<16x784xf32>
    %94 = arith.select %91, %93, %89 : vector<16x784xi1>, vector<16x784xf32>
    %cst_46 = arith.constant 5.000000e-01 : f32
    %95 = vector.broadcast %cst_46 : f32 to vector<16x784xf32>
    %96 = arith.mulf %95, %59 : vector<16x784xf32>
    %cst_47 = arith.constant 1.000000e+00 : f32
    %97 = vector.broadcast %cst_47 : f32 to vector<16x784xf32>
    %98 = arith.addf %97, %94 : vector<16x784xf32>
    %99 = arith.mulf %96, %98 : vector<16x784xf32>
    %c1 = arith.constant 1 : index
    %100 = memref.load %arg1[%c1] : memref<3xf32, #tpu.memory_space<smem>>
    %101 = vector.broadcast %100 : f32 to vector<16x784xf32>
    %102 = arith.mulf %99, %101 : vector<16x784xf32>
    %c0_48 = arith.constant 0 : index
    %c0_49 = arith.constant 0 : index
    %c0_50 = arith.constant 0 : index
    %103 = vector.load %arg12[%c0_48, %c0_49, %c0_50] : memref<1x16x784xf32, #tpu.memory_space<vmem>>, vector<1x16x784xf32>
    %104 = vector.shape_cast %103 : vector<1x16x784xf32> to vector<16x784xf32>
    %105 = vector.shape_cast %102 : vector<16x784xf32> to vector<1x16x784xf32>
    tpu.vector_store %arg12[%c0_48, %c0_49, %c0_50], %105 {strides = array<i32>} : memref<1x16x784xf32, #tpu.memory_space<vmem>>, vector<1x16x784xf32>,
    %c0_51 = arith.constant 0 : index
    %c0_52 = arith.constant 0 : index
    %c0_53 = arith.constant 0 : index
    %106 = vector.load %arg4[%c0_51, %c0_52, %c0_53] : memref<1x3136x48xf32, #tpu.memory_space<vmem>>, vector<1x3136x48xf32>
    %107 = vector.shape_cast %106 : vector<1x3136x48xf32> to vector<3136x48xf32>
    %c0_54 = arith.constant 0 : index
    %c0_55 = arith.constant 0 : index
    %108 = vector.load %arg9[%c0_54, %c0_55] : memref<16x48xf32, #tpu.memory_space<vmem>>, vector<16x48xf32>
    %cst_56 = arith.constant dense<0.000000e+00> : vector<16x3136xf32>
    %109 = tpu.matmul %108, %107, %cst_56 {dimension_numbers = #tpu.dot_dimension_numbers<[1], [1], [0], [0], [0, 0, 1, 0], [], []>} : vector<16x48xf32>, vector<3136x48xf32>, vector<16x3136xf32> -> vector<16x3136xf32>
    %c0_57 = arith.constant 0 : index
    %c0_58 = arith.constant 0 : index
    %110 = vector.load %arg10[%c0_57, %c0_58] : memref<16x1xf32, #tpu.memory_space<vmem>>, vector<16x1xf32>
    %111 = vector.broadcast %110 : vector<16x1xf32> to vector<16x3136xf32>
    %112 = arith.addf %109, %111 : vector<16x3136xf32>
    %cst_59 = arith.constant 0.707106769 : f32
    %113 = vector.broadcast %cst_59 : f32 to vector<16x3136xf32>
    %114 = arith.mulf %112, %113 : vector<16x3136xf32>
    %115 = math.absf %114 : vector<16x3136xf32>
    %cst_60 = arith.constant 0.327591091 : f32
    %116 = vector.broadcast %cst_60 : f32 to vector<16x3136xf32>
    %117 = arith.mulf %116, %115 : vector<16x3136xf32>
    %cst_61 = arith.constant 1.000000e+00 : f32
    %118 = vector.broadcast %cst_61 : f32 to vector<16x3136xf32>
    %119 = arith.addf %118, %117 : vector<16x3136xf32>
    %cst_62 = arith.constant 1.000000e+00 : f32
    %120 = vector.broadcast %cst_62 : f32 to vector<16x3136xf32>
    %121 = arith.divf %120, %119 : vector<16x3136xf32>
    %cst_63 = arith.constant 1.06140542 : f32
    %122 = vector.broadcast %cst_63 : f32 to vector<16x3136xf32>
    %123 = arith.mulf %121, %122 : vector<16x3136xf32>
    %cst_64 = arith.constant -1.45315206 : f32
    %124 = vector.broadcast %cst_64 : f32 to vector<16x3136xf32>
    %125 = arith.addf %124, %123 : vector<16x3136xf32>
    %126 = arith.mulf %121, %125 : vector<16x3136xf32>
    %cst_65 = arith.constant 1.42141378 : f32
    %127 = vector.broadcast %cst_65 : f32 to vector<16x3136xf32>
    %128 = arith.addf %127, %126 : vector<16x3136xf32>
    %129 = arith.mulf %121, %128 : vector<16x3136xf32>
    %cst_66 = arith.constant -0.284496725 : f32
    %130 = vector.broadcast %cst_66 : f32 to vector<16x3136xf32>
    %131 = arith.addf %130, %129 : vector<16x3136xf32>
    %132 = arith.mulf %121, %131 : vector<16x3136xf32>
    %cst_67 = arith.constant 0.254829586 : f32
    %133 = vector.broadcast %cst_67 : f32 to vector<16x3136xf32>
    %134 = arith.addf %133, %132 : vector<16x3136xf32>
    %135 = arith.mulf %121, %134 : vector<16x3136xf32>
    %cst_68 = arith.constant 0.000000e+00 : f32
    %136 = vector.broadcast %cst_68 : f32 to vector<16x3136xf32>
    %137 = arith.subf %136, %115 : vector<16x3136xf32>
    %138 = arith.mulf %137, %115 : vector<16x3136xf32>
    %139 = math.exp %138 : vector<16x3136xf32>
    %140 = arith.mulf %135, %139 : vector<16x3136xf32>
    %cst_69 = arith.constant 1.000000e+00 : f32
    %141 = vector.broadcast %cst_69 : f32 to vector<16x3136xf32>
    %142 = arith.subf %141, %140 : vector<16x3136xf32>
    %cst_70 = arith.constant 0.000000e+00 : f32
    %143 = vector.broadcast %cst_70 : f32 to vector<16x3136xf32>
    %144 = arith.cmpf olt, %114, %143 : vector<16x3136xf32>
    %cst_71 = arith.constant 0.000000e+00 : f32
    %145 = vector.broadcast %cst_71 : f32 to vector<16x3136xf32>
    %146 = arith.subf %145, %142 : vector<16x3136xf32>
    %147 = arith.select %144, %146, %142 : vector<16x3136xi1>, vector<16x3136xf32>
    %cst_72 = arith.constant 5.000000e-01 : f32
    %148 = vector.broadcast %cst_72 : f32 to vector<16x3136xf32>
    %149 = arith.mulf %148, %112 : vector<16x3136xf32>
    %cst_73 = arith.constant 1.000000e+00 : f32
    %150 = vector.broadcast %cst_73 : f32 to vector<16x3136xf32>
    %151 = arith.addf %150, %147 : vector<16x3136xf32>
    %152 = arith.mulf %149, %151 : vector<16x3136xf32>
    %c2 = arith.constant 2 : index
    %153 = memref.load %arg1[%c2] : memref<3xf32, #tpu.memory_space<smem>>
    %154 = vector.broadcast %153 : f32 to vector<16x3136xf32>
    %155 = arith.mulf %152, %154 : vector<16x3136xf32>
    %c0_74 = arith.constant 0 : index
    %c0_75 = arith.constant 0 : index
    %c0_76 = arith.constant 0 : index
    %156 = vector.load %arg13[%c0_74, %c0_75, %c0_76] : memref<1x16x3136xf32, #tpu.memory_space<vmem>>, vector<1x16x3136xf32>
    %157 = vector.shape_cast %156 : vector<1x16x3136xf32> to vector<16x3136xf32>
    %158 = vector.shape_cast %155 : vector<16x3136xf32> to vector<1x16x3136xf32>
    tpu.vector_store %arg13[%c0_74, %c0_75, %c0_76], %158 {strides = array<i32>} : memref<1x16x3136xf32, #tpu.memory_space<vmem>>, vector<1x16x3136xf32>,
    return
  }
  func.func @transform_0(%arg0: i32) -> i32 {
    %c0_i32 = arith.constant 0 : i32
    %c0_i32_0 = arith.constant 0 : i32
    return %c0_i32 : i32
  }
  func.func @transform_1(%arg0: i32) -> (i32, i32, i32) {
    %c0_i32 = arith.constant 0 : i32
    %c0_i32_0 = arith.constant 0 : i32
    %c0_i32_1 = arith.constant 0 : i32
    return %arg0, %c0_i32, %c0_i32_0 : i32, i32, i32
  }
  func.func @transform_2(%arg0: i32) -> (i32, i32, i32) {
    %c0_i32 = arith.constant 0 : i32
    %c0_i32_0 = arith.constant 0 : i32
    %c0_i32_1 = arith.constant 0 : i32
    return %arg0, %c0_i32, %c0_i32_0 : i32, i32, i32
  }
  func.func @transform_3(%arg0: i32) -> (i32, i32, i32) {
    %c0_i32 = arith.constant 0 : i32
    %c0_i32_0 = arith.constant 0 : i32
    %c0_i32_1 = arith.constant 0 : i32
    return %arg0, %c0_i32, %c0_i32_0 : i32, i32, i32
  }
  func.func @transform_4(%arg0: i32) -> (i32, i32) {
    %c0_i32 = arith.constant 0 : i32
    %c0_i32_0 = arith.constant 0 : i32
    %c0_i32_1 = arith.constant 0 : i32
    return %c0_i32, %c0_i32_0 : i32, i32
  }
  func.func @transform_5(%arg0: i32) -> (i32, i32) {
    %c0_i32 = arith.constant 0 : i32
    %c0_i32_0 = arith.constant 0 : i32
    %c0_i32_1 = arith.constant 0 : i32
    return %c0_i32, %c0_i32_0 : i32, i32
  }
  func.func @transform_6(%arg0: i32) -> (i32, i32) {
    %c0_i32 = arith.constant 0 : i32
    %c0_i32_0 = arith.constant 0 : i32
    %c0_i32_1 = arith.constant 0 : i32
    return %c0_i32, %c0_i32_0 : i32, i32
  }
  func.func @transform_7(%arg0: i32) -> (i32, i32) {
    %c0_i32 = arith.constant 0 : i32
    %c0_i32_0 = arith.constant 0 : i32
    %c0_i32_1 = arith.constant 0 : i32
    return %c0_i32, %c0_i32_0 : i32, i32
  }
  func.func @transform_8(%arg0: i32) -> (i32, i32) {
    %c0_i32 = arith.constant 0 : i32
    %c0_i32_0 = arith.constant 0 : i32
    %c0_i32_1 = arith.constant 0 : i32
    return %c0_i32, %c0_i32_0 : i32, i32
  }
  func.func @transform_9(%arg0: i32) -> (i32, i32) {
    %c0_i32 = arith.constant 0 : i32
    %c0_i32_0 = arith.constant 0 : i32
    %c0_i32_1 = arith.constant 0 : i32
    return %c0_i32, %c0_i32_0 : i32, i32
  }
  func.func @transform_10(%arg0: i32) -> (i32, i32, i32) {
    %c0_i32 = arith.constant 0 : i32
    %c0_i32_0 = arith.constant 0 : i32
    %c0_i32_1 = arith.constant 0 : i32
    return %arg0, %c0_i32, %c0_i32_0 : i32, i32, i32
  }
  func.func @transform_11(%arg0: i32) -> (i32, i32, i32) {
    %c0_i32 = arith.constant 0 : i32
    %c0_i32_0 = arith.constant 0 : i32
    %c0_i32_1 = arith.constant 0 : i32
    return %arg0, %c0_i32, %c0_i32_0 : i32, i32, i32
  }
  func.func @transform_12(%arg0: i32) -> (i32, i32, i32) {
    %c0_i32 = arith.constant 0 : i32
    %c0_i32_0 = arith.constant 0 : i32
    %c0_i32_1 = arith.constant 0 : i32
    return %arg0, %c0_i32, %c0_i32_0 : i32, i32, i32
  }
}

</mosaic_0001>

<llo_original>
// kernel: tpu_custom_call.1
$region0: #{tpu_custom_call.1}
  #allocation0 [shape = 'u32[]', space=smem, size = 0x4, offset = 0x4, fixed_abs, tag = 'smem constant byte address 0x4 - core index']
  #allocation1 [shape = 'u32[144,128]{1,0:T(1,128)}', space=vmem, size = 0x12000, scoped, tag = 'internal scratch']
  %s0 = inlined_call_operand.vmem [shape: f32[3], index: 0, kind: input, shape index: {}]
  %s1 = inlined_call_operand.vmem [shape: f32[2,196,192], index: 1, kind: input, shape index: {}]
  %s2 = inlined_call_operand.vmem [shape: f32[2,784,96], index: 2, kind: input, shape index: {}]
  %s3 = inlined_call_operand.vmem [shape: f32[2,3136,48], index: 3, kind: input, shape index: {}]
  %s4 = inlined_call_operand.vmem [shape: f32[16,192], index: 4, kind: input, shape index: {}]
  %s5 = inlined_call_operand.vmem [shape: f32[16,1], index: 5, kind: input, shape index: {}]
  %s6 = inlined_call_operand.vmem [shape: f32[16,96], index: 6, kind: input, shape index: {}]
  %s7 = inlined_call_operand.vmem [shape: f32[16,1], index: 7, kind: input, shape index: {}]
  %s8 = inlined_call_operand.vmem [shape: f32[16,48], index: 8, kind: input, shape index: {}]
  %s9 = inlined_call_operand.vmem [shape: f32[16,1], index: 9, kind: input, shape index: {}]
  %s10 = inlined_call_operand.hbm [shape: f32[2,16,196], index: 10, kind: output, shape index: {0}]
  %s11 = inlined_call_operand.hbm [shape: f32[2,16,784], index: 11, kind: output, shape index: {1}]
  %s12 = inlined_call_operand.hbm [shape: f32[2,16,3136], index: 12, kind: output, shape index: {2}]
  %13 = xla_tuple %s10, %s11, %s12
  %s14 = sld [smem:[#allocation0]]
  $region93: #{tpu_custom_call.1} parent=0
    _
  %s16 = ssub.s32 1, %s14
  %s17 = scalar_select 0, %s16, %s14
  $region1: #{tpu_custom_call.1} parent=0
    #allocation2 [shape = 'u8[512]{0}', space=smem, size = 0x200, scoped, tag = 'input window, operand 0, single buffered']
    #allocation3 [shape = 's32[2]{0}', space=sflag, size = 0x8, scoped, tag = 'scoped memory for tpu_custom_call.1']
    #allocation4 [shape = 's32[2]{0}', space=sflag, size = 0x8, scoped, tag = 'scoped memory for tpu_custom_call.1']
    #allocation5 [shape = 'u8[32768]{0}', space=vmem, size = 0x8000, scoped, tag = 'output window, operand 0']
    #allocation6 [shape = 'u8[114688]{0}', space=vmem, size = 0x1c000, scoped, tag = 'output window, operand 1']
    #allocation7 [shape = 's32[2]{0}', space=sflag, size = 0x8, scoped, tag = 'scoped memory for tpu_custom_call.1']
    #allocation8 [shape = 'u8[409600]{0}', space=vmem, size = 0x64000, scoped, tag = 'output window, operand 2']
    %18 = vsyncpa [#allocation4], 0
    %19 = vsyncpa [#allocation3], 0
    %s20 = scalar_lea.sflag [#allocation3], 1
    %21 = vsyncpa %s20, 0
    %22 = vsyncpa [#allocation7], 0
    %s23 = scalar_lea.sflag [#allocation7], 1
    %24 = vsyncpa %s23, 0
    loop: start=0, step=1, limit=4
    $region2: #{tpu_custom_call.1} parent=1 // loop_pre_header
      _
    $region3: #{tpu_custom_call.1} parent=1 // loop_header
      %s26 = sphi 0, %s30
      %p27 = scmp.ge.s32.totalorder %s26, 4
      %s34 = sphi 0, %s34
      %s36 = sphi 0, %s34
      %s37 = sphi 0, %s36
      %s51 = sphi 0, %s37
      %s57 = sphi 0, %s59
      %s60 = sphi 0, %s57
      %s61 = sphi 0, %s60
      %s77 = sphi 0, %s61
      %s83 = sphi 0, %s85
      %s86 = sphi 0, %s83
      %s87 = sphi 0, %s86
      %s103 = sphi 0, %s87
      %s109 = sphi 0, %s111
      %s112 = sphi 0, %s109
      %s113 = sphi 0, %s112
      %s129 = sphi 0, %s113
      %s133 = sphi 0, %s133
      %s135 = sphi 0, %s133
      %s136 = sphi 0, %s135
      %s150 = sphi 0, %s136
      %s154 = sphi 0, %s154
      %s156 = sphi 0, %s154
      %s157 = sphi 0, %s156
      %s171 = sphi 0, %s157
      %s175 = sphi 0, %s175
      %s177 = sphi 0, %s175
      %s178 = sphi 0, %s177
      %s192 = sphi 0, %s178
      %s196 = sphi 0, %s196
      %s198 = sphi 0, %s196
      %s199 = sphi 0, %s198
      %s213 = sphi 0, %s199
      %s217 = sphi 0, %s217
      %s219 = sphi 0, %s217
      %s220 = sphi 0, %s219
      %s234 = sphi 0, %s220
      %s238 = sphi 0, %s238
      %s240 = sphi 0, %s238
      %s241 = sphi 0, %s240
      %s255 = sphi 0, %s241
      %s261 = sphi 0, %s263
      %s264 = sphi 0, %s261
      %s265 = sphi 0, %s264
      %s281 = sphi 0, %s265
      %s287 = sphi 0, %s289
      %s290 = sphi 0, %s287
      %s291 = sphi 0, %s290
      %s307 = sphi 0, %s291
      %s313 = sphi 0, %s315
      %s316 = sphi 0, %s313
      %s317 = sphi 0, %s316
      %s333 = sphi 0, %s317
    $region4: #{tpu_custom_call.1} parent=1 // loop_header_branch
      %29 = sbr.rel (%p27) target = $region8
    $region5: #{tpu_custom_call.1} parent=1 // loop_body
      %s31 = ssub.s32 %s26, 1
      %s32 = ssub.s32 %s26, 2
      %s33 = sadd.s32 %s26, 1
      %s35 = sadd.s32 %s34, 1
      %p38 = scmp.eq.s32.totalorder %s26, 1
      %p39 = scmp.ne.s32.totalorder %s34, %s36
      %p40 = scmp.eq.s32.totalorder %s26, 0
      %p41 = por %p39, %p40
      %p42 = scmp.ne.s32.totalorder %s34, %s36
      %p43 = scmp.eq.s32.totalorder %s31, 1
      %p44 = por %p42, %p43
      %p45 = scmp.ne.s32.totalorder %s36, %s37
      %p46 = scmp.eq.s32.totalorder %s31, 0
      %p47 = por %p45, %p46
      %p48 = scmp.ne.s32.totalorder %s36, %s37
      %p49 = scmp.eq.s32.totalorder %s32, 1
      %p50 = por %p48, %p49
      %p52 = scmp.ne.s32.totalorder %s37, %s51
      %p53 = scmp.eq.s32.totalorder %s32, 0
      %p54 = por %p52, %p53
      %s55 = ssub.s32 %s26, %s33
      %p56 = scmp.eq.s32.totalorder %s55, 0
      %s58 = sadd.s32 %s57, 1
      %s59 = scalar_select %p56, %s57, %s58
      %p62 = pneg %p56
      %p63 = scmp.eq.s32.totalorder %s26, 1
      %p64 = por %p62, %p63
      %p65 = scmp.ne.s32.totalorder %s57, %s60
      %p66 = scmp.eq.s32.totalorder %s26, 0
      %p67 = por %p65, %p66
      %p68 = scmp.ne.s32.totalorder %s57, %s60
      %p69 = scmp.eq.s32.totalorder %s31, 1
      %p70 = por %p68, %p69
      %p71 = scmp.ne.s32.totalorder %s60, %s61
      %p72 = scmp.eq.s32.totalorder %s31, 0
      %p73 = por %p71, %p72
      %p74 = scmp.ne.s32.totalorder %s60, %s61
      %p75 = scmp.eq.s32.totalorder %s32, 1
      %p76 = por %p74, %p75
      %p78 = scmp.ne.s32.totalorder %s61, %s77
      %p79 = scmp.eq.s32.totalorder %s32, 0
      %p80 = por %p78, %p79
      %s81 = ssub.s32 %s26, %s33
      %p82 = scmp.eq.s32.totalorder %s81, 0
      %s84 = sadd.s32 %s83, 1
      %s85 = scalar_select %p82, %s83, %s84
      %p88 = pneg %p82
      %p89 = scmp.eq.s32.totalorder %s26, 1
      %p90 = por %p88, %p89
      %p91 = scmp.ne.s32.totalorder %s83, %s86
      %p92 = scmp.eq.s32.totalorder %s26, 0
      %p93 = por %p91, %p92
      %p94 = scmp.ne.s32.totalorder %s83, %s86
      %p95 = scmp.eq.s32.totalorder %s31, 1
      %p96 = por %p94, %p95
      %p97 = scmp.ne.s32.totalorder %s86, %s87
      %p98 = scmp.eq.s32.totalorder %s31, 0
      %p99 = por %p97, %p98
      %p100 = scmp.ne.s32.totalorder %s86, %s87
      %p101 = scmp.eq.s32.totalorder %s32, 1
      %p102 = por %p100, %p101
      %p104 = scmp.ne.s32.totalorder %s87, %s103
      %p105 = scmp.eq.s32.totalorder %s32, 0
      %p106 = por %p104, %p105
      %s107 = ssub.s32 %s26, %s33
      %p108 = scmp.eq.s32.totalorder %s107, 0
      %s110 = sadd.s32 %s109, 1
      %s111 = scalar_select %p108, %s109, %s110
      %p114 = pneg %p108
      %p115 = scmp.eq.s32.totalorder %s26, 1
      %p116 = por %p114, %p115
      %p117 = scmp.ne.s32.totalorder %s109, %s112
      %p118 = scmp.eq.s32.totalorder %s26, 0
      %p119 = por %p117, %p118
      %p120 = scmp.ne.s32.totalorder %s109, %s112
      %p121 = scmp.eq.s32.totalorder %s31, 1
      %p122 = por %p120, %p121
      %p123 = scmp.ne.s32.totalorder %s112, %s113
      %p124 = scmp.eq.s32.totalorder %s31, 0
      %p125 = por %p123, %p124
      %p126 = scmp.ne.s32.totalorder %s112, %s113
      %p127 = scmp.eq.s32.totalorder %s32, 1
      %p128 = por %p126, %p127
      %p130 = scmp.ne.s32.totalorder %s113, %s129
      %p131 = scmp.eq.s32.totalorder %s32, 0
      %p132 = por %p130, %p131
      %s134 = sadd.s32 %s133, 1
      %p137 = scmp.eq.s32.totalorder %s26, 1
      %p138 = scmp.ne.s32.totalorder %s133, %s135
      %p139 = scmp.eq.s32.totalorder %s26, 0
      %p140 = por %p138, %p139
      %p141 = scmp.ne.s32.totalorder %s133, %s135
      %p142 = scmp.eq.s32.totalorder %s31, 1
      %p143 = por %p141, %p142
      %p144 = scmp.ne.s32.totalorder %s135, %s136
      %p145 = scmp.eq.s32.totalorder %s31, 0
      %p146 = por %p144, %p145
      %p147 = scmp.ne.s32.totalorder %s135, %s136
      %p148 = scmp.eq.s32.totalorder %s32, 1
      %p149 = por %p147, %p148
      %p151 = scmp.ne.s32.totalorder %s136, %s150
      %p152 = scmp.eq.s32.totalorder %s32, 0
      %p153 = por %p151, %p152
      %s155 = sadd.s32 %s154, 1
      %p158 = scmp.eq.s32.totalorder %s26, 1
      %p159 = scmp.ne.s32.totalorder %s154, %s156
      %p160 = scmp.eq.s32.totalorder %s26, 0
      %p161 = por %p159, %p160
      %p162 = scmp.ne.s32.totalorder %s154, %s156
      %p163 = scmp.eq.s32.totalorder %s31, 1
      %p164 = por %p162, %p163
      %p165 = scmp.ne.s32.totalorder %s156, %s157
      %p166 = scmp.eq.s32.totalorder %s31, 0
      %p167 = por %p165, %p166
      %p168 = scmp.ne.s32.totalorder %s156, %s157
      %p169 = scmp.eq.s32.totalorder %s32, 1
      %p170 = por %p168, %p169
      %p172 = scmp.ne.s32.totalorder %s157, %s171
      %p173 = scmp.eq.s32.totalorder %s32, 0
      %p174 = por %p172, %p173
      %s176 = sadd.s32 %s175, 1
      %p179 = scmp.eq.s32.totalorder %s26, 1
      %p180 = scmp.ne.s32.totalorder %s175, %s177
      %p181 = scmp.eq.s32.totalorder %s26, 0
      %p182 = por %p180, %p181
      %p183 = scmp.ne.s32.totalorder %s175, %s177
      %p184 = scmp.eq.s32.totalorder %s31, 1
      %p185 = por %p183, %p184
      %p186 = scmp.ne.s32.totalorder %s177, %s178
      %p187 = scmp.eq.s32.totalorder %s31, 0
      %p188 = por %p186, %p187
      %p189 = scmp.ne.s32.totalorder %s177, %s178
      %p190 = scmp.eq.s32.totalorder %s32, 1
      %p191 = por %p189, %p190
      %p193 = scmp.ne.s32.totalorder %s178, %s192
      %p194 = scmp.eq.s32.totalorder %s32, 0
      %p195 = por %p193, %p194
      %s197 = sadd.s32 %s196, 1
      %p200 = scmp.eq.s32.totalorder %s26, 1
      %p201 = scmp.ne.s32.totalorder %s196, %s198
      %p202 = scmp.eq.s32.totalorder %s26, 0
      %p203 = por %p201, %p202
      %p204 = scmp.ne.s32.totalorder %s196, %s198
      %p205 = scmp.eq.s32.totalorder %s31, 1
      %p206 = por %p204, %p205
      %p207 = scmp.ne.s32.totalorder %s198, %s199
      %p208 = scmp.eq.s32.totalorder %s31, 0
      %p209 = por %p207, %p208
      %p210 = scmp.ne.s32.totalorder %s198, %s199
      %p211 = scmp.eq.s32.totalorder %s32, 1
      %p212 = por %p210, %p211
      %p214 = scmp.ne.s32.totalorder %s199, %s213
      %p215 = scmp.eq.s32.totalorder %s32, 0
      %p216 = por %p214, %p215
      %s218 = sadd.s32 %s217, 1
      %p221 = scmp.eq.s32.totalorder %s26, 1
      %p222 = scmp.ne.s32.totalorder %s217, %s219
      %p223 = scmp.eq.s32.totalorder %s26, 0
      %p224 = por %p222, %p223
      %p225 = scmp.ne.s32.totalorder %s217, %s219
      %p226 = scmp.eq.s32.totalorder %s31, 1
      %p227 = por %p225, %p226
      %p228 = scmp.ne.s32.totalorder %s219, %s220
      %p229 = scmp.eq.s32.totalorder %s31, 0
      %p230 = por %p228, %p229
      %p231 = scmp.ne.s32.totalorder %s219, %s220
      %p232 = scmp.eq.s32.totalorder %s32, 1
      %p233 = por %p231, %p232
      %p235 = scmp.ne.s32.totalorder %s220, %s234
      %p236 = scmp.eq.s32.totalorder %s32, 0
      %p237 = por %p235, %p236
      %s239 = sadd.s32 %s238, 1
      %p242 = scmp.eq.s32.totalorder %s26, 1
      %p243 = scmp.ne.s32.totalorder %s238, %s240
      %p244 = scmp.eq.s32.totalorder %s26, 0
      %p245 = por %p243, %p244
      %p246 = scmp.ne.s32.totalorder %s238, %s240
      %p247 = scmp.eq.s32.totalorder %s31, 1
      %p248 = por %p246, %p247
      %p249 = scmp.ne.s32.totalorder %s240, %s241
      %p250 = scmp.eq.s32.totalorder %s31, 0
      %p251 = por %p249, %p250
      %p252 = scmp.ne.s32.totalorder %s240, %s241
      %p253 = scmp.eq.s32.totalorder %s32, 1
      %p254 = por %p252, %p253
      %p256 = scmp.ne.s32.totalorder %s241, %s255
      %p257 = scmp.eq.s32.totalorder %s32, 0
      %p258 = por %p256, %p257
      %s259 = ssub.s32 %s26, %s33
      %p260 = scmp.eq.s32.totalorder %s259, 0
      %s262 = sadd.s32 %s261, 1
      %s263 = scalar_select %p260, %s261, %s262
      %p266 = pneg %p260
      %p267 = scmp.eq.s32.totalorder %s26, 1
      %p268 = por %p266, %p267
      %p269 = scmp.ne.s32.totalorder %s261, %s264
      %p270 = scmp.eq.s32.totalorder %s26, 0
      %p271 = por %p269, %p270
      %p272 = scmp.ne.s32.totalorder %s261, %s264
      %p273 = scmp.eq.s32.totalorder %s31, 1
      %p274 = por %p272, %p273
      %p275 = scmp.ne.s32.totalorder %s264, %s265
      %p276 = scmp.eq.s32.totalorder %s31, 0
      %p277 = por %p275, %p276
      %p278 = scmp.ne.s32.totalorder %s264, %s265
      %p279 = scmp.eq.s32.totalorder %s32, 1
      %p280 = por %p278, %p279
      %p282 = scmp.ne.s32.totalorder %s265, %s281
      %p283 = scmp.eq.s32.totalorder %s32, 0
      %p284 = por %p282, %p283
      %s285 = ssub.s32 %s26, %s33
      %p286 = scmp.eq.s32.totalorder %s285, 0
      %s288 = sadd.s32 %s287, 1
      %s289 = scalar_select %p286, %s287, %s288
      %p292 = pneg %p286
      %p293 = scmp.eq.s32.totalorder %s26, 1
      %p294 = por %p292, %p293
      %p295 = scmp.ne.s32.totalorder %s287, %s290
      %p296 = scmp.eq.s32.totalorder %s26, 0
      %p297 = por %p295, %p296
      %p298 = scmp.ne.s32.totalorder %s287, %s290
      %p299 = scmp.eq.s32.totalorder %s31, 1
      %p300 = por %p298, %p299
      %p301 = scmp.ne.s32.totalorder %s290, %s291
      %p302 = scmp.eq.s32.totalorder %s31, 0
      %p303 = por %p301, %p302
      %p304 = scmp.ne.s32.totalorder %s290, %s291
      %p305 = scmp.eq.s32.totalorder %s32, 1
      %p306 = por %p304, %p305
      %p308 = scmp.ne.s32.totalorder %s291, %s307
      %p309 = scmp.eq.s32.totalorder %s32, 0
      %p310 = por %p308, %p309
      %s311 = ssub.s32 %s26, %s33
      %p312 = scmp.eq.s32.totalorder %s311, 0
      %s314 = sadd.s32 %s313, 1
      %s315 = scalar_select %p312, %s313, %s314
      %p318 = pneg %p312
      %p319 = scmp.eq.s32.totalorder %s26, 1
      %p320 = por %p318, %p319
      %p321 = scmp.ne.s32.totalorder %s313, %s316
      %p322 = scmp.eq.s32.totalorder %s26, 0
      %p323 = por %p321, %p322
      %p324 = scmp.ne.s32.totalorder %s313, %s316
      %p325 = scmp.eq.s32.totalorder %s31, 1
      %p326 = por %p324, %p325
      %p327 = scmp.ne.s32.totalorder %s316, %s317
      %p328 = scmp.eq.s32.totalorder %s31, 0
      %p329 = por %p327, %p328
      %p330 = scmp.ne.s32.totalorder %s316, %s317
      %p331 = scmp.eq.s32.totalorder %s32, 1
      %p332 = por %p330, %p331
      %p334 = scmp.ne.s32.totalorder %s317, %s333
      %p335 = scmp.eq.s32.totalorder %s32, 0
      %p336 = por %p334, %p335
      %p337 = scmp.le.s32.totalorder 1, %s26
      %p338 = scmp.lt.s32.totalorder %s26, 3
      %p339 = pnand %p337, %p338
      %p340 = pneg %p339
      // Predicated region
      $region9: #{tpu_custom_call.1} parent=5 // pred_check
        _
      $region10: #{tpu_custom_call.1} parent=5 // pred_check_branch
        %342 = sbr.rel (%p339) target = $region12
      $region11: #{tpu_custom_call.1} parent=5 // pred_region
        %s343 = ssub.s32 %s26, 1
        // Predicated region
        $region13: #{tpu_custom_call.1} parent=11 // pred_check
          %p344 = pneg %p47
        $region14: #{tpu_custom_call.1} parent=11 // pred_check_branch
          %346 = sbr.rel (%p344) target = $region16
        $region15: #{tpu_custom_call.1} parent=11 // pred_region
          %s348 = ssub.s32 16, 16
          %349 = vsyncadd [#allocation4], %s348
          %s351 = sshll.u32 %s0, 4
          %s352 = int_to_ptr.vmem [resolvable:$true] %s351
          %354 = dma.vmem_to_smem %s352, 16, [#allocation2], [#allocation4]
        $region16: #{tpu_custom_call.1} parent=11 // pred_fallthru
          _
        // Predicated region
        $region17: #{tpu_custom_call.1} parent=11 // pred_check
          %p355 = pneg %p146
        $region18: #{tpu_custom_call.1} parent=11 // pred_check_branch
          %357 = sbr.rel (%p355) target = $region20
        $region19: #{tpu_custom_call.1} parent=11 // pred_region
          _
        $region20: #{tpu_custom_call.1} parent=11 // pred_fallthru
          _
        // Predicated region
        $region21: #{tpu_custom_call.1} parent=11 // pred_check
          %p358 = pneg %p167
        $region22: #{tpu_custom_call.1} parent=11 // pred_check_branch
          %360 = sbr.rel (%p358) target = $region24
        $region23: #{tpu_custom_call.1} parent=11 // pred_region
          _
        $region24: #{tpu_custom_call.1} parent=11 // pred_fallthru
          _
        // Predicated region
        $region25: #{tpu_custom_call.1} parent=11 // pred_check
          %p361 = pneg %p188
        $region26: #{tpu_custom_call.1} parent=11 // pred_check_branch
          %363 = sbr.rel (%p361) target = $region28
        $region27: #{tpu_custom_call.1} parent=11 // pred_region
          _
        $region28: #{tpu_custom_call.1} parent=11 // pred_fallthru
          _
        // Predicated region
        $region29: #{tpu_custom_call.1} parent=11 // pred_check
          %p364 = pneg %p209
        $region30: #{tpu_custom_call.1} parent=11 // pred_check_branch
          %366 = sbr.rel (%p364) target = $region32
        $region31: #{tpu_custom_call.1} parent=11 // pred_region
          _
        $region32: #{tpu_custom_call.1} parent=11 // pred_fallthru
          _
        // Predicated region
        $region33: #{tpu_custom_call.1} parent=11 // pred_check
          %p367 = pneg %p230
        $region34: #{tpu_custom_call.1} parent=11 // pred_check_branch
          %369 = sbr.rel (%p367) target = $region36
        $region35: #{tpu_custom_call.1} parent=11 // pred_region
          _
        $region36: #{tpu_custom_call.1} parent=11 // pred_fallthru
          _
        // Predicated region
        $region37: #{tpu_custom_call.1} parent=11 // pred_check
          %p370 = pneg %p251
        $region38: #{tpu_custom_call.1} parent=11 // pred_check_branch
          %372 = sbr.rel (%p370) target = $region40
        $region39: #{tpu_custom_call.1} parent=11 // pred_region
          _
        $region40: #{tpu_custom_call.1} parent=11 // pred_fallthru
          _
      $region12: #{tpu_custom_call.1} parent=5 // pred_fallthru
        _
      %p373 = scmp.lt.s32.totalorder %s26, 2
      // Predicated region
      $region41: #{tpu_custom_call.1} parent=5 // pred_check
        %p374 = pneg %p373
      $region42: #{tpu_custom_call.1} parent=5 // pred_check_branch
        %376 = sbr.rel (%p374) target = $region44
      $region43: #{tpu_custom_call.1} parent=5 // pred_region
        // Predicated region
        $region45: #{tpu_custom_call.1} parent=43 // pred_check
          %p377 = pneg %p67
        $region46: #{tpu_custom_call.1} parent=43 // pred_check_branch
          %379 = sbr.rel (%p377) target = $region48
        $region47: #{tpu_custom_call.1} parent=43 // pred_region
          %p380 = scmp.lt.s32.totalorder %s26, 1
          %s381 = scalar_select %p380, %s26, 1
          %s382 = smul.addr %s381, 50
          %s383 = smul.addr %s382, 8
          %s384 = scalar_lea.vmem %s1, %s383
        $region48: #{tpu_custom_call.1} parent=43 // pred_fallthru
          _
        // Predicated region
        $region49: #{tpu_custom_call.1} parent=43 // pred_check
          %p385 = pneg %p93
        $region50: #{tpu_custom_call.1} parent=43 // pred_check_branch
          %387 = sbr.rel (%p385) target = $region52
        $region51: #{tpu_custom_call.1} parent=43 // pred_region
          %p388 = scmp.lt.s32.totalorder %s26, 1
          %s389 = scalar_select %p388, %s26, 1
          %s390 = smul.addr %s389, 98
          %s391 = smul.addr %s390, 8
          %s392 = scalar_lea.vmem %s2, %s391
        $region52: #{tpu_custom_call.1} parent=43 // pred_fallthru
          _
        // Predicated region
        $region53: #{tpu_custom_call.1} parent=43 // pred_check
          %p393 = pneg %p119
        $region54: #{tpu_custom_call.1} parent=43 // pred_check_branch
          %395 = sbr.rel (%p393) target = $region56
        $region55: #{tpu_custom_call.1} parent=43 // pred_region
          %p396 = scmp.lt.s32.totalorder %s26, 1
          %s397 = scalar_select %p396, %s26, 1
          %s398 = smul.addr %s397, 392
          %s399 = smul.addr %s398, 8
          %s400 = scalar_lea.vmem %s3, %s399
        $region56: #{tpu_custom_call.1} parent=43 // pred_fallthru
          _
      $region44: #{tpu_custom_call.1} parent=5 // pred_fallthru
        _
      %p401 = scmp.le.s32.totalorder 1, %s26
      %p402 = scmp.lt.s32.totalorder %s26, 3
      %p403 = pnand %p401, %p402
      %p404 = pneg %p403
      // Predicated region
      $region57: #{tpu_custom_call.1} parent=5 // pred_check
        _
      $region58: #{tpu_custom_call.1} parent=5 // pred_check_branch
        %406 = sbr.rel (%p403) target = $region60
      $region59: #{tpu_custom_call.1} parent=5 // pred_region
        %s407 = ssub.s32 %s26, 1
        // Predicated region
        $region61: #{tpu_custom_call.1} parent=59 // pred_check
          %p408 = pneg %p47
        $region62: #{tpu_custom_call.1} parent=59 // pred_check_branch
          %410 = sbr.rel (%p408) target = $region64
        $region63: #{tpu_custom_call.1} parent=59 // pred_region
          %411 = dma.done [#allocation4], 16
        $region64: #{tpu_custom_call.1} parent=59 // pred_fallthru
          _
        %412 = sfence
        %p413 = pneg %p47
        %p414 = pneg %p44
        %p415 = scmp.lt.s32.totalorder %s31, 1
        %s416 = scalar_select %p415, %s31, 1
        %s417 = smul.addr %s416, 50
        %s418 = smul.addr %s417, 8
        %s419 = scalar_lea.vmem %s1, %s418
        %p420 = pneg %p73
        %p421 = pneg %p70
        %p422 = scmp.lt.s32.totalorder %s31, 1
        %s423 = scalar_select %p422, %s31, 1
        %s424 = smul.addr %s423, 98
        %s425 = smul.addr %s424, 8
        %s426 = scalar_lea.vmem %s2, %s425
        %p427 = pneg %p99
        %p428 = pneg %p96
        %p429 = scmp.lt.s32.totalorder %s31, 1
        %s430 = scalar_select %p429, %s31, 1
        %s431 = smul.addr %s430, 392
        %s432 = smul.addr %s431, 8
        %s433 = scalar_lea.vmem %s3, %s432
        %p434 = pneg %p125
        %p435 = pneg %p122
        %p436 = pneg %p146
        %p437 = pneg %p143
        %p438 = pneg %p167
        %p439 = pneg %p164
        %p440 = pneg %p188
        %p441 = pneg %p185
        %p442 = pneg %p209
        %p443 = pneg %p206
        %p444 = pneg %p230
        %p445 = pneg %p227
        %p446 = pneg %p251
        %p447 = pneg %p248
        %p448 = pneg %p277
        %p449 = pneg %p274
        %s450 = sand.u32 %s264, 1
        %s451 = scalar_lea.sflag [#allocation3], %s450
        %s452 = sand.u32 %s264, 1
        %s453 = smul.addr %s452, 32
        %s454 = scalar_lea.vmem [#allocation5], %s453
        %p455 = pneg %p303
        %p456 = pneg %p300
        %s457 = sand.u32 %s31, 1
        %s458 = scalar_lea.sflag [#allocation7], %s457
        %s459 = sand.u32 %s290, 1
        %s460 = smul.addr %s459, 112
        %s461 = scalar_lea.vmem [#allocation6], %s460
        %p462 = pneg %p329
        %p463 = pneg %p326
        %s464 = sand.u32 %s31, 1
        %s465 = scalar_lea.sflag [#allocation7], %s464
        %s466 = sand.u32 %s316, 1
        %s467 = smul.addr %s466, 400
        %s468 = scalar_lea.vmem [#allocation8], %s467
        %p469 = scmp.lt.s32.totalorder %s31, 1
        %s470 = scalar_select %p469, %s31, 1
        %s471 = smul.addr %s470, 50
        %s472 = smul.addr %s471, 8
        %s473 = scalar_lea.vmem %s1, %s472
        %p474 = scmp.lt.s32.totalorder %s31, 1
        %s475 = scalar_select %p474, %s31, 1
        %s476 = smul.addr %s475, 98
        %s477 = smul.addr %s476, 8
        %s478 = scalar_lea.vmem %s2, %s477
        %p479 = scmp.lt.s32.totalorder %s31, 1
        %s480 = scalar_select %p479, %s31, 1
        %s481 = smul.addr %s480, 392
        %s482 = smul.addr %s481, 8
        %s483 = scalar_lea.vmem %s3, %s482
        %v484 = vld [vmem:[%s473] sm:$0xff]
        %v485 = vld [vmem:[%s473 + $0x8] sm:$0xff]
        %v486 = vld [vmem:[%s473 + $0x10] sm:$0xff]
        %v487 = vld [vmem:[%s473 + $0x18] sm:$0xff]
        %v488 = vld [vmem:[%s473 + $0x20] sm:$0xff]
        %v489 = vld [vmem:[%s473 + $0x28] sm:$0xff]
        %v490 = vld [vmem:[%s473 + $0x30] sm:$0xff]
        %v491 = vld [vmem:[%s473 + $0x38] sm:$0xff]
        %v492 = vld [vmem:[%s473 + $0x40] sm:$0xff]
        %v493 = vld [vmem:[%s473 + $0x48] sm:$0xff]
        %v494 = vld [vmem:[%s473 + $0x50] sm:$0xff]
        %v495 = vld [vmem:[%s473 + $0x58] sm:$0xff]
        %v496 = vld [vmem:[%s473 + $0x60] sm:$0xff]
        %v497 = vld [vmem:[%s473 + $0x68] sm:$0xff]
        %v498 = vld [vmem:[%s473 + $0x70] sm:$0xff]
        %v499 = vld [vmem:[%s473 + $0x78] sm:$0xff]
        %v500 = vld [vmem:[%s473 + $0x80] sm:$0xff]
        %v501 = vld [vmem:[%s473 + $0x88] sm:$0xff]
        %v502 = vld [vmem:[%s473 + $0x90] sm:$0xff]
        %v503 = vld [vmem:[%s473 + $0x98] sm:$0xff]
        %v504 = vld [vmem:[%s473 + $0xa0] sm:$0xff]
        %v505 = vld [vmem:[%s473 + $0xa8] sm:$0xff]
        %v506 = vld [vmem:[%s473 + $0xb0] sm:$0xff]
        %v507 = vld [vmem:[%s473 + $0xb8] sm:$0xff]
        %v508 = vld [vmem:[%s473 + $0xc0] sm:$0xff]
        %v509 = vld [vmem:[%s473 + $0xc8] sm:$0xff]
        %v510 = vld [vmem:[%s473 + $0xd0] sm:$0xff]
        %v511 = vld [vmem:[%s473 + $0xd8] sm:$0xff]
        %v512 = vld [vmem:[%s473 + $0xe0] sm:$0xff]
        %v513 = vld [vmem:[%s473 + $0xe8] sm:$0xff]
        %v514 = vld [vmem:[%s473 + $0xf0] sm:$0xff]
        %v515 = vld [vmem:[%s473 + $0xf8] sm:$0xff]
        %v516 = vld [vmem:[%s473 + $0x100] sm:$0xff]
        %v517 = vld [vmem:[%s473 + $0x108] sm:$0xff]
        %v518 = vld [vmem:[%s473 + $0x110] sm:$0xff]
        %v519 = vld [vmem:[%s473 + $0x118] sm:$0xff]
        %v520 = vld [vmem:[%s473 + $0x120] sm:$0xff]
        %v521 = vld [vmem:[%s473 + $0x128] sm:$0xff]
        %v522 = vld [vmem:[%s473 + $0x130] sm:$0xff]
        %v523 = vld [vmem:[%s473 + $0x138] sm:$0xff]
        %v524 = vld [vmem:[%s473 + $0x140] sm:$0xff]
        %v525 = vld [vmem:[%s473 + $0x148] sm:$0xff]
        %v526 = vld [vmem:[%s473 + $0x150] sm:$0xff]
        %v527 = vld [vmem:[%s473 + $0x158] sm:$0xff]
        %v528 = vld [vmem:[%s473 + $0x160] sm:$0xff]
        %v529 = vld [vmem:[%s473 + $0x168] sm:$0xff]
        %v530 = vld [vmem:[%s473 + $0x170] sm:$0xff]
        %v531 = vld [vmem:[%s473 + $0x178] sm:$0xff]
        %v532 = vld [vmem:[%s473 + $0x180] sm:$0xf]
        %v533 = vld [vmem:[%s473 + $0x188] sm:$0xf]
        %v534 = vld [vmem:[%s4] sm:$0xff]
        %v535 = vld [vmem:[%s4 + $0x8] sm:$0xff]
        %v536 = vld [vmem:[%s4 + $0x10] sm:$0xff]
        %v537 = vld [vmem:[%s4 + $0x18] sm:$0xff]
        %v538 = vld [vmem:[%s5] sm:$0xff]
        %v539 = vld [vmem:[%s5 + $0x8] sm:$0xff]
        %541 = vset.pattern.permute.xlu0 0
        %542 = vperm.xlu0 %541, %v538
        %v543 = vpop.permute.xlu0 %542
        %546 = vset.pattern.permute.xlu0 0
        %547 = vperm.xlu0 %546, %v539
        %v548 = vpop.permute.xlu0 %547
        %vm550 = vcmask 523264
        %v552 = vsel %vm550, %v535, 0
        %v555 = vsel %vm550, %v537, 0
        %v558 = vsel %vm550, %v485, 0
        %v561 = vsel %vm550, %v487, 0
        %v564 = vsel %vm550, %v489, 0
        %v567 = vsel %vm550, %v491, 0
        %v570 = vsel %vm550, %v493, 0
        %v573 = vsel %vm550, %v495, 0
        %v576 = vsel %vm550, %v497, 0
        %v579 = vsel %vm550, %v499, 0
        %v582 = vsel %vm550, %v501, 0
        %v585 = vsel %vm550, %v503, 0
        %v588 = vsel %vm550, %v505, 0
        %v591 = vsel %vm550, %v507, 0
        %v594 = vsel %vm550, %v509, 0
        %v597 = vsel %vm550, %v511, 0
        %v600 = vsel %vm550, %v513, 0
        %v603 = vsel %vm550, %v515, 0
        %v606 = vsel %vm550, %v517, 0
        %v609 = vsel %vm550, %v519, 0
        %v612 = vsel %vm550, %v521, 0
        %v615 = vsel %vm550, %v523, 0
        %v618 = vsel %vm550, %v525, 0
        %v621 = vsel %vm550, %v527, 0
        %v624 = vsel %vm550, %v529, 0
        %v627 = vsel %vm550, %v531, 0
        %v630 = vsel %vm550, %v533, 0
        %632 = vmatprep.subr.mxu0 %v558
        %633 = vmatpush1.xpose.msra.mxu0 %v484
        %634 = vmatprep.subr.mxu0 %v561
        %635 = vmatpush1.xpose.msra.mxu0 %v486
        %636 = vmatprep.subr.mxu0 %v564
        %637 = vmatpush1.xpose.msra.mxu0 %v488
        %638 = vmatprep.subr.mxu0 %v567
        %639 = vmatpush1.xpose.msra.mxu0 %v490
        %640 = vmatprep.subr.mxu0 %v570
        %641 = vmatpush1.xpose.msra.mxu0 %v492
        %642 = vmatprep.subr.mxu0 %v573
        %643 = vmatpush1.xpose.msra.mxu0 %v494
        %644 = vmatprep.subr.mxu0 %v576
        %645 = vmatpush1.xpose.msra.mxu0 %v496
        %646 = vmatprep.subr.mxu0 %v579
        %647 = vmatpush1.xpose.msra.mxu0 %v498
        %648 = vmatprep.subr.mxu0 %v582
        %649 = vmatpush1.xpose.msra.mxu0 %v500
        %650 = vmatprep.subr.mxu0 %v585
        %651 = vmatpush1.xpose.msra.mxu0 %v502
        %652 = vmatprep.subr.mxu0 %v588
        %653 = vmatpush1.xpose.msra.mxu0 %v504
        %654 = vmatprep.subr.mxu0 %v591
        %655 = vmatpush1.xpose.msra.mxu0 %v506
        %656 = vmatprep.subr.mxu0 %v594
        %657 = vmatpush1.xpose.msra.mxu0 %v508
        %658 = vmatprep.subr.mxu0 %v597
        %659 = vmatpush1.xpose.msra.mxu0 %v510
        %660 = vmatprep.subr.mxu0 %v600
        %661 = vmatpush1.xpose.msra.mxu0 %v512
        %662 = vmatprep.subr.mxu0 %v603
        %663 = vmatpush1.xpose.msra.mxu0 %v514
        %664 = vmatprep.subr.mxu0 %v606
        %665 = vmatpush1.xpose.msra.mxu0 %v516
        %666 = vmatprep.subr.mxu0 %v609
        %667 = vmatpush1.xpose.msra.mxu0 %v518
        %668 = vmatprep.subr.mxu0 %v612
        %669 = vmatpush1.xpose.msra.mxu0 %v520
        %670 = vmatprep.subr.mxu0 %v615
        %671 = vmatpush1.xpose.msra.mxu0 %v522
        %672 = vmatprep.subr.mxu0 %v618
        %673 = vmatpush1.xpose.msra.mxu0 %v524
        %674 = vmatprep.subr.mxu0 %v621
        %675 = vmatpush1.xpose.msra.mxu0 %v526
        %676 = vmatprep.subr.mxu0 %v624
        %677 = vmatpush1.xpose.msra.mxu0 %v528
        %678 = vmatprep.subr.mxu0 %v627
        %679 = vmatpush1.xpose.msra.mxu0 %v530
        %680 = vmatprep.subr.mxu0 %v630
        %681 = vmatpush1.xpose.msra.mxu0 %v532
        %682 = vmatprep.subr.mxu0 0.0
        %683 = vmatpush1.xpose.msra.mxu0 0.0
        %684 = vmatprep.subr.mxu0 0.0
        %685 = vmatpush1.xpose.msra.mxu0 0.0
        %686 = vmatprep.subr.mxu0 0.0
        %687 = vmatpush1.xpose.msra.mxu0 0.0
        %688 = vmatprep.subr.mxu0 0.0
        %689 = vmatpush1.xpose.msra.mxu0 0.0
        %690 = vmatprep.subr.mxu0 0.0
        %691 = vmatpush1.xpose.msra.mxu0 0.0
        %692 = vmatprep.subr.mxu0 0.0
        %693 = vmatpush1.xpose.msra.mxu0 0.0
        %694 = vmatprep.subr.mxu0 0.0
        %695 = vmatpush1.xpose.msra.mxu0 0.0
        %696 = vmatprep.mubr.f32.mxu0 %v552
        %697 = vmatmul.mubr.f32.gmra.mrb[0].mxu0 %v534
        %v698 = vpop.f32.mrb[0].mxu0
        %v699 = vadd.f32 %v543, %v698
        %v700 = vpop.f32.mrb[0].mxu0
        %v701 = vadd.f32 %v543, %v700
        %702 = vmatprep.mubr.f32.mxu0 %v555
        %703 = vmatmul.mubr.f32.gmra.mrb[0].mxu0 %v536
        %v704 = vpop.f32.mrb[0].mxu0
        %v705 = vadd.f32 %v548, %v704
        %v706 = vpop.f32.mrb[0].mxu0
        %v707 = vadd.f32 %v548, %v706
        %708 = vdwg.mxu0
        %v709 = vmul.f32 %v699, 0.70710677
        %v710 = vmul.f32 %v701, 0.70710677
        %v711 = vmul.f32 %v705, 0.70710677
        %v712 = vmul.f32 %v707, 0.70710677
        %v713 = vand.u32 2147483647, %v709
        %v714 = vand.u32 2147483647, %v710
        %v715 = vand.u32 2147483647, %v711
        %v716 = vand.u32 2147483647, %v712
        %v717 = vmul.f32 %v713, 0.3275911
        %v718 = vmul.f32 %v714, 0.3275911
        %v719 = vmul.f32 %v715, 0.3275911
        %v720 = vmul.f32 %v716, 0.3275911
        %v721 = vadd.f32 %v717, 1.0
        %v722 = vadd.f32 %v718, 1.0
        %v723 = vadd.f32 %v719, 1.0
        %v724 = vadd.f32 %v720, 1.0
        %v725 = vrcp.pop %v721
        %v726 = vmul.f32 1.0, %v725
        %v727 = vrcp.pop %v722
        %v728 = vmul.f32 1.0, %v727
        %v729 = vrcp.pop %v723
        %v730 = vmul.f32 1.0, %v729
        %v731 = vrcp.pop %v724
        %v732 = vmul.f32 1.0, %v731
        %v733 = vmul.f32 %v726, 1.0614054
        %v734 = vmul.f32 %v728, 1.0614054
        %v735 = vmul.f32 %v730, 1.0614054
        %v736 = vmul.f32 %v732, 1.0614054
        %v737 = vadd.f32 %v733, -1.4531521
        %v738 = vadd.f32 %v734, -1.4531521
        %v739 = vadd.f32 %v735, -1.4531521
        %v740 = vadd.f32 %v736, -1.4531521
        %v741 = vmul.f32 %v726, %v737
        %v742 = vmul.f32 %v728, %v738
        %v743 = vmul.f32 %v730, %v739
        %v744 = vmul.f32 %v732, %v740
        %v745 = vadd.f32 %v741, 1.4214138
        %v746 = vadd.f32 %v742, 1.4214138
        %v747 = vadd.f32 %v743, 1.4214138
        %v748 = vadd.f32 %v744, 1.4214138
        %v749 = vmul.f32 %v726, %v745
        %v750 = vmul.f32 %v728, %v746
        %v751 = vmul.f32 %v730, %v747
        %v752 = vmul.f32 %v732, %v748
        %v753 = vadd.f32 %v749, -0.28449672
        %v754 = vadd.f32 %v750, -0.28449672
        %v755 = vadd.f32 %v751, -0.28449672
        %v756 = vadd.f32 %v752, -0.28449672
        %v757 = vmul.f32 %v726, %v753
        %v758 = vmul.f32 %v728, %v754
        %v759 = vmul.f32 %v730, %v755
        %v760 = vmul.f32 %v732, %v756
        %v761 = vadd.f32 %v757, 0.2548296
        %v762 = vadd.f32 %v758, 0.2548296
        %v763 = vadd.f32 %v759, 0.2548296
        %v764 = vadd.f32 %v760, 0.2548296
        %v765 = vmul.f32 %v726, %v761
        %v766 = vmul.f32 %v728, %v762
        %v767 = vmul.f32 %v730, %v763
        %v768 = vmul.f32 %v732, %v764
        %v769 = vsub.f32 0.0, %v713
        %v770 = vsub.f32 0.0, %v714
        %v771 = vsub.f32 0.0, %v715
        %v772 = vsub.f32 0.0, %v716
        %v773 = vmul.f32 %v769, %v713
        %v774 = vmul.f32 %v770, %v714
        %v775 = vmul.f32 %v771, %v715
        %v776 = vmul.f32 %v772, %v716
        %v777 = vmul.f32 %v773, 1.442695
        %v778 = vpow.pop %v777
        %v779 = vmul.f32 %v774, 1.442695
        %v780 = vpow.pop %v779
        %v781 = vmul.f32 %v775, 1.442695
        %v782 = vpow.pop %v781
        %v783 = vmul.f32 %v776, 1.442695
        %v784 = vpow.pop %v783
        %v785 = vmul.f32 %v765, %v778
        %v786 = vmul.f32 %v766, %v780
        %v787 = vmul.f32 %v767, %v782
        %v788 = vmul.f32 %v768, %v784
        %v789 = vsub.f32 1.0, %v785
        %v790 = vsub.f32 1.0, %v786
        %v791 = vsub.f32 1.0, %v787
        %v792 = vsub.f32 1.0, %v788
        %vm793 = vcmp.lt.f32.partialorder %v709, 0.0
        %vm794 = vcmp.lt.f32.partialorder %v710, 0.0
        %vm795 = vcmp.lt.f32.partialorder %v711, 0.0
        %vm796 = vcmp.lt.f32.partialorder %v712, 0.0
        %v797 = vsub.f32 0.0, %v789
        %v798 = vsub.f32 0.0, %v790
        %v799 = vsub.f32 0.0, %v791
        %v800 = vsub.f32 0.0, %v792
        %v801 = vsel %vm793, %v797, %v789
        %v802 = vsel %vm794, %v798, %v790
        %v803 = vsel %vm795, %v799, %v791
        %v804 = vsel %vm796, %v800, %v792
        %v805 = vmul.f32 %v699, 0.5
        %v806 = vmul.f32 %v701, 0.5
        %v807 = vmul.f32 %v705, 0.5
        %v808 = vmul.f32 %v707, 0.5
        %v809 = vadd.f32 %v801, 1.0
        %v810 = vadd.f32 %v802, 1.0
        %v811 = vadd.f32 %v803, 1.0
        %v812 = vadd.f32 %v804, 1.0
        %v813 = vmul.f32 %v805, %v809
        %v814 = vmul.f32 %v806, %v810
        %v815 = vmul.f32 %v807, %v811
        %v816 = vmul.f32 %v808, %v812
        %s817 = sld [smem:[#allocation2]]
        %v818 = vstv %s817
        %v819 = vmul.f32 %v813, %v818
        %v820 = vmul.f32 %v814, %v818
        %v821 = vmul.f32 %v815, %v818
        %v822 = vmul.f32 %v816, %v818
        %823 = vst [vmem:[%s454] sm:$0xff] %v819
        %vm824 = vcmask 556032
        %825 = vst.msk [vmem:[%s454 + $0x8] sm:$0xff] %vm824, %v820
        %826 = vst [vmem:[%s454 + $0x10] sm:$0xff] %v821
        %827 = vst.msk [vmem:[%s454 + $0x18] sm:$0xff] %vm824, %v822
        %v828 = vld [vmem:[%s478] sm:$0xff]
        %v829 = vld [vmem:[%s478 + $0x8] sm:$0xff]
        %v830 = vld [vmem:[%s478 + $0x10] sm:$0xff]
        %v831 = vld [vmem:[%s478 + $0x18] sm:$0xff]
        %v832 = vld [vmem:[%s478 + $0x20] sm:$0xff]
        %v833 = vld [vmem:[%s478 + $0x28] sm:$0xff]
        %v834 = vld [vmem:[%s478 + $0x30] sm:$0xff]
        %v835 = vld [vmem:[%s478 + $0x38] sm:$0xff]
        %v836 = vld [vmem:[%s478 + $0x40] sm:$0xff]
        %v837 = vld [vmem:[%s478 + $0x48] sm:$0xff]
        %v838 = vld [vmem:[%s478 + $0x50] sm:$0xff]
        %v839 = vld [vmem:[%s478 + $0x58] sm:$0xff]
        %v840 = vld [vmem:[%s478 + $0x60] sm:$0xff]
        %v841 = vld [vmem:[%s478 + $0x68] sm:$0xff]
        %v842 = vld [vmem:[%s478 + $0x70] sm:$0xff]
        %v843 = vld [vmem:[%s478 + $0x78] sm:$0xff]
        %v844 = vld [vmem:[%s478 + $0x80] sm:$0xff]
        %v845 = vld [vmem:[%s478 + $0x88] sm:$0xff]
        %v846 = vld [vmem:[%s478 + $0x90] sm:$0xff]
        %v847 = vld [vmem:[%s478 + $0x98] sm:$0xff]
        %v848 = vld [vmem:[%s478 + $0xa0] sm:$0xff]
        %v849 = vld [vmem:[%s478 + $0xa8] sm:$0xff]
        %v850 = vld [vmem:[%s478 + $0xb0] sm:$0xff]
        %v851 = vld [vmem:[%s478 + $0xb8] sm:$0xff]
        %v852 = vld [vmem:[%s478 + $0xc0] sm:$0xff]
        %v853 = vld [vmem:[%s478 + $0xc8] sm:$0xff]
        %v854 = vld [vmem:[%s478 + $0xd0] sm:$0xff]
        %v855 = vld [vmem:[%s478 + $0xd8] sm:$0xff]
        %v856 = vld [vmem:[%s478 + $0xe0] sm:$0xff]
        %v857 = vld [vmem:[%s478 + $0xe8] sm:$0xff]
        %v858 = vld [vmem:[%s478 + $0xf0] sm:$0xff]
        %v859 = vld [vmem:[%s478 + $0xf8] sm:$0xff]
        %v860 = vld [vmem:[%s478 + $0x100] sm:$0xff]
        %v861 = vld [vmem:[%s478 + $0x108] sm:$0xff]
        %v862 = vld [vmem:[%s478 + $0x110] sm:$0xff]
        %v863 = vld [vmem:[%s478 + $0x118] sm:$0xff]
        %v864 = vld [vmem:[%s478 + $0x120] sm:$0xff]
        %v865 = vld [vmem:[%s478 + $0x128] sm:$0xff]
        %v866 = vld [vmem:[%s478 + $0x130] sm:$0xff]
        %v867 = vld [vmem:[%s478 + $0x138] sm:$0xff]
        %v868 = vld [vmem:[%s478 + $0x140] sm:$0xff]
        %v869 = vld [vmem:[%s478 + $0x148] sm:$0xff]
        %v870 = vld [vmem:[%s478 + $0x150] sm:$0xff]
        %v871 = vld [vmem:[%s478 + $0x158] sm:$0xff]
        %v872 = vld [vmem:[%s478 + $0x160] sm:$0xff]
        %v873 = vld [vmem:[%s478 + $0x168] sm:$0xff]
        %v874 = vld [vmem:[%s478 + $0x170] sm:$0xff]
        %v875 = vld [vmem:[%s478 + $0x178] sm:$0xff]
        %v876 = vld [vmem:[%s478 + $0x180] sm:$0xff]
        %v877 = vld [vmem:[%s478 + $0x188] sm:$0xff]
        %v878 = vld [vmem:[%s478 + $0x190] sm:$0xff]
        %v879 = vld [vmem:[%s478 + $0x198] sm:$0xff]
        %v880 = vld [vmem:[%s478 + $0x1a0] sm:$0xff]
        %v881 = vld [vmem:[%s478 + $0x1a8] sm:$0xff]
        %v882 = vld [vmem:[%s478 + $0x1b0] sm:$0xff]
        %v883 = vld [vmem:[%s478 + $0x1b8] sm:$0xff]
        %v884 = vld [vmem:[%s478 + $0x1c0] sm:$0xff]
        %v885 = vld [vmem:[%s478 + $0x1c8] sm:$0xff]
        %v886 = vld [vmem:[%s478 + $0x1d0] sm:$0xff]
        %v887 = vld [vmem:[%s478 + $0x1d8] sm:$0xff]
        %v888 = vld [vmem:[%s478 + $0x1e0] sm:$0xff]
        %v889 = vld [vmem:[%s478 + $0x1e8] sm:$0xff]
        %v890 = vld [vmem:[%s478 + $0x1f0] sm:$0xff]
        %v891 = vld [vmem:[%s478 + $0x1f8] sm:$0xff]
        %v892 = vld [vmem:[%s478 + $0x200] sm:$0xff]
        %v893 = vld [vmem:[%s478 + $0x208] sm:$0xff]
        %v894 = vld [vmem:[%s478 + $0x210] sm:$0xff]
        %v895 = vld [vmem:[%s478 + $0x218] sm:$0xff]
        %v896 = vld [vmem:[%s478 + $0x220] sm:$0xff]
        %v897 = vld [vmem:[%s478 + $0x228] sm:$0xff]
        %v898 = vld [vmem:[%s478 + $0x230] sm:$0xff]
        %v899 = vld [vmem:[%s478 + $0x238] sm:$0xff]
        %v900 = vld [vmem:[%s478 + $0x240] sm:$0xff]
        %v901 = vld [vmem:[%s478 + $0x248] sm:$0xff]
        %v902 = vld [vmem:[%s478 + $0x250] sm:$0xff]
        %v903 = vld [vmem:[%s478 + $0x258] sm:$0xff]
        %v904 = vld [vmem:[%s478 + $0x260] sm:$0xff]
        %v905 = vld [vmem:[%s478 + $0x268] sm:$0xff]
        %v906 = vld [vmem:[%s478 + $0x270] sm:$0xff]
        %v907 = vld [vmem:[%s478 + $0x278] sm:$0xff]
        %v908 = vld [vmem:[%s478 + $0x280] sm:$0xff]
        %v909 = vld [vmem:[%s478 + $0x288] sm:$0xff]
        %v910 = vld [vmem:[%s478 + $0x290] sm:$0xff]
        %v911 = vld [vmem:[%s478 + $0x298] sm:$0xff]
        %v912 = vld [vmem:[%s478 + $0x2a0] sm:$0xff]
        %v913 = vld [vmem:[%s478 + $0x2a8] sm:$0xff]
        %v914 = vld [vmem:[%s478 + $0x2b0] sm:$0xff]
        %v915 = vld [vmem:[%s478 + $0x2b8] sm:$0xff]
        %v916 = vld [vmem:[%s478 + $0x2c0] sm:$0xff]
        %v917 = vld [vmem:[%s478 + $0x2c8] sm:$0xff]
        %v918 = vld [vmem:[%s478 + $0x2d0] sm:$0xff]
        %v919 = vld [vmem:[%s478 + $0x2d8] sm:$0xff]
        %v920 = vld [vmem:[%s478 + $0x2e0] sm:$0xff]
        %v921 = vld [vmem:[%s478 + $0x2e8] sm:$0xff]
        %v922 = vld [vmem:[%s478 + $0x2f0] sm:$0xff]
        %v923 = vld [vmem:[%s478 + $0x2f8] sm:$0xff]
        %v924 = vld [vmem:[%s478 + $0x300] sm:$0xff]
        %v925 = vld [vmem:[%s478 + $0x308] sm:$0xff]
        %v926 = vld [vmem:[%s6] sm:$0xff]
        %v927 = vld [vmem:[%s6 + $0x8] sm:$0xff]
        %v928 = vld [vmem:[%s7] sm:$0xff]
        %v929 = vld [vmem:[%s7 + $0x8] sm:$0xff]
        %931 = vset.pattern.permute.xlu0 0
        %932 = vperm.xlu0 %931, %v928
        %v933 = vpop.permute.xlu0 %932
        %936 = vset.pattern.permute.xlu0 0
        %937 = vperm.xlu0 %936, %v929
        %v938 = vpop.permute.xlu0 %937
        %vm940 = vcmask 785408
        %v942 = vsel %vm940, %v926, 0
        %v945 = vsel %vm940, %v927, 0
        %v948 = vsel %vm940, %v828, 0
        %v951 = vsel %vm940, %v829, 0
        %v954 = vsel %vm940, %v830, 0
        %v957 = vsel %vm940, %v831, 0
        %v960 = vsel %vm940, %v832, 0
        %v963 = vsel %vm940, %v833, 0
        %v966 = vsel %vm940, %v834, 0
        %v969 = vsel %vm940, %v835, 0
        %v972 = vsel %vm940, %v836, 0
        %v975 = vsel %vm940, %v837, 0
        %v978 = vsel %vm940, %v838, 0
        %v981 = vsel %vm940, %v839, 0
        %v984 = vsel %vm940, %v840, 0
        %v987 = vsel %vm940, %v841, 0
        %v990 = vsel %vm940, %v842, 0
        %v993 = vsel %vm940, %v843, 0
        %v996 = vsel %vm940, %v844, 0
        %v999 = vsel %vm940, %v845, 0
        %v1002 = vsel %vm940, %v846, 0
        %v1005 = vsel %vm940, %v847, 0
        %v1008 = vsel %vm940, %v848, 0
        %v1011 = vsel %vm940, %v849, 0
        %v1014 = vsel %vm940, %v850, 0
        %v1017 = vsel %vm940, %v851, 0
        %v1020 = vsel %vm940, %v852, 0
        %v1023 = vsel %vm940, %v853, 0
        %v1026 = vsel %vm940, %v854, 0
        %v1029 = vsel %vm940, %v855, 0
        %v1032 = vsel %vm940, %v856, 0
        %v1035 = vsel %vm940, %v857, 0
        %v1038 = vsel %vm940, %v858, 0
        %v1041 = vsel %vm940, %v859, 0
        %v1044 = vsel %vm940, %v860, 0
        %v1047 = vsel %vm940, %v861, 0
        %v1050 = vsel %vm940, %v862, 0
        %v1053 = vsel %vm940, %v863, 0
        %v1056 = vsel %vm940, %v864, 0
        %v1059 = vsel %vm940, %v865, 0
        %v1062 = vsel %vm940, %v866, 0
        %v1065 = vsel %vm940, %v867, 0
        %v1068 = vsel %vm940, %v868, 0
        %v1071 = vsel %vm940, %v869, 0
        %v1074 = vsel %vm940, %v870, 0
        %v1077 = vsel %vm940, %v871, 0
        %v1080 = vsel %vm940, %v872, 0
        %v1083 = vsel %vm940, %v873, 0
        %v1086 = vsel %vm940, %v874, 0
        %v1089 = vsel %vm940, %v875, 0
        %v1092 = vsel %vm940, %v876, 0
        %v1095 = vsel %vm940, %v877, 0
        %v1098 = vsel %vm940, %v878, 0
        %v1101 = vsel %vm940, %v879, 0
        %v1104 = vsel %vm940, %v880, 0
        %v1107 = vsel %vm940, %v881, 0
        %v1110 = vsel %vm940, %v882, 0
        %v1113 = vsel %vm940, %v883, 0
        %v1116 = vsel %vm940, %v884, 0
        %v1119 = vsel %vm940, %v885, 0
        %v1122 = vsel %vm940, %v886, 0
        %v1125 = vsel %vm940, %v887, 0
        %v1128 = vsel %vm940, %v888, 0
        %v1131 = vsel %vm940, %v889, 0
        %v1134 = vsel %vm940, %v890, 0
        %v1137 = vsel %vm940, %v891, 0
        %v1140 = vsel %vm940, %v892, 0
        %v1143 = vsel %vm940, %v893, 0
        %v1146 = vsel %vm940, %v894, 0
        %v1149 = vsel %vm940, %v895, 0
        %v1152 = vsel %vm940, %v896, 0
        %v1155 = vsel %vm940, %v897, 0
        %v1158 = vsel %vm940, %v898, 0
        %v1161 = vsel %vm940, %v899, 0
        %v1164 = vsel %vm940, %v900, 0
        %v1167 = vsel %vm940, %v901, 0
        %v1170 = vsel %vm940, %v902, 0
        %v1173 = vsel %vm940, %v903, 0
        %v1176 = vsel %vm940, %v904, 0
        %v1179 = vsel %vm940, %v905, 0
        %v1182 = vsel %vm940, %v906, 0
        %v1185 = vsel %vm940, %v907, 0
        %v1188 = vsel %vm940, %v908, 0
        %v1191 = vsel %vm940, %v909, 0
        %v1194 = vsel %vm940, %v910, 0
        %v1197 = vsel %vm940, %v911, 0
        %v1200 = vsel %vm940, %v912, 0
        %v1203 = vsel %vm940, %v913, 0
        %v1206 = vsel %vm940, %v914, 0
        %v1209 = vsel %vm940, %v915, 0
        %v1212 = vsel %vm940, %v916, 0
        %v1215 = vsel %vm940, %v917, 0
        %v1218 = vsel %vm940, %v918, 0
        %v1221 = vsel %vm940, %v919, 0
        %v1224 = vsel %vm940, %v920, 0
        %v1227 = vsel %vm940, %v921, 0
        %v1230 = vsel %vm940, %v922, 0
        %v1233 = vsel %vm940, %v923, 0
        %v1236 = vsel %vm940, %v924, 0
        %v1239 = vsel %vm940, %v925, 0
        %1241 = vmatprep.subr.mxu0 0.0
        %1242 = vmatpush1.xpose.msra.mxu0 %v948
        %1243 = vmatprep.subr.mxu0 0.0
        %1244 = vmatpush1.xpose.msra.mxu0 %v951
        %1245 = vmatprep.subr.mxu0 0.0
        %1246 = vmatpush1.xpose.msra.mxu0 %v954
        %1247 = vmatprep.subr.mxu0 0.0
        %1248 = vmatpush1.xpose.msra.mxu0 %v957
        %1249 = vmatprep.subr.mxu0 0.0
        %1250 = vmatpush1.xpose.msra.mxu0 %v960
        %1251 = vmatprep.subr.mxu0 0.0
        %1252 = vmatpush1.xpose.msra.mxu0 %v963
        %1253 = vmatprep.subr.mxu0 0.0
        %1254 = vmatpush1.xpose.msra.mxu0 %v966
        %1255 = vmatprep.subr.mxu0 0.0
        %1256 = vmatpush1.xpose.msra.mxu0 %v969
        %1257 = vmatprep.subr.mxu0 0.0
        %1258 = vmatpush1.xpose.msra.mxu0 %v972
        %1259 = vmatprep.subr.mxu0 0.0
        %1260 = vmatpush1.xpose.msra.mxu0 %v975
        %1261 = vmatprep.subr.mxu0 0.0
        %1262 = vmatpush1.xpose.msra.mxu0 %v978
        %1263 = vmatprep.subr.mxu0 0.0
        %1264 = vmatpush1.xpose.msra.mxu0 %v981
        %1265 = vmatprep.subr.mxu0 0.0
        %1266 = vmatpush1.xpose.msra.mxu0 %v984
        %1267 = vmatprep.subr.mxu0 0.0
        %1268 = vmatpush1.xpose.msra.mxu0 %v987
        %1269 = vmatprep.subr.mxu0 0.0
        %1270 = vmatpush1.xpose.msra.mxu0 %v990
        %1271 = vmatprep.subr.mxu0 0.0
        %1272 = vmatpush1.xpose.msra.mxu0 %v993
        %1273 = vmatprep.subr.mxu0 0.0
        %1274 = vmatpush1.xpose.msra.mxu0 %v996
        %1275 = vmatprep.subr.mxu0 0.0
        %1276 = vmatpush1.xpose.msra.mxu0 %v999
        %1277 = vmatprep.subr.mxu0 0.0
        %1278 = vmatpush1.xpose.msra.mxu0 %v1002
        %1279 = vmatprep.subr.mxu0 0.0
        %1280 = vmatpush1.xpose.msra.mxu0 %v1005
        %1281 = vmatprep.subr.mxu0 0.0
        %1282 = vmatpush1.xpose.msra.mxu0 %v1008
        %1283 = vmatprep.subr.mxu0 0.0
        %1284 = vmatpush1.xpose.msra.mxu0 %v1011
        %1285 = vmatprep.subr.mxu0 0.0
        %1286 = vmatpush1.xpose.msra.mxu0 %v1014
        %1287 = vmatprep.subr.mxu0 0.0
        %1288 = vmatpush1.xpose.msra.mxu0 %v1017
        %1289 = vmatprep.subr.mxu0 0.0
        %1290 = vmatpush1.xpose.msra.mxu0 %v1020
        %1291 = vmatprep.subr.mxu0 0.0
        %1292 = vmatpush1.xpose.msra.mxu0 %v1023
        %1293 = vmatprep.subr.mxu0 0.0
        %1294 = vmatpush1.xpose.msra.mxu0 %v1026
        %1295 = vmatprep.subr.mxu0 0.0
        %1296 = vmatpush1.xpose.msra.mxu0 %v1029
        %1297 = vmatprep.subr.mxu0 0.0
        %1298 = vmatpush1.xpose.msra.mxu0 %v1032
        %1299 = vmatprep.subr.mxu0 0.0
        %1300 = vmatpush1.xpose.msra.mxu0 %v1035
        %1301 = vmatprep.subr.mxu0 0.0
        %1302 = vmatpush1.xpose.msra.mxu0 %v1038
        %1303 = vmatprep.subr.mxu0 0.0
        %1304 = vmatpush1.xpose.msra.mxu0 %v1041
        %1305 = vmatprep.mubr.f32.mxu0 0.0
        %1306 = vmatmul.mubr.f32.gmra.mrb[0].mxu0 %v942
        %v1307 = vpop.f32.mrb[0].mxu0
        %v1308 = vadd.f32 %v933, %v1307
        %v1309 = vpop.f32.mrb[0].mxu0
        %v1310 = vadd.f32 %v933, %v1309
        %1311 = vmatprep.mubr.f32.mxu0 0.0
        %1312 = vmatmul.mubr.f32.gmra.mrb[0].mxu0 %v945
        %v1313 = vpop.f32.mrb[0].mxu0
        %v1314 = vadd.f32 %v938, %v1313
        %v1315 = vpop.f32.mrb[0].mxu0
        %v1316 = vadd.f32 %v938, %v1315
        %1317 = vdwg.mxu0
        %1318 = vmatprep.subr.mxu0 0.0
        %1319 = vmatpush1.xpose.msra.mxu0 %v1044
        %1320 = vmatprep.subr.mxu0 0.0
        %1321 = vmatpush1.xpose.msra.mxu0 %v1047
        %1322 = vmatprep.subr.mxu0 0.0
        %1323 = vmatpush1.xpose.msra.mxu0 %v1050
        %1324 = vmatprep.subr.mxu0 0.0
        %1325 = vmatpush1.xpose.msra.mxu0 %v1053
        %1326 = vmatprep.subr.mxu0 0.0
        %1327 = vmatpush1.xpose.msra.mxu0 %v1056
        %1328 = vmatprep.subr.mxu0 0.0
        %1329 = vmatpush1.xpose.msra.mxu0 %v1059
        %1330 = vmatprep.subr.mxu0 0.0
        %1331 = vmatpush1.xpose.msra.mxu0 %v1062
        %1332 = vmatprep.subr.mxu0 0.0
        %1333 = vmatpush1.xpose.msra.mxu0 %v1065
        %1334 = vmatprep.subr.mxu0 0.0
        %1335 = vmatpush1.xpose.msra.mxu0 %v1068
        %1336 = vmatprep.subr.mxu0 0.0
        %1337 = vmatpush1.xpose.msra.mxu0 %v1071
        %1338 = vmatprep.subr.mxu0 0.0
        %1339 = vmatpush1.xpose.msra.mxu0 %v1074
        %1340 = vmatprep.subr.mxu0 0.0
        %1341 = vmatpush1.xpose.msra.mxu0 %v1077
        %1342 = vmatprep.subr.mxu0 0.0
        %1343 = vmatpush1.xpose.msra.mxu0 %v1080
        %1344 = vmatprep.subr.mxu0 0.0
        %1345 = vmatpush1.xpose.msra.mxu0 %v1083
        %1346 = vmatprep.subr.mxu0 0.0
        %1347 = vmatpush1.xpose.msra.mxu0 %v1086
        %1348 = vmatprep.subr.mxu0 0.0
        %1349 = vmatpush1.xpose.msra.mxu0 %v1089
        %1350 = vmatprep.subr.mxu0 0.0
        %1351 = vmatpush1.xpose.msra.mxu0 %v1092
        %1352 = vmatprep.subr.mxu0 0.0
        %1353 = vmatpush1.xpose.msra.mxu0 %v1095
        %1354 = vmatprep.subr.mxu0 0.0
        %1355 = vmatpush1.xpose.msra.mxu0 %v1098
        %1356 = vmatprep.subr.mxu0 0.0
        %1357 = vmatpush1.xpose.msra.mxu0 %v1101
        %1358 = vmatprep.subr.mxu0 0.0
        %1359 = vmatpush1.xpose.msra.mxu0 %v1104
        %1360 = vmatprep.subr.mxu0 0.0
        %1361 = vmatpush1.xpose.msra.mxu0 %v1107
        %1362 = vmatprep.subr.mxu0 0.0
        %1363 = vmatpush1.xpose.msra.mxu0 %v1110
        %1364 = vmatprep.subr.mxu0 0.0
        %1365 = vmatpush1.xpose.msra.mxu0 %v1113
        %1366 = vmatprep.subr.mxu0 0.0
        %1367 = vmatpush1.xpose.msra.mxu0 %v1116
        %1368 = vmatprep.subr.mxu0 0.0
        %1369 = vmatpush1.xpose.msra.mxu0 %v1119
        %1370 = vmatprep.subr.mxu0 0.0
        %1371 = vmatpush1.xpose.msra.mxu0 %v1122
        %1372 = vmatprep.subr.mxu0 0.0
        %1373 = vmatpush1.xpose.msra.mxu0 %v1125
        %1374 = vmatprep.subr.mxu0 0.0
        %1375 = vmatpush1.xpose.msra.mxu0 %v1128
        %1376 = vmatprep.subr.mxu0 0.0
        %1377 = vmatpush1.xpose.msra.mxu0 %v1131
        %1378 = vmatprep.subr.mxu0 0.0
        %1379 = vmatpush1.xpose.msra.mxu0 %v1134
        %1380 = vmatprep.subr.mxu0 0.0
        %1381 = vmatpush1.xpose.msra.mxu0 %v1137
        %1382 = vmatprep.mubr.f32.mxu0 0.0
        %1383 = vmatmul.mubr.f32.gmra.mrb[0].mxu0 %v942
        %v1384 = vpop.f32.mrb[0].mxu0
        %v1385 = vadd.f32 %v933, %v1384
        %v1386 = vpop.f32.mrb[0].mxu0
        %v1387 = vadd.f32 %v933, %v1386
        %1388 = vmatprep.mubr.f32.mxu0 0.0
        %1389 = vmatmul.mubr.f32.gmra.mrb[0].mxu0 %v945
        %v1390 = vpop.f32.mrb[0].mxu0
        %v1391 = vadd.f32 %v938, %v1390
        %v1392 = vpop.f32.mrb[0].mxu0
        %v1393 = vadd.f32 %v938, %v1392
        %1394 = vdwg.mxu0
        %1395 = vmatprep.subr.mxu0 0.0
        %1396 = vmatpush1.xpose.msra.mxu0 %v1140
        %1397 = vmatprep.subr.mxu0 0.0
        %1398 = vmatpush1.xpose.msra.mxu0 %v1143
        %1399 = vmatprep.subr.mxu0 0.0
        %1400 = vmatpush1.xpose.msra.mxu0 %v1146
        %1401 = vmatprep.subr.mxu0 0.0
        %1402 = vmatpush1.xpose.msra.mxu0 %v1149
        %1403 = vmatprep.subr.mxu0 0.0
        %1404 = vmatpush1.xpose.msra.mxu0 %v1152
        %1405 = vmatprep.subr.mxu0 0.0
        %1406 = vmatpush1.xpose.msra.mxu0 %v1155
        %1407 = vmatprep.subr.mxu0 0.0
        %1408 = vmatpush1.xpose.msra.mxu0 %v1158
        %1409 = vmatprep.subr.mxu0 0.0
        %1410 = vmatpush1.xpose.msra.mxu0 %v1161
        %1411 = vmatprep.subr.mxu0 0.0
        %1412 = vmatpush1.xpose.msra.mxu0 %v1164
        %1413 = vmatprep.subr.mxu0 0.0
        %1414 = vmatpush1.xpose.msra.mxu0 %v1167
        %1415 = vmatprep.subr.mxu0 0.0
        %1416 = vmatpush1.xpose.msra.mxu0 %v1170
        %1417 = vmatprep.subr.mxu0 0.0
        %1418 = vmatpush1.xpose.msra.mxu0 %v1173
        %1419 = vmatprep.subr.mxu0 0.0
        %1420 = vmatpush1.xpose.msra.mxu0 %v1176
        %1421 = vmatprep.subr.mxu0 0.0
        %1422 = vmatpush1.xpose.msra.mxu0 %v1179
        %1423 = vmatprep.subr.mxu0 0.0
        %1424 = vmatpush1.xpose.msra.mxu0 %v1182
        %1425 = vmatprep.subr.mxu0 0.0
        %1426 = vmatpush1.xpose.msra.mxu0 %v1185
        %1427 = vmatprep.subr.mxu0 0.0
        %1428 = vmatpush1.xpose.msra.mxu0 %v1188
        %1429 = vmatprep.subr.mxu0 0.0
        %1430 = vmatpush1.xpose.msra.mxu0 %v1191
        %1431 = vmatprep.subr.mxu0 0.0
        %1432 = vmatpush1.xpose.msra.mxu0 %v1194
        %1433 = vmatprep.subr.mxu0 0.0
        %1434 = vmatpush1.xpose.msra.mxu0 %v1197
        %1435 = vmatprep.subr.mxu0 0.0
        %1436 = vmatpush1.xpose.msra.mxu0 %v1200
        %1437 = vmatprep.subr.mxu0 0.0
        %1438 = vmatpush1.xpose.msra.mxu0 %v1203
        %1439 = vmatprep.subr.mxu0 0.0
        %1440 = vmatpush1.xpose.msra.mxu0 %v1206
        %1441 = vmatprep.subr.mxu0 0.0
        %1442 = vmatpush1.xpose.msra.mxu0 %v1209
        %1443 = vmatprep.subr.mxu0 0.0
        %1444 = vmatpush1.xpose.msra.mxu0 %v1212
        %1445 = vmatprep.subr.mxu0 0.0
        %1446 = vmatpush1.xpose.msra.mxu0 %v1215
        %1447 = vmatprep.subr.mxu0 0.0
        %1448 = vmatpush1.xpose.msra.mxu0 %v1218
        %1449 = vmatprep.subr.mxu0 0.0
        %1450 = vmatpush1.xpose.msra.mxu0 %v1221
        %1451 = vmatprep.subr.mxu0 0.0
        %1452 = vmatpush1.xpose.msra.mxu0 %v1224
        %1453 = vmatprep.subr.mxu0 0.0
        %1454 = vmatpush1.xpose.msra.mxu0 %v1227
        %1455 = vmatprep.subr.mxu0 0.0
        %1456 = vmatpush1.xpose.msra.mxu0 %v1230
        %1457 = vmatprep.subr.mxu0 0.0
        %1458 = vmatpush1.xpose.msra.mxu0 %v1233
        %1459 = vmatprep.mubr.f32.mxu0 0.0
        %1460 = vmatmul.mubr.f32.gmra.mrb[0].mxu0 %v942
        %v1461 = vpop.f32.mrb[0].mxu0
        %v1462 = vadd.f32 %v933, %v1461
        %v1463 = vpop.f32.mrb[0].mxu0
        %v1464 = vadd.f32 %v933, %v1463
        %1465 = vmatprep.mubr.f32.mxu0 0.0
        %1466 = vmatmul.mubr.f32.gmra.mrb[0].mxu0 %v945
        %v1467 = vpop.f32.mrb[0].mxu0
        %v1468 = vadd.f32 %v938, %v1467
        %v1469 = vpop.f32.mrb[0].mxu0
        %v1470 = vadd.f32 %v938, %v1469
        %1471 = vdwg.mxu0
        %1472 = vmatprep.subr.mxu0 0.0
        %1473 = vmatpush1.xpose.msra.mxu0 %v1236
        %1474 = vmatprep.subr.mxu0 0.0
        %1475 = vmatpush1.xpose.msra.mxu0 %v1239
        %1476 = vmatprep.subr.mxu0 0.0
        %1477 = vmatpush1.xpose.msra.mxu0 0.0
        %1478 = vmatprep.subr.mxu0 0.0
        %1479 = vmatpush1.xpose.msra.mxu0 0.0
        %1480 = vmatprep.subr.mxu0 0.0
        %1481 = vmatpush1.xpose.msra.mxu0 0.0
        %1482 = vmatprep.subr.mxu0 0.0
        %1483 = vmatpush1.xpose.msra.mxu0 0.0
        %1484 = vmatprep.subr.mxu0 0.0
        %1485 = vmatpush1.xpose.msra.mxu0 0.0
        %1486 = vmatprep.subr.mxu0 0.0
        %1487 = vmatpush1.xpose.msra.mxu0 0.0
        %1488 = vmatprep.subr.mxu0 0.0
        %1489 = vmatpush1.xpose.msra.mxu0 0.0
        %1490 = vmatprep.subr.mxu0 0.0
        %1491 = vmatpush1.xpose.msra.mxu0 0.0
        %1492 = vmatprep.subr.mxu0 0.0
        %1493 = vmatpush1.xpose.msra.mxu0 0.0
        %1494 = vmatprep.subr.mxu0 0.0
        %1495 = vmatpush1.xpose.msra.mxu0 0.0
        %1496 = vmatprep.subr.mxu0 0.0
        %1497 = vmatpush1.xpose.msra.mxu0 0.0
        %1498 = vmatprep.subr.mxu0 0.0
        %1499 = vmatpush1.xpose.msra.mxu0 0.0
        %1500 = vmatprep.subr.mxu0 0.0
        %1501 = vmatpush1.xpose.msra.mxu0 0.0
        %1502 = vmatprep.subr.mxu0 0.0
        %1503 = vmatpush1.xpose.msra.mxu0 0.0
        %1504 = vmatprep.subr.mxu0 0.0
        %1505 = vmatpush1.xpose.msra.mxu0 0.0
        %1506 = vmatprep.subr.mxu0 0.0
        %1507 = vmatpush1.xpose.msra.mxu0 0.0
        %1508 = vmatprep.subr.mxu0 0.0
        %1509 = vmatpush1.xpose.msra.mxu0 0.0
        %1510 = vmatprep.subr.mxu0 0.0
        %1511 = vmatpush1.xpose.msra.mxu0 0.0
        %1512 = vmatprep.subr.mxu0 0.0
        %1513 = vmatpush1.xpose.msra.mxu0 0.0
        %1514 = vmatprep.subr.mxu0 0.0
        %1515 = vmatpush1.xpose.msra.mxu0 0.0
        %1516 = vmatprep.subr.mxu0 0.0
        %1517 = vmatpush1.xpose.msra.mxu0 0.0
        %1518 = vmatprep.subr.mxu0 0.0
        %1519 = vmatpush1.xpose.msra.mxu0 0.0
        %1520 = vmatprep.subr.mxu0 0.0
        %1521 = vmatpush1.xpose.msra.mxu0 0.0
        %1522 = vmatprep.subr.mxu0 0.0
        %1523 = vmatpush1.xpose.msra.mxu0 0.0
        %1524 = vmatprep.subr.mxu0 0.0
        %1525 = vmatpush1.xpose.msra.mxu0 0.0
        %1526 = vmatprep.subr.mxu0 0.0
        %1527 = vmatpush1.xpose.msra.mxu0 0.0
        %1528 = vmatprep.subr.mxu0 0.0
        %1529 = vmatpush1.xpose.msra.mxu0 0.0
        %1530 = vmatprep.subr.mxu0 0.0
        %1531 = vmatpush1.xpose.msra.mxu0 0.0
        %1532 = vmatprep.subr.mxu0 0.0
        %1533 = vmatpush1.xpose.msra.mxu0 0.0
        %1534 = vmatprep.subr.mxu0 0.0
        %1535 = vmatpush1.xpose.msra.mxu0 0.0
        %1536 = vmatprep.mubr.f32.mxu0 0.0
        %1537 = vmatmul.mubr.f32.gmra.mrb[0].mxu0 %v942
        %v1538 = vpop.f32.mrb[0].mxu0
        %v1539 = vadd.f32 %v933, %v1538
        %v1540 = vpop.f32.mrb[0].mxu0
        %1541 = vmatprep.mubr.f32.mxu0 0.0
        %1542 = vmatmul.mubr.f32.gmra.mrb[0].mxu0 %v945
        %v1543 = vpop.f32.mrb[0].mxu0
        %v1544 = vadd.f32 %v938, %v1543
        %v1545 = vpop.f32.mrb[0].mxu0
        %1546 = vdwg.mxu0
        %v1547 = vmul.f32 %v1308, 0.70710677
        %v1548 = vmul.f32 %v1310, 0.70710677
        %v1549 = vmul.f32 %v1385, 0.70710677
        %v1550 = vmul.f32 %v1387, 0.70710677
        %v1551 = vmul.f32 %v1462, 0.70710677
        %v1552 = vmul.f32 %v1464, 0.70710677
        %v1553 = vmul.f32 %v1539, 0.70710677
        %v1554 = vmul.f32 %v1314, 0.70710677
        %v1555 = vmul.f32 %v1316, 0.70710677
        %v1556 = vmul.f32 %v1391, 0.70710677
        %v1557 = vmul.f32 %v1393, 0.70710677
        %v1558 = vmul.f32 %v1468, 0.70710677
        %v1559 = vmul.f32 %v1470, 0.70710677
        %v1560 = vmul.f32 %v1544, 0.70710677
        %v1561 = vand.u32 2147483647, %v1547
        %v1562 = vand.u32 2147483647, %v1548
        %v1563 = vand.u32 2147483647, %v1549
        %v1564 = vand.u32 2147483647, %v1550
        %v1565 = vand.u32 2147483647, %v1551
        %v1566 = vand.u32 2147483647, %v1552
        %v1567 = vand.u32 2147483647, %v1553
        %v1568 = vand.u32 2147483647, %v1554
        %v1569 = vand.u32 2147483647, %v1555
        %v1570 = vand.u32 2147483647, %v1556
        %v1571 = vand.u32 2147483647, %v1557
        %v1572 = vand.u32 2147483647, %v1558
        %v1573 = vand.u32 2147483647, %v1559
        %v1574 = vand.u32 2147483647, %v1560
        %v1575 = vmul.f32 %v1561, 0.3275911
        %v1576 = vmul.f32 %v1562, 0.3275911
        %v1577 = vmul.f32 %v1563, 0.3275911
        %v1578 = vmul.f32 %v1564, 0.3275911
        %v1579 = vmul.f32 %v1565, 0.3275911
        %v1580 = vmul.f32 %v1566, 0.3275911
        %v1581 = vmul.f32 %v1567, 0.3275911
        %v1582 = vmul.f32 %v1568, 0.3275911
        %v1583 = vmul.f32 %v1569, 0.3275911
        %v1584 = vmul.f32 %v1570, 0.3275911
        %v1585 = vmul.f32 %v1571, 0.3275911
        %v1586 = vmul.f32 %v1572, 0.3275911
        %v1587 = vmul.f32 %v1573, 0.3275911
        %v1588 = vmul.f32 %v1574, 0.3275911
        %v1589 = vadd.f32 %v1575, 1.0
        %v1590 = vadd.f32 %v1576, 1.0
        %v1591 = vadd.f32 %v1577, 1.0
        %v1592 = vadd.f32 %v1578, 1.0
        %v1593 = vadd.f32 %v1579, 1.0
        %v1594 = vadd.f32 %v1580, 1.0
        %v1595 = vadd.f32 %v1581, 1.0
        %v1596 = vadd.f32 %v1582, 1.0
        %v1597 = vadd.f32 %v1583, 1.0
        %v1598 = vadd.f32 %v1584, 1.0
        %v1599 = vadd.f32 %v1585, 1.0
        %v1600 = vadd.f32 %v1586, 1.0
        %v1601 = vadd.f32 %v1587, 1.0
        %v1602 = vadd.f32 %v1588, 1.0
        %v1603 = vrcp.pop %v1589
        %v1604 = vmul.f32 1.0, %v1603
        %v1605 = vrcp.pop %v1590
        %v1606 = vmul.f32 1.0, %v1605
        %v1607 = vrcp.pop %v1591
        %v1608 = vmul.f32 1.0, %v1607
        %v1609 = vrcp.pop %v1592
        %v1610 = vmul.f32 1.0, %v1609
        %v1611 = vrcp.pop %v1593
        %v1612 = vmul.f32 1.0, %v1611
        %v1613 = vrcp.pop %v1594
        %v1614 = vmul.f32 1.0, %v1613
        %v1615 = vrcp.pop %v1595
        %v1616 = vmul.f32 1.0, %v1615
        %v1617 = vrcp.pop %v1596
        %v1618 = vmul.f32 1.0, %v1617
        %v1619 = vrcp.pop %v1597
        %v1620 = vmul.f32 1.0, %v1619
        %v1621 = vrcp.pop %v1598
        %v1622 = vmul.f32 1.0, %v1621
        %v1623 = vrcp.pop %v1599
        %v1624 = vmul.f32 1.0, %v1623
        %v1625 = vrcp.pop %v1600
        %v1626 = vmul.f32 1.0, %v1625
        %v1627 = vrcp.pop %v1601
        %v1628 = vmul.f32 1.0, %v1627
        %v1629 = vrcp.pop %v1602
        %v1630 = vmul.f32 1.0, %v1629
        %v1631 = vmul.f32 %v1604, 1.0614054
        %v1632 = vmul.f32 %v1606, 1.0614054
        %v1633 = vmul.f32 %v1608, 1.0614054
        %v1634 = vmul.f32 %v1610, 1.0614054
        %v1635 = vmul.f32 %v1612, 1.0614054
        %v1636 = vmul.f32 %v1614, 1.0614054
        %v1637 = vmul.f32 %v1616, 1.0614054
        %v1638 = vmul.f32 %v1618, 1.0614054
        %v1639 = vmul.f32 %v1620, 1.0614054
        %v1640 = vmul.f32 %v1622, 1.0614054
        %v1641 = vmul.f32 %v1624, 1.0614054
        %v1642 = vmul.f32 %v1626, 1.0614054
        %v1643 = vmul.f32 %v1628, 1.0614054
        %v1644 = vmul.f32 %v1630, 1.0614054
        %v1645 = vadd.f32 %v1631, -1.4531521
        %v1646 = vadd.f32 %v1632, -1.4531521
        %v1647 = vadd.f32 %v1633, -1.4531521
        %v1648 = vadd.f32 %v1634, -1.4531521
        %v1649 = vadd.f32 %v1635, -1.4531521
        %v1650 = vadd.f32 %v1636, -1.4531521
        %v1651 = vadd.f32 %v1637, -1.4531521
        %v1652 = vadd.f32 %v1638, -1.4531521
        %v1653 = vadd.f32 %v1639, -1.4531521
        %v1654 = vadd.f32 %v1640, -1.4531521
        %v1655 = vadd.f32 %v1641, -1.4531521
        %v1656 = vadd.f32 %v1642, -1.4531521
        %v1657 = vadd.f32 %v1643, -1.4531521
        %v1658 = vadd.f32 %v1644, -1.4531521
        %v1659 = vmul.f32 %v1604, %v1645
        %v1660 = vmul.f32 %v1606, %v1646
        %v1661 = vmul.f32 %v1608, %v1647
        %v1662 = vmul.f32 %v1610, %v1648
        %v1663 = vmul.f32 %v1612, %v1649
        %v1664 = vmul.f32 %v1614, %v1650
        %v1665 = vmul.f32 %v1616, %v1651
        %v1666 = vmul.f32 %v1618, %v1652
        %v1667 = vmul.f32 %v1620, %v1653
        %v1668 = vmul.f32 %v1622, %v1654
        %v1669 = vmul.f32 %v1624, %v1655
        %v1670 = vmul.f32 %v1626, %v1656
        %v1671 = vmul.f32 %v1628, %v1657
        %v1672 = vmul.f32 %v1630, %v1658
        %v1673 = vadd.f32 %v1659, 1.4214138
        %v1674 = vadd.f32 %v1660, 1.4214138
        %v1675 = vadd.f32 %v1661, 1.4214138
        %v1676 = vadd.f32 %v1662, 1.4214138
        %v1677 = vadd.f32 %v1663, 1.4214138
        %v1678 = vadd.f32 %v1664, 1.4214138
        %v1679 = vadd.f32 %v1665, 1.4214138
        %v1680 = vadd.f32 %v1666, 1.4214138
        %v1681 = vadd.f32 %v1667, 1.4214138
        %v1682 = vadd.f32 %v1668, 1.4214138
        %v1683 = vadd.f32 %v1669, 1.4214138
        %v1684 = vadd.f32 %v1670, 1.4214138
        %v1685 = vadd.f32 %v1671, 1.4214138
        %v1686 = vadd.f32 %v1672, 1.4214138
        %v1687 = vmul.f32 %v1604, %v1673
        %v1688 = vmul.f32 %v1606, %v1674
        %v1689 = vmul.f32 %v1608, %v1675
        %v1690 = vmul.f32 %v1610, %v1676
        %v1691 = vmul.f32 %v1612, %v1677
        %v1692 = vmul.f32 %v1614, %v1678
        %v1693 = vmul.f32 %v1616, %v1679
        %v1694 = vmul.f32 %v1618, %v1680
        %v1695 = vmul.f32 %v1620, %v1681
        %v1696 = vmul.f32 %v1622, %v1682
        %v1697 = vmul.f32 %v1624, %v1683
        %v1698 = vmul.f32 %v1626, %v1684
        %v1699 = vmul.f32 %v1628, %v1685
        %v1700 = vmul.f32 %v1630, %v1686
        %v1701 = vadd.f32 %v1687, -0.28449672
        %v1702 = vadd.f32 %v1688, -0.28449672
        %v1703 = vadd.f32 %v1689, -0.28449672
        %v1704 = vadd.f32 %v1690, -0.28449672
        %v1705 = vadd.f32 %v1691, -0.28449672
        %v1706 = vadd.f32 %v1692, -0.28449672
        %v1707 = vadd.f32 %v1693, -0.28449672
        %v1708 = vadd.f32 %v1694, -0.28449672
        %v1709 = vadd.f32 %v1695, -0.28449672
        %v1710 = vadd.f32 %v1696, -0.28449672
        %v1711 = vadd.f32 %v1697, -0.28449672
        %v1712 = vadd.f32 %v1698, -0.28449672
        %v1713 = vadd.f32 %v1699, -0.28449672
        %v1714 = vadd.f32 %v1700, -0.28449672
        %v1715 = vmul.f32 %v1604, %v1701
        %v1716 = vmul.f32 %v1606, %v1702
        %v1717 = vmul.f32 %v1608, %v1703
        %v1718 = vmul.f32 %v1610, %v1704
        %v1719 = vmul.f32 %v1612, %v1705
        %v1720 = vmul.f32 %v1614, %v1706
        %v1721 = vmul.f32 %v1616, %v1707
        %v1722 = vmul.f32 %v1618, %v1708
        %v1723 = vmul.f32 %v1620, %v1709
        %v1724 = vmul.f32 %v1622, %v1710
        %v1725 = vmul.f32 %v1624, %v1711
        %v1726 = vmul.f32 %v1626, %v1712
        %v1727 = vmul.f32 %v1628, %v1713
        %v1728 = vmul.f32 %v1630, %v1714
        %v1729 = vadd.f32 %v1715, 0.2548296
        %v1730 = vadd.f32 %v1716, 0.2548296
        %v1731 = vadd.f32 %v1717, 0.2548296
        %v1732 = vadd.f32 %v1718, 0.2548296
        %v1733 = vadd.f32 %v1719, 0.2548296
        %v1734 = vadd.f32 %v1720, 0.2548296
        %v1735 = vadd.f32 %v1721, 0.2548296
        %v1736 = vadd.f32 %v1722, 0.2548296
        %v1737 = vadd.f32 %v1723, 0.2548296
        %v1738 = vadd.f32 %v1724, 0.2548296
        %v1739 = vadd.f32 %v1725, 0.2548296
        %v1740 = vadd.f32 %v1726, 0.2548296
        %v1741 = vadd.f32 %v1727, 0.2548296
        %v1742 = vadd.f32 %v1728, 0.2548296
        %v1743 = vmul.f32 %v1604, %v1729
        %v1744 = vmul.f32 %v1606, %v1730
        %v1745 = vmul.f32 %v1608, %v1731
        %v1746 = vmul.f32 %v1610, %v1732
        %v1747 = vmul.f32 %v1612, %v1733
        %v1748 = vmul.f32 %v1614, %v1734
        %v1749 = vmul.f32 %v1616, %v1735
        %v1750 = vmul.f32 %v1618, %v1736
        %v1751 = vmul.f32 %v1620, %v1737
        %v1752 = vmul.f32 %v1622, %v1738
        %v1753 = vmul.f32 %v1624, %v1739
        %v1754 = vmul.f32 %v1626, %v1740
        %v1755 = vmul.f32 %v1628, %v1741
        %v1756 = vmul.f32 %v1630, %v1742
        %v1757 = vsub.f32 0.0, %v1561
        %v1758 = vsub.f32 0.0, %v1562
        %v1759 = vsub.f32 0.0, %v1563
        %v1760 = vsub.f32 0.0, %v1564
        %v1761 = vsub.f32 0.0, %v1565
        %v1762 = vsub.f32 0.0, %v1566
        %v1763 = vsub.f32 0.0, %v1567
        %v1764 = vsub.f32 0.0, %v1568
        %v1765 = vsub.f32 0.0, %v1569
        %v1766 = vsub.f32 0.0, %v1570
        %v1767 = vsub.f32 0.0, %v1571
        %v1768 = vsub.f32 0.0, %v1572
        %v1769 = vsub.f32 0.0, %v1573
        %v1770 = vsub.f32 0.0, %v1574
        %v1771 = vmul.f32 %v1757, %v1561
        %v1772 = vmul.f32 %v1758, %v1562
        %v1773 = vmul.f32 %v1759, %v1563
        %v1774 = vmul.f32 %v1760, %v1564
        %v1775 = vmul.f32 %v1761, %v1565
        %v1776 = vmul.f32 %v1762, %v1566
        %v1777 = vmul.f32 %v1763, %v1567
        %v1778 = vmul.f32 %v1764, %v1568
        %v1779 = vmul.f32 %v1765, %v1569
        %v1780 = vmul.f32 %v1766, %v1570
        %v1781 = vmul.f32 %v1767, %v1571
        %v1782 = vmul.f32 %v1768, %v1572
        %v1783 = vmul.f32 %v1769, %v1573
        %v1784 = vmul.f32 %v1770, %v1574
        %v1785 = vmul.f32 %v1771, 1.442695
        %v1786 = vpow.pop %v1785
        %v1787 = vmul.f32 %v1772, 1.442695
        %v1788 = vpow.pop %v1787
        %v1789 = vmul.f32 %v1773, 1.442695
        %v1790 = vpow.pop %v1789
        %v1791 = vmul.f32 %v1774, 1.442695
        %v1792 = vpow.pop %v1791
        %v1793 = vmul.f32 %v1775, 1.442695
        %v1794 = vpow.pop %v1793
        %v1795 = vmul.f32 %v1776, 1.442695
        %v1796 = vpow.pop %v1795
        %v1797 = vmul.f32 %v1777, 1.442695
        %v1798 = vpow.pop %v1797
        %v1799 = vmul.f32 %v1778, 1.442695
        %v1800 = vpow.pop %v1799
        %v1801 = vmul.f32 %v1779, 1.442695
        %v1802 = vpow.pop %v1801
        %v1803 = vmul.f32 %v1780, 1.442695
        %v1804 = vpow.pop %v1803
        %v1805 = vmul.f32 %v1781, 1.442695
        %v1806 = vpow.pop %v1805
        %v1807 = vmul.f32 %v1782, 1.442695
        %v1808 = vpow.pop %v1807
        %v1809 = vmul.f32 %v1783, 1.442695
        %v1810 = vpow.pop %v1809
        %v1811 = vmul.f32 %v1784, 1.442695
        %v1812 = vpow.pop %v1811
        %v1813 = vmul.f32 %v1743, %v1786
        %v1814 = vmul.f32 %v1744, %v1788
        %v1815 = vmul.f32 %v1745, %v1790
        %v1816 = vmul.f32 %v1746, %v1792
        %v1817 = vmul.f32 %v1747, %v1794
        %v1818 = vmul.f32 %v1748, %v1796
        %v1819 = vmul.f32 %v1749, %v1798
        %v1820 = vmul.f32 %v1750, %v1800
        %v1821 = vmul.f32 %v1751, %v1802
        %v1822 = vmul.f32 %v1752, %v1804
        %v1823 = vmul.f32 %v1753, %v1806
        %v1824 = vmul.f32 %v1754, %v1808
        %v1825 = vmul.f32 %v1755, %v1810
        %v1826 = vmul.f32 %v1756, %v1812
        %v1827 = vsub.f32 1.0, %v1813
        %v1828 = vsub.f32 1.0, %v1814
        %v1829 = vsub.f32 1.0, %v1815
        %v1830 = vsub.f32 1.0, %v1816
        %v1831 = vsub.f32 1.0, %v1817
        %v1832 = vsub.f32 1.0, %v1818
        %v1833 = vsub.f32 1.0, %v1819
        %v1834 = vsub.f32 1.0, %v1820
        %v1835 = vsub.f32 1.0, %v1821
        %v1836 = vsub.f32 1.0, %v1822
        %v1837 = vsub.f32 1.0, %v1823
        %v1838 = vsub.f32 1.0, %v1824
        %v1839 = vsub.f32 1.0, %v1825
        %v1840 = vsub.f32 1.0, %v1826
        %vm1841 = vcmp.lt.f32.partialorder %v1547, 0.0
        %vm1842 = vcmp.lt.f32.partialorder %v1548, 0.0
        %vm1843 = vcmp.lt.f32.partialorder %v1549, 0.0
        %vm1844 = vcmp.lt.f32.partialorder %v1550, 0.0
        %vm1845 = vcmp.lt.f32.partialorder %v1551, 0.0
        %vm1846 = vcmp.lt.f32.partialorder %v1552, 0.0
        %vm1847 = vcmp.lt.f32.partialorder %v1553, 0.0
        %vm1848 = vcmp.lt.f32.partialorder %v1554, 0.0
        %vm1849 = vcmp.lt.f32.partialorder %v1555, 0.0
        %vm1850 = vcmp.lt.f32.partialorder %v1556, 0.0
        %vm1851 = vcmp.lt.f32.partialorder %v1557, 0.0
        %vm1852 = vcmp.lt.f32.partialorder %v1558, 0.0
        %vm1853 = vcmp.lt.f32.partialorder %v1559, 0.0
        %vm1854 = vcmp.lt.f32.partialorder %v1560, 0.0
        %v1855 = vsub.f32 0.0, %v1827
        %v1856 = vsub.f32 0.0, %v1828
        %v1857 = vsub.f32 0.0, %v1829
        %v1858 = vsub.f32 0.0, %v1830
        %v1859 = vsub.f32 0.0, %v1831
        %v1860 = vsub.f32 0.0, %v1832
        %v1861 = vsub.f32 0.0, %v1833
        %v1862 = vsub.f32 0.0, %v1834
        %v1863 = vsub.f32 0.0, %v1835
        %v1864 = vsub.f32 0.0, %v1836
        %v1865 = vsub.f32 0.0, %v1837
        %v1866 = vsub.f32 0.0, %v1838
        %v1867 = vsub.f32 0.0, %v1839
        %v1868 = vsub.f32 0.0, %v1840
        %v1869 = vsel %vm1841, %v1855, %v1827
        %v1870 = vsel %vm1842, %v1856, %v1828
        %v1871 = vsel %vm1843, %v1857, %v1829
        %v1872 = vsel %vm1844, %v1858, %v1830
        %v1873 = vsel %vm1845, %v1859, %v1831
        %v1874 = vsel %vm1846, %v1860, %v1832
        %v1875 = vsel %vm1847, %v1861, %v1833
        %v1876 = vsel %vm1848, %v1862, %v1834
        %v1877 = vsel %vm1849, %v1863, %v1835
        %v1878 = vsel %vm1850, %v1864, %v1836
        %v1879 = vsel %vm1851, %v1865, %v1837
        %v1880 = vsel %vm1852, %v1866, %v1838
        %v1881 = vsel %vm1853, %v1867, %v1839
        %v1882 = vsel %vm1854, %v1868, %v1840
        %v1883 = vmul.f32 %v1308, 0.5
        %v1884 = vmul.f32 %v1310, 0.5
        %v1885 = vmul.f32 %v1385, 0.5
        %v1886 = vmul.f32 %v1387, 0.5
        %v1887 = vmul.f32 %v1462, 0.5
        %v1888 = vmul.f32 %v1464, 0.5
        %v1889 = vmul.f32 %v1539, 0.5
        %v1890 = vmul.f32 %v1314, 0.5
        %v1891 = vmul.f32 %v1316, 0.5
        %v1892 = vmul.f32 %v1391, 0.5
        %v1893 = vmul.f32 %v1393, 0.5
        %v1894 = vmul.f32 %v1468, 0.5
        %v1895 = vmul.f32 %v1470, 0.5
        %v1896 = vmul.f32 %v1544, 0.5
        %v1897 = vadd.f32 %v1869, 1.0
        %v1898 = vadd.f32 %v1870, 1.0
        %v1899 = vadd.f32 %v1871, 1.0
        %v1900 = vadd.f32 %v1872, 1.0
        %v1901 = vadd.f32 %v1873, 1.0
        %v1902 = vadd.f32 %v1874, 1.0
        %v1903 = vadd.f32 %v1875, 1.0
        %v1904 = vadd.f32 %v1876, 1.0
        %v1905 = vadd.f32 %v1877, 1.0
        %v1906 = vadd.f32 %v1878, 1.0
        %v1907 = vadd.f32 %v1879, 1.0
        %v1908 = vadd.f32 %v1880, 1.0
        %v1909 = vadd.f32 %v1881, 1.0
        %v1910 = vadd.f32 %v1882, 1.0
        %v1911 = vmul.f32 %v1883, %v1897
        %v1912 = vmul.f32 %v1884, %v1898
        %v1913 = vmul.f32 %v1885, %v1899
        %v1914 = vmul.f32 %v1886, %v1900
        %v1915 = vmul.f32 %v1887, %v1901
        %v1916 = vmul.f32 %v1888, %v1902
        %v1917 = vmul.f32 %v1889, %v1903
        %v1918 = vmul.f32 %v1890, %v1904
        %v1919 = vmul.f32 %v1891, %v1905
        %v1920 = vmul.f32 %v1892, %v1906
        %v1921 = vmul.f32 %v1893, %v1907
        %v1922 = vmul.f32 %v1894, %v1908
        %v1923 = vmul.f32 %v1895, %v1909
        %v1924 = vmul.f32 %v1896, %v1910
        %s1925 = sld [smem:[#allocation2 + $0x1]]
        %v1926 = vstv %s1925
        %v1927 = vmul.f32 %v1911, %v1926
        %v1928 = vmul.f32 %v1912, %v1926
        %v1929 = vmul.f32 %v1913, %v1926
        %v1930 = vmul.f32 %v1914, %v1926
        %v1931 = vmul.f32 %v1915, %v1926
        %v1932 = vmul.f32 %v1916, %v1926
        %v1933 = vmul.f32 %v1917, %v1926
        %v1934 = vmul.f32 %v1918, %v1926
        %v1935 = vmul.f32 %v1919, %v1926
        %v1936 = vmul.f32 %v1920, %v1926
        %v1937 = vmul.f32 %v1921, %v1926
        %v1938 = vmul.f32 %v1922, %v1926
        %v1939 = vmul.f32 %v1923, %v1926
        %v1940 = vmul.f32 %v1924, %v1926
        %1941 = vst [vmem:[%s461] sm:$0xff] %v1927
        %1942 = vst [vmem:[%s461 + $0x8] sm:$0xff] %v1928
        %1943 = vst [vmem:[%s461 + $0x10] sm:$0xff] %v1929
        %1944 = vst [vmem:[%s461 + $0x18] sm:$0xff] %v1930
        %1945 = vst [vmem:[%s461 + $0x20] sm:$0xff] %v1931
        %1946 = vst [vmem:[%s461 + $0x28] sm:$0xff] %v1932
        %vm1947 = vcmask 130048
        %1948 = vst.msk [vmem:[%s461 + $0x30] sm:$0xff] %vm1947, %v1933
        %1949 = vst [vmem:[%s461 + $0x38] sm:$0xff] %v1934
        %1950 = vst [vmem:[%s461 + $0x40] sm:$0xff] %v1935
        %1951 = vst [vmem:[%s461 + $0x48] sm:$0xff] %v1936
        %1952 = vst [vmem:[%s461 + $0x50] sm:$0xff] %v1937
        %1953 = vst [vmem:[%s461 + $0x58] sm:$0xff] %v1938
        %1954 = vst [vmem:[%s461 + $0x60] sm:$0xff] %v1939
        %1955 = vst.msk [vmem:[%s461 + $0x68] sm:$0xff] %vm1947, %v1940
        %v1956 = vld [vmem:[%s483] sm:$0xff]
        %v1957 = vld [vmem:[%s483 + $0x8] sm:$0xff]
        %v1958 = vld [vmem:[%s483 + $0x10] sm:$0xff]
        %v1959 = vld [vmem:[%s483 + $0x18] sm:$0xff]
        %v1960 = vld [vmem:[%s483 + $0x20] sm:$0xff]
        %v1961 = vld [vmem:[%s483 + $0x28] sm:$0xff]
        %v1962 = vld [vmem:[%s483 + $0x30] sm:$0xff]
        %v1963 = vld [vmem:[%s483 + $0x38] sm:$0xff]
        %v1964 = vld [vmem:[%s483 + $0x40] sm:$0xff]
        %v1965 = vld [vmem:[%s483 + $0x48] sm:$0xff]
        %v1966 = vld [vmem:[%s483 + $0x50] sm:$0xff]
        %v1967 = vld [vmem:[%s483 + $0x58] sm:$0xff]
        %v1968 = vld [vmem:[%s483 + $0x60] sm:$0xff]
        %v1969 = vld [vmem:[%s483 + $0x68] sm:$0xff]
        %v1970 = vld [vmem:[%s483 + $0x70] sm:$0xff]
        %v1971 = vld [vmem:[%s483 + $0x78] sm:$0xff]
        %v1972 = vld [vmem:[%s483 + $0x80] sm:$0xff]
        %v1973 = vld [vmem:[%s483 + $0x88] sm:$0xff]
        %v1974 = vld [vmem:[%s483 + $0x90] sm:$0xff]
        %v1975 = vld [vmem:[%s483 + $0x98] sm:$0xff]
        %v1976 = vld [vmem:[%s483 + $0xa0] sm:$0xff]
        %v1977 = vld [vmem:[%s483 + $0xa8] sm:$0xff]
        %v1978 = vld [vmem:[%s483 + $0xb0] sm:$0xff]
        %v1979 = vld [vmem:[%s483 + $0xb8] sm:$0xff]
        %v1980 = vld [vmem:[%s483 + $0xc0] sm:$0xff]
        %v1981 = vld [vmem:[%s483 + $0xc8] sm:$0xff]
        %v1982 = vld [vmem:[%s483 + $0xd0] sm:$0xff]
        %v1983 = vld [vmem:[%s483 + $0xd8] sm:$0xff]
        %v1984 = vld [vmem:[%s483 + $0xe0] sm:$0xff]
        %v1985 = vld [vmem:[%s483 + $0xe8] sm:$0xff]
        %v1986 = vld [vmem:[%s483 + $0xf0] sm:$0xff]
        %v1987 = vld [vmem:[%s483 + $0xf8] sm:$0xff]
        %v1988 = vld [vmem:[%s483 + $0x100] sm:$0xff]
        %v1989 = vld [vmem:[%s483 + $0x108] sm:$0xff]
        %v1990 = vld [vmem:[%s483 + $0x110] sm:$0xff]
        %v1991 = vld [vmem:[%s483 + $0x118] sm:$0xff]
        %v1992 = vld [vmem:[%s483 + $0x120] sm:$0xff]
        %v1993 = vld [vmem:[%s483 + $0x128] sm:$0xff]
        %v1994 = vld [vmem:[%s483 + $0x130] sm:$0xff]
        %v1995 = vld [vmem:[%s483 + $0x138] sm:$0xff]
        %v1996 = vld [vmem:[%s483 + $0x140] sm:$0xff]
        %v1997 = vld [vmem:[%s483 + $0x148] sm:$0xff]
        %v1998 = vld [vmem:[%s483 + $0x150] sm:$0xff]
        %v1999 = vld [vmem:[%s483 + $0x158] sm:$0xff]
        %v2000 = vld [vmem:[%s483 + $0x160] sm:$0xff]
        %v2001 = vld [vmem:[%s483 + $0x168] sm:$0xff]
        %v2002 = vld [vmem:[%s483 + $0x170] sm:$0xff]
        %v2003 = vld [vmem:[%s483 + $0x178] sm:$0xff]
        %v2004 = vld [vmem:[%s483 + $0x180] sm:$0xff]
        %v2005 = vld [vmem:[%s483 + $0x188] sm:$0xff]
        %v2006 = vld [vmem:[%s483 + $0x190] sm:$0xff]
        %v2007 = vld [vmem:[%s483 + $0x198] sm:$0xff]
        %v2008 = vld [vmem:[%s483 + $0x1a0] sm:$0xff]
        %v2009 = vld [vmem:[%s483 + $0x1a8] sm:$0xff]
        %v2010 = vld [vmem:[%s483 + $0x1b0] sm:$0xff]
        %v2011 = vld [vmem:[%s483 + $0x1b8] sm:$0xff]
        %v2012 = vld [vmem:[%s483 + $0x1c0] sm:$0xff]
        %v2013 = vld [vmem:[%s483 + $0x1c8] sm:$0xff]
        %v2014 = vld [vmem:[%s483 + $0x1d0] sm:$0xff]
        %v2015 = vld [vmem:[%s483 + $0x1d8] sm:$0xff]
        %v2016 = vld [vmem:[%s483 + $0x1e0] sm:$0xff]
        %v2017 = vld [vmem:[%s483 + $0x1e8] sm:$0xff]
        %v2018 = vld [vmem:[%s483 + $0x1f0] sm:$0xff]
        %v2019 = vld [vmem:[%s483 + $0x1f8] sm:$0xff]
        %v2020 = vld [vmem:[%s483 + $0x200] sm:$0xff]
        %v2021 = vld [vmem:[%s483 + $0x208] sm:$0xff]
        %v2022 = vld [vmem:[%s483 + $0x210] sm:$0xff]
        %v2023 = vld [vmem:[%s483 + $0x218] sm:$0xff]
        %v2024 = vld [vmem:[%s483 + $0x220] sm:$0xff]
        %v2025 = vld [vmem:[%s483 + $0x228] sm:$0xff]
        %v2026 = vld [vmem:[%s483 + $0x230] sm:$0xff]
        %v2027 = vld [vmem:[%s483 + $0x238] sm:$0xff]
        %v2028 = vld [vmem:[%s483 + $0x240] sm:$0xff]
        %v2029 = vld [vmem:[%s483 + $0x248] sm:$0xff]
        %v2030 = vld [vmem:[%s483 + $0x250] sm:$0xff]
        %v2031 = vld [vmem:[%s483 + $0x258] sm:$0xff]
        %v2032 = vld [vmem:[%s483 + $0x260] sm:$0xff]
        %v2033 = vld [vmem:[%s483 + $0x268] sm:$0xff]
        %v2034 = vld [vmem:[%s483 + $0x270] sm:$0xff]
        %v2035 = vld [vmem:[%s483 + $0x278] sm:$0xff]
        %v2036 = vld [vmem:[%s483 + $0x280] sm:$0xff]
        %v2037 = vld [vmem:[%s483 + $0x288] sm:$0xff]
        %v2038 = vld [vmem:[%s483 + $0x290] sm:$0xff]
        %v2039 = vld [vmem:[%s483 + $0x298] sm:$0xff]
        %v2040 = vld [vmem:[%s483 + $0x2a0] sm:$0xff]
        %v2041 = vld [vmem:[%s483 + $0x2a8] sm:$0xff]
        %v2042 = vld [vmem:[%s483 + $0x2b0] sm:$0xff]
        %v2043 = vld [vmem:[%s483 + $0x2b8] sm:$0xff]
        %v2044 = vld [vmem:[%s483 + $0x2c0] sm:$0xff]
        %v2045 = vld [vmem:[%s483 + $0x2c8] sm:$0xff]
        %v2046 = vld [vmem:[%s483 + $0x2d0] sm:$0xff]
        %v2047 = vld [vmem:[%s483 + $0x2d8] sm:$0xff]
        %v2048 = vld [vmem:[%s483 + $0x2e0] sm:$0xff]
        %v2049 = vld [vmem:[%s483 + $0x2e8] sm:$0xff]
        %v2050 = vld [vmem:[%s483 + $0x2f0] sm:$0xff]
        %v2051 = vld [vmem:[%s483 + $0x2f8] sm:$0xff]
        %v2052 = vld [vmem:[%s483 + $0x300] sm:$0xff]
        %v2053 = vld [vmem:[%s483 + $0x308] sm:$0xff]
        %v2054 = vld [vmem:[%s483 + $0x310] sm:$0xff]
        %v2055 = vld [vmem:[%s483 + $0x318] sm:$0xff]
        %v2056 = vld [vmem:[%s483 + $0x320] sm:$0xff]
        %v2057 = vld [vmem:[%s483 + $0x328] sm:$0xff]
        %v2058 = vld [vmem:[%s483 + $0x330] sm:$0xff]
        %v2059 = vld [vmem:[%s483 + $0x338] sm:$0xff]
        %v2060 = vld [vmem:[%s483 + $0x340] sm:$0xff]
        %v2061 = vld [vmem:[%s483 + $0x348] sm:$0xff]
        %v2062 = vld [vmem:[%s483 + $0x350] sm:$0xff]
        %v2063 = vld [vmem:[%s483 + $0x358] sm:$0xff]
        %v2064 = vld [vmem:[%s483 + $0x360] sm:$0xff]
        %v2065 = vld [vmem:[%s483 + $0x368] sm:$0xff]
        %v2066 = vld [vmem:[%s483 + $0x370] sm:$0xff]
        %v2067 = vld [vmem:[%s483 + $0x378] sm:$0xff]
        %v2068 = vld [vmem:[%s483 + $0x380] sm:$0xff]
        %v2069 = vld [vmem:[%s483 + $0x388] sm:$0xff]
        %v2070 = vld [vmem:[%s483 + $0x390] sm:$0xff]
        %v2071 = vld [vmem:[%s483 + $0x398] sm:$0xff]
        %v2072 = vld [vmem:[%s483 + $0x3a0] sm:$0xff]
        %v2073 = vld [vmem:[%s483 + $0x3a8] sm:$0xff]
        %v2074 = vld [vmem:[%s483 + $0x3b0] sm:$0xff]
        %v2075 = vld [vmem:[%s483 + $0x3b8] sm:$0xff]
        %v2076 = vld [vmem:[%s483 + $0x3c0] sm:$0xff]
        %v2077 = vld [vmem:[%s483 + $0x3c8] sm:$0xff]
        %v2078 = vld [vmem:[%s483 + $0x3d0] sm:$0xff]
        %v2079 = vld [vmem:[%s483 + $0x3d8] sm:$0xff]
        %v2080 = vld [vmem:[%s483 + $0x3e0] sm:$0xff]
        %v2081 = vld [vmem:[%s483 + $0x3e8] sm:$0xff]
        %v2082 = vld [vmem:[%s483 + $0x3f0] sm:$0xff]
        %v2083 = vld [vmem:[%s483 + $0x3f8] sm:$0xff]
        %v2084 = vld [vmem:[%s483 + $0x400] sm:$0xff]
        %v2085 = vld [vmem:[%s483 + $0x408] sm:$0xff]
        %v2086 = vld [vmem:[%s483 + $0x410] sm:$0xff]
        %v2087 = vld [vmem:[%s483 + $0x418] sm:$0xff]
        %v2088 = vld [vmem:[%s483 + $0x420] sm:$0xff]
        %v2089 = vld [vmem:[%s483 + $0x428] sm:$0xff]
        %v2090 = vld [vmem:[%s483 + $0x430] sm:$0xff]
        %v2091 = vld [vmem:[%s483 + $0x438] sm:$0xff]
        %v2092 = vld [vmem:[%s483 + $0x440] sm:$0xff]
        %v2093 = vld [vmem:[%s483 + $0x448] sm:$0xff]
        %v2094 = vld [vmem:[%s483 + $0x450] sm:$0xff]
        %v2095 = vld [vmem:[%s483 + $0x458] sm:$0xff]
        %v2096 = vld [vmem:[%s483 + $0x460] sm:$0xff]
        %v2097 = vld [vmem:[%s483 + $0x468] sm:$0xff]
        %v2098 = vld [vmem:[%s483 + $0x470] sm:$0xff]
        %v2099 = vld [vmem:[%s483 + $0x478] sm:$0xff]
        %v2100 = vld [vmem:[%s483 + $0x480] sm:$0xff]
        %v2101 = vld [vmem:[%s483 + $0x488] sm:$0xff]
        %v2102 = vld [vmem:[%s483 + $0x490] sm:$0xff]
        %v2103 = vld [vmem:[%s483 + $0x498] sm:$0xff]
        %v2104 = vld [vmem:[%s483 + $0x4a0] sm:$0xff]
        %v2105 = vld [vmem:[%s483 + $0x4a8] sm:$0xff]
        %v2106 = vld [vmem:[%s483 + $0x4b0] sm:$0xff]
        %v2107 = vld [vmem:[%s483 + $0x4b8] sm:$0xff]
        %v2108 = vld [vmem:[%s483 + $0x4c0] sm:$0xff]
        %v2109 = vld [vmem:[%s483 + $0x4c8] sm:$0xff]
        %v2110 = vld [vmem:[%s483 + $0x4d0] sm:$0xff]
        %v2111 = vld [vmem:[%s483 + $0x4d8] sm:$0xff]
        %v2112 = vld [vmem:[%s483 + $0x4e0] sm:$0xff]
        %v2113 = vld [vmem:[%s483 + $0x4e8] sm:$0xff]
        %v2114 = vld [vmem:[%s483 + $0x4f0] sm:$0xff]
        %v2115 = vld [vmem:[%s483 + $0x4f8] sm:$0xff]
        %v2116 = vld [vmem:[%s483 + $0x500] sm:$0xff]
        %v2117 = vld [vmem:[%s483 + $0x508] sm:$0xff]
        %v2118 = vld [vmem:[%s483 + $0x510] sm:$0xff]
        %v2119 = vld [vmem:[%s483 + $0x518] sm:$0xff]
        %v2120 = vld [vmem:[%s483 + $0x520] sm:$0xff]
        %v2121 = vld [vmem:[%s483 + $0x528] sm:$0xff]
        %v2122 = vld [vmem:[%s483 + $0x530] sm:$0xff]
        %v2123 = vld [vmem:[%s483 + $0x538] sm:$0xff]
        %v2124 = vld [vmem:[%s483 + $0x540] sm:$0xff]
        %v2125 = vld [vmem:[%s483 + $0x548] sm:$0xff]
        %v2126 = vld [vmem:[%s483 + $0x550] sm:$0xff]
        %v2127 = vld [vmem:[%s483 + $0x558] sm:$0xff]
        %v2128 = vld [vmem:[%s483 + $0x560] sm:$0xff]
        %v2129 = vld [vmem:[%s483 + $0x568] sm:$0xff]
        %v2130 = vld [vmem:[%s483 + $0x570] sm:$0xff]
        %v2131 = vld [vmem:[%s483 + $0x578] sm:$0xff]
        %v2132 = vld [vmem:[%s483 + $0x580] sm:$0xff]
        %v2133 = vld [vmem:[%s483 + $0x588] sm:$0xff]
        %v2134 = vld [vmem:[%s483 + $0x590] sm:$0xff]
        %v2135 = vld [vmem:[%s483 + $0x598] sm:$0xff]
        %v2136 = vld [vmem:[%s483 + $0x5a0] sm:$0xff]
        %v2137 = vld [vmem:[%s483 + $0x5a8] sm:$0xff]
        %v2138 = vld [vmem:[%s483 + $0x5b0] sm:$0xff]
        %v2139 = vld [vmem:[%s483 + $0x5b8] sm:$0xff]
        %v2140 = vld [vmem:[%s483 + $0x5c0] sm:$0xff]
        %v2141 = vld [vmem:[%s483 + $0x5c8] sm:$0xff]
        %v2142 = vld [vmem:[%s483 + $0x5d0] sm:$0xff]
        %v2143 = vld [vmem:[%s483 + $0x5d8] sm:$0xff]
        %v2144 = vld [vmem:[%s483 + $0x5e0] sm:$0xff]
        %v2145 = vld [vmem:[%s483 + $0x5e8] sm:$0xff]
        %v2146 = vld [vmem:[%s483 + $0x5f0] sm:$0xff]
        %v2147 = vld [vmem:[%s483 + $0x5f8] sm:$0xff]
        %v2148 = vld [vmem:[%s483 + $0x600] sm:$0xff]
        %v2149 = vld [vmem:[%s483 + $0x608] sm:$0xff]
        %v2150 = vld [vmem:[%s483 + $0x610] sm:$0xff]
        %v2151 = vld [vmem:[%s483 + $0x618] sm:$0xff]
        %v2152 = vld [vmem:[%s483 + $0x620] sm:$0xff]
        %v2153 = vld [vmem:[%s483 + $0x628] sm:$0xff]
        %v2154 = vld [vmem:[%s483 + $0x630] sm:$0xff]
        %v2155 = vld [vmem:[%s483 + $0x638] sm:$0xff]
        %v2156 = vld [vmem:[%s483 + $0x640] sm:$0xff]
        %v2157 = vld [vmem:[%s483 + $0x648] sm:$0xff]
        %v2158 = vld [vmem:[%s483 + $0x650] sm:$0xff]
        %v2159 = vld [vmem:[%s483 + $0x658] sm:$0xff]
        %v2160 = vld [vmem:[%s483 + $0x660] sm:$0xff]
        %v2161 = vld [vmem:[%s483 + $0x668] sm:$0xff]
        %v2162 = vld [vmem:[%s483 + $0x670] sm:$0xff]
        %v2163 = vld [vmem:[%s483 + $0x678] sm:$0xff]
        %v2164 = vld [vmem:[%s483 + $0x680] sm:$0xff]
        %v2165 = vld [vmem:[%s483 + $0x688] sm:$0xff]
        %v2166 = vld [vmem:[%s483 + $0x690] sm:$0xff]
        %v2167 = vld [vmem:[%s483 + $0x698] sm:$0xff]
        %v2168 = vld [vmem:[%s483 + $0x6a0] sm:$0xff]
        %v2169 = vld [vmem:[%s483 + $0x6a8] sm:$0xff]
        %v2170 = vld [vmem:[%s483 + $0x6b0] sm:$0xff]
        %v2171 = vld [vmem:[%s483 + $0x6b8] sm:$0xff]
        %v2172 = vld [vmem:[%s483 + $0x6c0] sm:$0xff]
        %v2173 = vld [vmem:[%s483 + $0x6c8] sm:$0xff]
        %v2174 = vld [vmem:[%s483 + $0x6d0] sm:$0xff]
        %v2175 = vld [vmem:[%s483 + $0x6d8] sm:$0xff]
        %v2176 = vld [vmem:[%s483 + $0x6e0] sm:$0xff]
        %v2177 = vld [vmem:[%s483 + $0x6e8] sm:$0xff]
        %v2178 = vld [vmem:[%s483 + $0x6f0] sm:$0xff]
        %v2179 = vld [vmem:[%s483 + $0x6f8] sm:$0xff]
        %v2180 = vld [vmem:[%s483 + $0x700] sm:$0xff]
        %v2181 = vld [vmem:[%s483 + $0x708] sm:$0xff]
        %v2182 = vld [vmem:[%s483 + $0x710] sm:$0xff]
        %v2183 = vld [vmem:[%s483 + $0x718] sm:$0xff]
        %v2184 = vld [vmem:[%s483 + $0x720] sm:$0xff]
        %v2185 = vld [vmem:[%s483 + $0x728] sm:$0xff]
        %v2186 = vld [vmem:[%s483 + $0x730] sm:$0xff]
        %v2187 = vld [vmem:[%s483 + $0x738] sm:$0xff]
        %v2188 = vld [vmem:[%s483 + $0x740] sm:$0xff]
        %v2189 = vld [vmem:[%s483 + $0x748] sm:$0xff]
        %v2190 = vld [vmem:[%s483 + $0x750] sm:$0xff]
        %v2191 = vld [vmem:[%s483 + $0x758] sm:$0xff]
        %v2192 = vld [vmem:[%s483 + $0x760] sm:$0xff]
        %v2193 = vld [vmem:[%s483 + $0x768] sm:$0xff]
        %v2194 = vld [vmem:[%s483 + $0x770] sm:$0xff]
        %v2195 = vld [vmem:[%s483 + $0x778] sm:$0xff]
        %v2196 = vld [vmem:[%s483 + $0x780] sm:$0xff]
        %v2197 = vld [vmem:[%s483 + $0x788] sm:$0xff]
        %v2198 = vld [vmem:[%s483 + $0x790] sm:$0xff]
        %v2199 = vld [vmem:[%s483 + $0x798] sm:$0xff]
        %v2200 = vld [vmem:[%s483 + $0x7a0] sm:$0xff]
        %v2201 = vld [vmem:[%s483 + $0x7a8] sm:$0xff]
        %v2202 = vld [vmem:[%s483 + $0x7b0] sm:$0xff]
        %v2203 = vld [vmem:[%s483 + $0x7b8] sm:$0xff]
        %v2204 = vld [vmem:[%s483 + $0x7c0] sm:$0xff]
        %v2205 = vld [vmem:[%s483 + $0x7c8] sm:$0xff]
        %v2206 = vld [vmem:[%s483 + $0x7d0] sm:$0xff]
        %v2207 = vld [vmem:[%s483 + $0x7d8] sm:$0xff]
        %v2208 = vld [vmem:[%s483 + $0x7e0] sm:$0xff]
        %v2209 = vld [vmem:[%s483 + $0x7e8] sm:$0xff]
        %v2210 = vld [vmem:[%s483 + $0x7f0] sm:$0xff]
        %v2211 = vld [vmem:[%s483 + $0x7f8] sm:$0xff]
        %v2212 = vld [vmem:[%s483 + $0x800] sm:$0xff]
        %v2213 = vld [vmem:[%s483 + $0x808] sm:$0xff]
        %v2214 = vld [vmem:[%s483 + $0x810] sm:$0xff]
        %v2215 = vld [vmem:[%s483 + $0x818] sm:$0xff]
        %v2216 = vld [vmem:[%s483 + $0x820] sm:$0xff]
        %v2217 = vld [vmem:[%s483 + $0x828] sm:$0xff]
        %v2218 = vld [vmem:[%s483 + $0x830] sm:$0xff]
        %v2219 = vld [vmem:[%s483 + $0x838] sm:$0xff]
        %v2220 = vld [vmem:[%s483 + $0x840] sm:$0xff]
        %v2221 = vld [vmem:[%s483 + $0x848] sm:$0xff]
        %v2222 = vld [vmem:[%s483 + $0x850] sm:$0xff]
        %v2223 = vld [vmem:[%s483 + $0x858] sm:$0xff]
        %v2224 = vld [vmem:[%s483 + $0x860] sm:$0xff]
        %v2225 = vld [vmem:[%s483 + $0x868] sm:$0xff]
        %v2226 = vld [vmem:[%s483 + $0x870] sm:$0xff]
        %v2227 = vld [vmem:[%s483 + $0x878] sm:$0xff]
        %v2228 = vld [vmem:[%s483 + $0x880] sm:$0xff]
        %v2229 = vld [vmem:[%s483 + $0x888] sm:$0xff]
        %v2230 = vld [vmem:[%s483 + $0x890] sm:$0xff]
        %v2231 = vld [vmem:[%s483 + $0x898] sm:$0xff]
        %v2232 = vld [vmem:[%s483 + $0x8a0] sm:$0xff]
        %v2233 = vld [vmem:[%s483 + $0x8a8] sm:$0xff]
        %v2234 = vld [vmem:[%s483 + $0x8b0] sm:$0xff]
        %v2235 = vld [vmem:[%s483 + $0x8b8] sm:$0xff]
        %v2236 = vld [vmem:[%s483 + $0x8c0] sm:$0xff]
        %v2237 = vld [vmem:[%s483 + $0x8c8] sm:$0xff]
        %v2238 = vld [vmem:[%s483 + $0x8d0] sm:$0xff]
        %v2239 = vld [vmem:[%s483 + $0x8d8] sm:$0xff]
        %v2240 = vld [vmem:[%s483 + $0x8e0] sm:$0xff]
        %v2241 = vld [vmem:[%s483 + $0x8e8] sm:$0xff]
        %v2242 = vld [vmem:[%s483 + $0x8f0] sm:$0xff]
        %v2243 = vld [vmem:[%s483 + $0x8f8] sm:$0xff]
        %v2244 = vld [vmem:[%s483 + $0x900] sm:$0xff]
        %v2245 = vld [vmem:[%s483 + $0x908] sm:$0xff]
        %v2246 = vld [vmem:[%s483 + $0x910] sm:$0xff]
        %v2247 = vld [vmem:[%s483 + $0x918] sm:$0xff]
        %v2248 = vld [vmem:[%s483 + $0x920] sm:$0xff]
        %v2249 = vld [vmem:[%s483 + $0x928] sm:$0xff]
        %v2250 = vld [vmem:[%s483 + $0x930] sm:$0xff]
        %v2251 = vld [vmem:[%s483 + $0x938] sm:$0xff]
        %v2252 = vld [vmem:[%s483 + $0x940] sm:$0xff]
        %v2253 = vld [vmem:[%s483 + $0x948] sm:$0xff]
        %v2254 = vld [vmem:[%s483 + $0x950] sm:$0xff]
        %v2255 = vld [vmem:[%s483 + $0x958] sm:$0xff]
        %v2256 = vld [vmem:[%s483 + $0x960] sm:$0xff]
        %v2257 = vld [vmem:[%s483 + $0x968] sm:$0xff]
        %v2258 = vld [vmem:[%s483 + $0x970] sm:$0xff]
        %v2259 = vld [vmem:[%s483 + $0x978] sm:$0xff]
        %v2260 = vld [vmem:[%s483 + $0x980] sm:$0xff]
        %v2261 = vld [vmem:[%s483 + $0x988] sm:$0xff]
        %v2262 = vld [vmem:[%s483 + $0x990] sm:$0xff]
        %v2263 = vld [vmem:[%s483 + $0x998] sm:$0xff]
        %v2264 = vld [vmem:[%s483 + $0x9a0] sm:$0xff]
        %v2265 = vld [vmem:[%s483 + $0x9a8] sm:$0xff]
        %v2266 = vld [vmem:[%s483 + $0x9b0] sm:$0xff]
        %v2267 = vld [vmem:[%s483 + $0x9b8] sm:$0xff]
        %v2268 = vld [vmem:[%s483 + $0x9c0] sm:$0xff]
        %v2269 = vld [vmem:[%s483 + $0x9c8] sm:$0xff]
        %v2270 = vld [vmem:[%s483 + $0x9d0] sm:$0xff]
        %v2271 = vld [vmem:[%s483 + $0x9d8] sm:$0xff]
        %v2272 = vld [vmem:[%s483 + $0x9e0] sm:$0xff]
        %v2273 = vld [vmem:[%s483 + $0x9e8] sm:$0xff]
        %v2274 = vld [vmem:[%s483 + $0x9f0] sm:$0xff]
        %v2275 = vld [vmem:[%s483 + $0x9f8] sm:$0xff]
        %v2276 = vld [vmem:[%s483 + $0xa00] sm:$0xff]
        %v2277 = vld [vmem:[%s483 + $0xa08] sm:$0xff]
        %v2278 = vld [vmem:[%s483 + $0xa10] sm:$0xff]
        %v2279 = vld [vmem:[%s483 + $0xa18] sm:$0xff]
        %v2280 = vld [vmem:[%s483 + $0xa20] sm:$0xff]
        %v2281 = vld [vmem:[%s483 + $0xa28] sm:$0xff]
        %v2282 = vld [vmem:[%s483 + $0xa30] sm:$0xff]
        %v2283 = vld [vmem:[%s483 + $0xa38] sm:$0xff]
        %v2284 = vld [vmem:[%s483 + $0xa40] sm:$0xff]
        %v2285 = vld [vmem:[%s483 + $0xa48] sm:$0xff]
        %v2286 = vld [vmem:[%s483 + $0xa50] sm:$0xff]
        %v2287 = vld [vmem:[%s483 + $0xa58] sm:$0xff]
        %v2288 = vld [vmem:[%s483 + $0xa60] sm:$0xff]
        %v2289 = vld [vmem:[%s483 + $0xa68] sm:$0xff]
        %v2290 = vld [vmem:[%s483 + $0xa70] sm:$0xff]
        %v2291 = vld [vmem:[%s483 + $0xa78] sm:$0xff]
        %v2292 = vld [vmem:[%s483 + $0xa80] sm:$0xff]
        %v2293 = vld [vmem:[%s483 + $0xa88] sm:$0xff]
        %v2294 = vld [vmem:[%s483 + $0xa90] sm:$0xff]
        %v2295 = vld [vmem:[%s483 + $0xa98] sm:$0xff]
        %v2296 = vld [vmem:[%s483 + $0xaa0] sm:$0xff]
        %v2297 = vld [vmem:[%s483 + $0xaa8] sm:$0xff]
        %v2298 = vld [vmem:[%s483 + $0xab0] sm:$0xff]
        %v2299 = vld [vmem:[%s483 + $0xab8] sm:$0xff]
        %v2300 = vld [vmem:[%s483 + $0xac0] sm:$0xff]
        %v2301 = vld [vmem:[%s483 + $0xac8] sm:$0xff]
        %v2302 = vld [vmem:[%s483 + $0xad0] sm:$0xff]
        %v2303 = vld [vmem:[%s483 + $0xad8] sm:$0xff]
        %v2304 = vld [vmem:[%s483 + $0xae0] sm:$0xff]
        %v2305 = vld [vmem:[%s483 + $0xae8] sm:$0xff]
        %v2306 = vld [vmem:[%s483 + $0xaf0] sm:$0xff]
        %v2307 = vld [vmem:[%s483 + $0xaf8] sm:$0xff]
        %v2308 = vld [vmem:[%s483 + $0xb00] sm:$0xff]
        %v2309 = vld [vmem:[%s483 + $0xb08] sm:$0xff]
        %v2310 = vld [vmem:[%s483 + $0xb10] sm:$0xff]
        %v2311 = vld [vmem:[%s483 + $0xb18] sm:$0xff]
        %v2312 = vld [vmem:[%s483 + $0xb20] sm:$0xff]
        %v2313 = vld [vmem:[%s483 + $0xb28] sm:$0xff]
        %v2314 = vld [vmem:[%s483 + $0xb30] sm:$0xff]
        %v2315 = vld [vmem:[%s483 + $0xb38] sm:$0xff]
        %v2316 = vld [vmem:[%s483 + $0xb40] sm:$0xff]
        %v2317 = vld [vmem:[%s483 + $0xb48] sm:$0xff]
        %v2318 = vld [vmem:[%s483 + $0xb50] sm:$0xff]
        %v2319 = vld [vmem:[%s483 + $0xb58] sm:$0xff]
        %v2320 = vld [vmem:[%s483 + $0xb60] sm:$0xff]
        %v2321 = vld [vmem:[%s483 + $0xb68] sm:$0xff]
        %v2322 = vld [vmem:[%s483 + $0xb70] sm:$0xff]
        %v2323 = vld [vmem:[%s483 + $0xb78] sm:$0xff]
        %v2324 = vld [vmem:[%s483 + $0xb80] sm:$0xff]
        %v2325 = vld [vmem:[%s483 + $0xb88] sm:$0xff]
        %v2326 = vld [vmem:[%s483 + $0xb90] sm:$0xff]
        %v2327 = vld [vmem:[%s483 + $0xb98] sm:$0xff]
        %v2328 = vld [vmem:[%s483 + $0xba0] sm:$0xff]
        %v2329 = vld [vmem:[%s483 + $0xba8] sm:$0xff]
        %v2330 = vld [vmem:[%s483 + $0xbb0] sm:$0xff]
        %v2331 = vld [vmem:[%s483 + $0xbb8] sm:$0xff]
        %v2332 = vld [vmem:[%s483 + $0xbc0] sm:$0xff]
        %v2333 = vld [vmem:[%s483 + $0xbc8] sm:$0xff]
        %v2334 = vld [vmem:[%s483 + $0xbd0] sm:$0xff]
        %v2335 = vld [vmem:[%s483 + $0xbd8] sm:$0xff]
        %v2336 = vld [vmem:[%s483 + $0xbe0] sm:$0xff]
        %v2337 = vld [vmem:[%s483 + $0xbe8] sm:$0xff]
        %v2338 = vld [vmem:[%s483 + $0xbf0] sm:$0xff]
        %v2339 = vld [vmem:[%s483 + $0xbf8] sm:$0xff]
        %v2340 = vld [vmem:[%s483 + $0xc00] sm:$0xff]
        %v2341 = vld [vmem:[%s483 + $0xc08] sm:$0xff]
        %v2342 = vld [vmem:[%s483 + $0xc10] sm:$0xff]
        %v2343 = vld [vmem:[%s483 + $0xc18] sm:$0xff]
        %v2344 = vld [vmem:[%s483 + $0xc20] sm:$0xff]
        %v2345 = vld [vmem:[%s483 + $0xc28] sm:$0xff]
        %v2346 = vld [vmem:[%s483 + $0xc30] sm:$0xff]
        %v2347 = vld [vmem:[%s483 + $0xc38] sm:$0xff]
        %v2348 = vld [vmem:[%s8] sm:$0xff]
        %v2349 = vld [vmem:[%s8 + $0x8] sm:$0xff]
        %v2350 = vld [vmem:[%s9] sm:$0xff]
        %v2351 = vld [vmem:[%s9 + $0x8] sm:$0xff]
        %2353 = vset.pattern.permute.xlu0 0
        %2354 = vperm.xlu0 %2353, %v2350
        %v2355 = vpop.permute.xlu0 %2354
        %2358 = vset.pattern.permute.xlu0 0
        %2359 = vperm.xlu0 %2358, %v2351
        %v2360 = vpop.permute.xlu0 %2359
        %vm2362 = vcmask 392192
        %v2364 = vsel %vm2362, %v2348, 0
        %v2367 = vsel %vm2362, %v2349, 0
        %v2370 = vsel %vm2362, %v1956, 0
        %v2373 = vsel %vm2362, %v1957, 0
        %v2376 = vsel %vm2362, %v1958, 0
        %v2379 = vsel %vm2362, %v1959, 0
        %v2382 = vsel %vm2362, %v1960, 0
        %v2385 = vsel %vm2362, %v1961, 0
        %v2388 = vsel %vm2362, %v1962, 0
        %v2391 = vsel %vm2362, %v1963, 0
        %v2394 = vsel %vm2362, %v1964, 0
        %v2397 = vsel %vm2362, %v1965, 0
        %v2400 = vsel %vm2362, %v1966, 0
        %v2403 = vsel %vm2362, %v1967, 0
        %v2406 = vsel %vm2362, %v1968, 0
        %v2409 = vsel %vm2362, %v1969, 0
        %v2412 = vsel %vm2362, %v1970, 0
        %v2415 = vsel %vm2362, %v1971, 0
        %v2418 = vsel %vm2362, %v1972, 0
        %v2421 = vsel %vm2362, %v1973, 0
        %v2424 = vsel %vm2362, %v1974, 0
        %v2427 = vsel %vm2362, %v1975, 0
        %v2430 = vsel %vm2362, %v1976, 0
        %v2433 = vsel %vm2362, %v1977, 0
        %v2436 = vsel %vm2362, %v1978, 0
        %v2439 = vsel %vm2362, %v1979, 0
        %v2442 = vsel %vm2362, %v1980, 0
        %v2445 = vsel %vm2362, %v1981, 0
        %v2448 = vsel %vm2362, %v1982, 0
        %v2451 = vsel %vm2362, %v1983, 0
        %v2454 = vsel %vm2362, %v1984, 0
        %v2457 = vsel %vm2362, %v1985, 0
        %v2460 = vsel %vm2362, %v1986, 0
        %v2463 = vsel %vm2362, %v1987, 0
        %v2466 = vsel %vm2362, %v1988, 0
        %v2469 = vsel %vm2362, %v1989, 0
        %v2472 = vsel %vm2362, %v1990, 0
        %v2475 = vsel %vm2362, %v1991, 0
        %v2478 = vsel %vm2362, %v1992, 0
        %v2481 = vsel %vm2362, %v1993, 0
        %v2484 = vsel %vm2362, %v1994, 0
        %v2487 = vsel %vm2362, %v1995, 0
        %v2490 = vsel %vm2362, %v1996, 0
        %v2493 = vsel %vm2362, %v1997, 0
        %v2496 = vsel %vm2362, %v1998, 0
        %v2499 = vsel %vm2362, %v1999, 0
        %v2502 = vsel %vm2362, %v2000, 0
        %v2505 = vsel %vm2362, %v2001, 0
        %v2508 = vsel %vm2362, %v2002, 0
        %v2511 = vsel %vm2362, %v2003, 0
        %v2514 = vsel %vm2362, %v2004, 0
        %v2517 = vsel %vm2362, %v2005, 0
        %v2520 = vsel %vm2362, %v2006, 0
        %v2523 = vsel %vm2362, %v2007, 0
        %v2526 = vsel %vm2362, %v2008, 0
        %v2529 = vsel %vm2362, %v2009, 0
        %v2532 = vsel %vm2362, %v2010, 0
        %v2535 = vsel %vm2362, %v2011, 0
        %v2538 = vsel %vm2362, %v2012, 0
        %v2541 = vsel %vm2362, %v2013, 0
        %v2544 = vsel %vm2362, %v2014, 0
        %v2547 = vsel %vm2362, %v2015, 0
        %v2550 = vsel %vm2362, %v2016, 0
        %v2553 = vsel %vm2362, %v2017, 0
        %v2556 = vsel %vm2362, %v2018, 0
        %v2559 = vsel %vm2362, %v2019, 0
        %v2562 = vsel %vm2362, %v2020, 0
        %v2565 = vsel %vm2362, %v2021, 0
        %v2568 = vsel %vm2362, %v2022, 0
        %v2571 = vsel %vm2362, %v2023, 0
        %v2574 = vsel %vm2362, %v2024, 0
        %v2577 = vsel %vm2362, %v2025, 0
        %v2580 = vsel %vm2362, %v2026, 0
        %v2583 = vsel %vm2362, %v2027, 0
        %v2586 = vsel %vm2362, %v2028, 0
        %v2589 = vsel %vm2362, %v2029, 0
        %v2592 = vsel %vm2362, %v2030, 0
        %v2595 = vsel %vm2362, %v2031, 0
        %v2598 = vsel %vm2362, %v2032, 0
        %v2601 = vsel %vm2362, %v2033, 0
        %v2604 = vsel %vm2362, %v2034, 0
        %v2607 = vsel %vm2362, %v2035, 0
        %v2610 = vsel %vm2362, %v2036, 0
        %v2613 = vsel %vm2362, %v2037, 0
        %v2616 = vsel %vm2362, %v2038, 0
        %v2619 = vsel %vm2362, %v2039, 0
        %v2622 = vsel %vm2362, %v2040, 0
        %v2625 = vsel %vm2362, %v2041, 0
        %v2628 = vsel %vm2362, %v2042, 0
        %v2631 = vsel %vm2362, %v2043, 0
        %v2634 = vsel %vm2362, %v2044, 0
        %v2637 = vsel %vm2362, %v2045, 0
        %v2640 = vsel %vm2362, %v2046, 0
        %v2643 = vsel %vm2362, %v2047, 0
        %v2646 = vsel %vm2362, %v2048, 0
        %v2649 = vsel %vm2362, %v2049, 0
        %v2652 = vsel %vm2362, %v2050, 0
        %v2655 = vsel %vm2362, %v2051, 0
        %v2658 = vsel %vm2362, %v2052, 0
        %v2661 = vsel %vm2362, %v2053, 0
        %v2664 = vsel %vm2362, %v2054, 0
        %v2667 = vsel %vm2362, %v2055, 0
        %v2670 = vsel %vm2362, %v2056, 0
        %v2673 = vsel %vm2362, %v2057, 0
        %v2676 = vsel %vm2362, %v2058, 0
        %v2679 = vsel %vm2362, %v2059, 0
        %v2682 = vsel %vm2362, %v2060, 0
        %v2685 = vsel %vm2362, %v2061, 0
        %v2688 = vsel %vm2362, %v2062, 0
        %v2691 = vsel %vm2362, %v2063, 0
        %v2694 = vsel %vm2362, %v2064, 0
        %v2697 = vsel %vm2362, %v2065, 0
        %v2700 = vsel %vm2362, %v2066, 0
        %v2703 = vsel %vm2362, %v2067, 0
        %v2706 = vsel %vm2362, %v2068, 0
        %v2709 = vsel %vm2362, %v2069, 0
        %v2712 = vsel %vm2362, %v2070, 0
        %v2715 = vsel %vm2362, %v2071, 0
        %v2718 = vsel %vm2362, %v2072, 0
        %v2721 = vsel %vm2362, %v2073, 0
        %v2724 = vsel %vm2362, %v2074, 0
        %v2727 = vsel %vm2362, %v2075, 0
        %v2730 = vsel %vm2362, %v2076, 0
        %v2733 = vsel %vm2362, %v2077, 0
        %v2736 = vsel %vm2362, %v2078, 0
        %v2739 = vsel %vm2362, %v2079, 0
        %v2742 = vsel %vm2362, %v2080, 0
        %v2745 = vsel %vm2362, %v2081, 0
        %v2748 = vsel %vm2362, %v2082, 0
        %v2751 = vsel %vm2362, %v2083, 0
        %v2754 = vsel %vm2362, %v2084, 0
        %v2757 = vsel %vm2362, %v2085, 0
        %v2760 = vsel %vm2362, %v2086, 0
        %v2763 = vsel %vm2362, %v2087, 0
        %v2766 = vsel %vm2362, %v2088, 0
        %v2769 = vsel %vm2362, %v2089, 0
        %v2772 = vsel %vm2362, %v2090, 0
        %v2775 = vsel %vm2362, %v2091, 0
        %v2778 = vsel %vm2362, %v2092, 0
        %v2781 = vsel %vm2362, %v2093, 0
        %v2784 = vsel %vm2362, %v2094, 0
        %v2787 = vsel %vm2362, %v2095, 0
        %v2790 = vsel %vm2362, %v2096, 0
        %v2793 = vsel %vm2362, %v2097, 0
        %v2796 = vsel %vm2362, %v2098, 0
        %v2799 = vsel %vm2362, %v2099, 0
        %v2802 = vsel %vm2362, %v2100, 0
        %v2805 = vsel %vm2362, %v2101, 0
        %v2808 = vsel %vm2362, %v2102, 0
        %v2811 = vsel %vm2362, %v2103, 0
        %v2814 = vsel %vm2362, %v2104, 0
        %v2817 = vsel %vm2362, %v2105, 0
        %v2820 = vsel %vm2362, %v2106, 0
        %v2823 = vsel %vm2362, %v2107, 0
        %v2826 = vsel %vm2362, %v2108, 0
        %v2829 = vsel %vm2362, %v2109, 0
        %v2832 = vsel %vm2362, %v2110, 0
        %v2835 = vsel %vm2362, %v2111, 0
        %v2838 = vsel %vm2362, %v2112, 0
        %v2841 = vsel %vm2362, %v2113, 0
        %v2844 = vsel %vm2362, %v2114, 0
        %v2847 = vsel %vm2362, %v2115, 0
        %v2850 = vsel %vm2362, %v2116, 0
        %v2853 = vsel %vm2362, %v2117, 0
        %v2856 = vsel %vm2362, %v2118, 0
        %v2859 = vsel %vm2362, %v2119, 0
        %v2862 = vsel %vm2362, %v2120, 0
        %v2865 = vsel %vm2362, %v2121, 0
        %v2868 = vsel %vm2362, %v2122, 0
        %v2871 = vsel %vm2362, %v2123, 0
        %v2874 = vsel %vm2362, %v2124, 0
        %v2877 = vsel %vm2362, %v2125, 0
        %v2880 = vsel %vm2362, %v2126, 0
        %v2883 = vsel %vm2362, %v2127, 0
        %v2886 = vsel %vm2362, %v2128, 0
        %v2889 = vsel %vm2362, %v2129, 0
        %v2892 = vsel %vm2362, %v2130, 0
        %v2895 = vsel %vm2362, %v2131, 0
        %v2898 = vsel %vm2362, %v2132, 0
        %v2901 = vsel %vm2362, %v2133, 0
        %v2904 = vsel %vm2362, %v2134, 0
        %v2907 = vsel %vm2362, %v2135, 0
        %v2910 = vsel %vm2362, %v2136, 0
        %v2913 = vsel %vm2362, %v2137, 0
        %v2916 = vsel %vm2362, %v2138, 0
        %v2919 = vsel %vm2362, %v2139, 0
        %v2922 = vsel %vm2362, %v2140, 0
        %v2925 = vsel %vm2362, %v2141, 0
        %v2928 = vsel %vm2362, %v2142, 0
        %v2931 = vsel %vm2362, %v2143, 0
        %v2934 = vsel %vm2362, %v2144, 0
        %v2937 = vsel %vm2362, %v2145, 0
        %v2940 = vsel %vm2362, %v2146, 0
        %v2943 = vsel %vm2362, %v2147, 0
        %v2946 = vsel %vm2362, %v2148, 0
        %v2949 = vsel %vm2362, %v2149, 0
        %v2952 = vsel %vm2362, %v2150, 0
        %v2955 = vsel %vm2362, %v2151, 0
        %v2958 = vsel %vm2362, %v2152, 0
        %v2961 = vsel %vm2362, %v2153, 0
        %v2964 = vsel %vm2362, %v2154, 0
        %v2967 = vsel %vm2362, %v2155, 0
        %v2970 = vsel %vm2362, %v2156, 0
        %v2973 = vsel %vm2362, %v2157, 0
        %v2976 = vsel %vm2362, %v2158, 0
        %v2979 = vsel %vm2362, %v2159, 0
        %v2982 = vsel %vm2362, %v2160, 0
        %v2985 = vsel %vm2362, %v2161, 0
        %v2988 = vsel %vm2362, %v2162, 0
        %v2991 = vsel %vm2362, %v2163, 0
        %v2994 = vsel %vm2362, %v2164, 0
        %v2997 = vsel %vm2362, %v2165, 0
        %v3000 = vsel %vm2362, %v2166, 0
        %v3003 = vsel %vm2362, %v2167, 0
        %v3006 = vsel %vm2362, %v2168, 0
        %v3009 = vsel %vm2362, %v2169, 0
        %v3012 = vsel %vm2362, %v2170, 0
        %v3015 = vsel %vm2362, %v2171, 0
        %v3018 = vsel %vm2362, %v2172, 0
        %v3021 = vsel %vm2362, %v2173, 0
        %v3024 = vsel %vm2362, %v2174, 0
        %v3027 = vsel %vm2362, %v2175, 0
        %v3030 = vsel %vm2362, %v2176, 0
        %v3033 = vsel %vm2362, %v2177, 0
        %v3036 = vsel %vm2362, %v2178, 0
        %v3039 = vsel %vm2362, %v2179, 0
        %v3042 = vsel %vm2362, %v2180, 0
        %v3045 = vsel %vm2362, %v2181, 0
        %v3048 = vsel %vm2362, %v2182, 0
        %v3051 = vsel %vm2362, %v2183, 0
        %v3054 = vsel %vm2362, %v2184, 0
        %v3057 = vsel %vm2362, %v2185, 0
        %v3060 = vsel %vm2362, %v2186, 0
        %v3063 = vsel %vm2362, %v2187, 0
        %v3066 = vsel %vm2362, %v2188, 0
        %v3069 = vsel %vm2362, %v2189, 0
        %v3072 = vsel %vm2362, %v2190, 0
        %v3075 = vsel %vm2362, %v2191, 0
        %v3078 = vsel %vm2362, %v2192, 0
        %v3081 = vsel %vm2362, %v2193, 0
        %v3084 = vsel %vm2362, %v2194, 0
        %v3087 = vsel %vm2362, %v2195, 0
        %v3090 = vsel %vm2362, %v2196, 0
        %v3093 = vsel %vm2362, %v2197, 0
        %v3096 = vsel %vm2362, %v2198, 0
        %v3099 = vsel %vm2362, %v2199, 0
        %v3102 = vsel %vm2362, %v2200, 0
        %v3105 = vsel %vm2362, %v2201, 0
        %v3108 = vsel %vm2362, %v2202, 0
        %v3111 = vsel %vm2362, %v2203, 0
        %v3114 = vsel %vm2362, %v2204, 0
        %v3117 = vsel %vm2362, %v2205, 0
        %v3120 = vsel %vm2362, %v2206, 0
        %v3123 = vsel %vm2362, %v2207, 0
        %v3126 = vsel %vm2362, %v2208, 0
        %v3129 = vsel %vm2362, %v2209, 0
        %v3132 = vsel %vm2362, %v2210, 0
        %v3135 = vsel %vm2362, %v2211, 0
        %v3138 = vsel %vm2362, %v2212, 0
        %v3141 = vsel %vm2362, %v2213, 0
        %v3144 = vsel %vm2362, %v2214, 0
        %v3147 = vsel %vm2362, %v2215, 0
        %v3150 = vsel %vm2362, %v2216, 0
        %v3153 = vsel %vm2362, %v2217, 0
        %v3156 = vsel %vm2362, %v2218, 0
        %v3159 = vsel %vm2362, %v2219, 0
        %v3162 = vsel %vm2362, %v2220, 0
        %v3165 = vsel %vm2362, %v2221, 0
        %v3168 = vsel %vm2362, %v2222, 0
        %v3171 = vsel %vm2362, %v2223, 0
        %v3174 = vsel %vm2362, %v2224, 0
        %v3177 = vsel %vm2362, %v2225, 0
        %v3180 = vsel %vm2362, %v2226, 0
        %v3183 = vsel %vm2362, %v2227, 0
        %v3186 = vsel %vm2362, %v2228, 0
        %v3189 = vsel %vm2362, %v2229, 0
        %v3192 = vsel %vm2362, %v2230, 0
        %v3195 = vsel %vm2362, %v2231, 0
        %v3198 = vsel %vm2362, %v2232, 0
        %v3201 = vsel %vm2362, %v2233, 0
        %v3204 = vsel %vm2362, %v2234, 0
        %v3207 = vsel %vm2362, %v2235, 0
        %v3210 = vsel %vm2362, %v2236, 0
        %v3213 = vsel %vm2362, %v2237, 0
        %v3216 = vsel %vm2362, %v2238, 0
        %v3219 = vsel %vm2362, %v2239, 0
        %v3222 = vsel %vm2362, %v2240, 0
        %v3225 = vsel %vm2362, %v2241, 0
        %v3228 = vsel %vm2362, %v2242, 0
        %v3231 = vsel %vm2362, %v2243, 0
        %v3234 = vsel %vm2362, %v2244, 0
        %v3237 = vsel %vm2362, %v2245, 0
        %v3240 = vsel %vm2362, %v2246, 0
        %v3243 = vsel %vm2362, %v2247, 0
        %v3246 = vsel %vm2362, %v2248, 0
        %v3249 = vsel %vm2362, %v2249, 0
        %v3252 = vsel %vm2362, %v2250, 0
        %v3255 = vsel %vm2362, %v2251, 0
        %v3258 = vsel %vm2362, %v2252, 0
        %v3261 = vsel %vm2362, %v2253, 0
        %v3264 = vsel %vm2362, %v2254, 0
        %v3267 = vsel %vm2362, %v2255, 0
        %v3270 = vsel %vm2362, %v2256, 0
        %v3273 = vsel %vm2362, %v2257, 0
        %v3276 = vsel %vm2362, %v2258, 0
        %v3279 = vsel %vm2362, %v2259, 0
        %v3282 = vsel %vm2362, %v2260, 0
        %v3285 = vsel %vm2362, %v2261, 0
        %v3288 = vsel %vm2362, %v2262, 0
        %v3291 = vsel %vm2362, %v2263, 0
        %v3294 = vsel %vm2362, %v2264, 0
        %v3297 = vsel %vm2362, %v2265, 0
        %v3300 = vsel %vm2362, %v2266, 0
        %v3303 = vsel %vm2362, %v2267, 0
        %v3306 = vsel %vm2362, %v2268, 0
        %v3309 = vsel %vm2362, %v2269, 0
        %v3312 = vsel %vm2362, %v2270, 0
        %v3315 = vsel %vm2362, %v2271, 0
        %v3318 = vsel %vm2362, %v2272, 0
        %v3321 = vsel %vm2362, %v2273, 0
        %v3324 = vsel %vm2362, %v2274, 0
        %v3327 = vsel %vm2362, %v2275, 0
        %v3330 = vsel %vm2362, %v2276, 0
        %v3333 = vsel %vm2362, %v2277, 0
        %v3336 = vsel %vm2362, %v2278, 0
        %v3339 = vsel %vm2362, %v2279, 0
        %v3342 = vsel %vm2362, %v2280, 0
        %v3345 = vsel %vm2362, %v2281, 0
        %v3348 = vsel %vm2362, %v2282, 0
        %v3351 = vsel %vm2362, %v2283, 0
        %v3354 = vsel %vm2362, %v2284, 0
        %v3357 = vsel %vm2362, %v2285, 0
        %v3360 = vsel %vm2362, %v2286, 0
        %v3363 = vsel %vm2362, %v2287, 0
        %v3366 = vsel %vm2362, %v2288, 0
        %v3369 = vsel %vm2362, %v2289, 0
        %v3372 = vsel %vm2362, %v2290, 0
        %v3375 = vsel %vm2362, %v2291, 0
        %v3378 = vsel %vm2362, %v2292, 0
        %v3381 = vsel %vm2362, %v2293, 0
        %v3384 = vsel %vm2362, %v2294, 0
        %v3387 = vsel %vm2362, %v2295, 0
        %v3390 = vsel %vm2362, %v2296, 0
        %v3393 = vsel %vm2362, %v2297, 0
        %v3396 = vsel %vm2362, %v2298, 0
        %v3399 = vsel %vm2362, %v2299, 0
        %v3402 = vsel %vm2362, %v2300, 0
        %v3405 = vsel %vm2362, %v2301, 0
        %v3408 = vsel %vm2362, %v2302, 0
        %v3411 = vsel %vm2362, %v2303, 0
        %v3414 = vsel %vm2362, %v2304, 0
        %v3417 = vsel %vm2362, %v2305, 0
        %v3420 = vsel %vm2362, %v2306, 0
        %v3423 = vsel %vm2362, %v2307, 0
        %v3426 = vsel %vm2362, %v2308, 0
        %v3429 = vsel %vm2362, %v2309, 0
        %v3432 = vsel %vm2362, %v2310, 0
        %v3435 = vsel %vm2362, %v2311, 0
        %v3438 = vsel %vm2362, %v2312, 0
        %v3441 = vsel %vm2362, %v2313, 0
        %v3444 = vsel %vm2362, %v2314, 0
        %v3447 = vsel %vm2362, %v2315, 0
        %v3450 = vsel %vm2362, %v2316, 0
        %v3453 = vsel %vm2362, %v2317, 0
        %v3456 = vsel %vm2362, %v2318, 0
        %v3459 = vsel %vm2362, %v2319, 0
        %v3462 = vsel %vm2362, %v2320, 0
        %v3465 = vsel %vm2362, %v2321, 0
        %v3468 = vsel %vm2362, %v2322, 0
        %v3471 = vsel %vm2362, %v2323, 0
        %v3474 = vsel %vm2362, %v2324, 0
        %v3477 = vsel %vm2362, %v2325, 0
        %v3480 = vsel %vm2362, %v2326, 0
        %v3483 = vsel %vm2362, %v2327, 0
        %v3486 = vsel %vm2362, %v2328, 0
        %v3489 = vsel %vm2362, %v2329, 0
        %v3492 = vsel %vm2362, %v2330, 0
        %v3495 = vsel %vm2362, %v2331, 0
        %v3498 = vsel %vm2362, %v2332, 0
        %v3501 = vsel %vm2362, %v2333, 0
        %v3504 = vsel %vm2362, %v2334, 0
        %v3507 = vsel %vm2362, %v2335, 0
        %v3510 = vsel %vm2362, %v2336, 0
        %v3513 = vsel %vm2362, %v2337, 0
        %v3516 = vsel %vm2362, %v2338, 0
        %v3519 = vsel %vm2362, %v2339, 0
        %v3522 = vsel %vm2362, %v2340, 0
        %v3525 = vsel %vm2362, %v2341, 0
        %v3528 = vsel %vm2362, %v2342, 0
        %v3531 = vsel %vm2362, %v2343, 0
        %v3534 = vsel %vm2362, %v2344, 0
        %v3537 = vsel %vm2362, %v2345, 0
        %v3540 = vsel %vm2362, %v2346, 0
        %v3543 = vsel %vm2362, %v2347, 0
        %3545 = vmatprep.subr.mxu0 0.0
        %3546 = vmatpush1.xpose.msra.mxu0 %v2370
        %3547 = vmatprep.subr.mxu0 0.0
        %3548 = vmatpush1.xpose.msra.mxu0 %v2373
        %3549 = vmatprep.subr.mxu0 0.0
        %3550 = vmatpush1.xpose.msra.mxu0 %v2376
        %3551 = vmatprep.subr.mxu0 0.0
        %3552 = vmatpush1.xpose.msra.mxu0 %v2379
        %3553 = vmatprep.subr.mxu0 0.0
        %3554 = vmatpush1.xpose.msra.mxu0 %v2382
        %3555 = vmatprep.subr.mxu0 0.0
        %3556 = vmatpush1.xpose.msra.mxu0 %v2385
        %3557 = vmatprep.subr.mxu0 0.0
        %3558 = vmatpush1.xpose.msra.mxu0 %v2388
        %3559 = vmatprep.subr.mxu0 0.0
        %3560 = vmatpush1.xpose.msra.mxu0 %v2391
        %3561 = vmatprep.subr.mxu0 0.0
        %3562 = vmatpush1.xpose.msra.mxu0 %v2394
        %3563 = vmatprep.subr.mxu0 0.0
        %3564 = vmatpush1.xpose.msra.mxu0 %v2397
        %3565 = vmatprep.subr.mxu0 0.0
        %3566 = vmatpush1.xpose.msra.mxu0 %v2400
        %3567 = vmatprep.subr.mxu0 0.0
        %3568 = vmatpush1.xpose.msra.mxu0 %v2403
        %3569 = vmatprep.subr.mxu0 0.0
        %3570 = vmatpush1.xpose.msra.mxu0 %v2406
        %3571 = vmatprep.subr.mxu0 0.0
        %3572 = vmatpush1.xpose.msra.mxu0 %v2409
        %3573 = vmatprep.subr.mxu0 0.0
        %3574 = vmatpush1.xpose.msra.mxu0 %v2412
        %3575 = vmatprep.subr.mxu0 0.0
        %3576 = vmatpush1.xpose.msra.mxu0 %v2415
        %3577 = vmatprep.subr.mxu0 0.0
        %3578 = vmatpush1.xpose.msra.mxu0 %v2418
        %3579 = vmatprep.subr.mxu0 0.0
        %3580 = vmatpush1.xpose.msra.mxu0 %v2421
        %3581 = vmatprep.subr.mxu0 0.0
        %3582 = vmatpush1.xpose.msra.mxu0 %v2424
        %3583 = vmatprep.subr.mxu0 0.0
        %3584 = vmatpush1.xpose.msra.mxu0 %v2427
        %3585 = vmatprep.subr.mxu0 0.0
        %3586 = vmatpush1.xpose.msra.mxu0 %v2430
        %3587 = vmatprep.subr.mxu0 0.0
        %3588 = vmatpush1.xpose.msra.mxu0 %v2433
        %3589 = vmatprep.subr.mxu0 0.0
        %3590 = vmatpush1.xpose.msra.mxu0 %v2436
        %3591 = vmatprep.subr.mxu0 0.0
        %3592 = vmatpush1.xpose.msra.mxu0 %v2439
        %3593 = vmatprep.subr.mxu0 0.0
        %3594 = vmatpush1.xpose.msra.mxu0 %v2442
        %3595 = vmatprep.subr.mxu0 0.0
        %3596 = vmatpush1.xpose.msra.mxu0 %v2445
        %3597 = vmatprep.subr.mxu0 0.0
        %3598 = vmatpush1.xpose.msra.mxu0 %v2448
        %3599 = vmatprep.subr.mxu0 0.0
        %3600 = vmatpush1.xpose.msra.mxu0 %v2451
        %3601 = vmatprep.subr.mxu0 0.0
        %3602 = vmatpush1.xpose.msra.mxu0 %v2454
        %3603 = vmatprep.subr.mxu0 0.0
        %3604 = vmatpush1.xpose.msra.mxu0 %v2457
        %3605 = vmatprep.subr.mxu0 0.0
        %3606 = vmatpush1.xpose.msra.mxu0 %v2460
        %3607 = vmatprep.subr.mxu0 0.0
        %3608 = vmatpush1.xpose.msra.mxu0 %v2463
        %3609 = vmatprep.mubr.f32.mxu0 0.0
        %3610 = vmatmul.mubr.f32.gmra.mrb[0].mxu0 %v2364
        %v3611 = vpop.f32.mrb[0].mxu0
        %v3612 = vadd.f32 %v2355, %v3611
        %v3613 = vpop.f32.mrb[0].mxu0
        %v3614 = vadd.f32 %v2355, %v3613
        %3615 = vmatprep.mubr.f32.mxu0 0.0
        %3616 = vmatmul.mubr.f32.gmra.mrb[0].mxu0 %v2367
        %v3617 = vpop.f32.mrb[0].mxu0
        %v3618 = vadd.f32 %v2360, %v3617
        %v3619 = vpop.f32.mrb[0].mxu0
        %v3620 = vadd.f32 %v2360, %v3619
        %3621 = vdwg.mxu0
        %3622 = vmatprep.subr.mxu0 0.0
        %3623 = vmatpush1.xpose.msra.mxu0 %v2466
        %3624 = vmatprep.subr.mxu0 0.0
        %3625 = vmatpush1.xpose.msra.mxu0 %v2469
        %3626 = vmatprep.subr.mxu0 0.0
        %3627 = vmatpush1.xpose.msra.mxu0 %v2472
        %3628 = vmatprep.subr.mxu0 0.0
        %3629 = vmatpush1.xpose.msra.mxu0 %v2475
        %3630 = vmatprep.subr.mxu0 0.0
        %3631 = vmatpush1.xpose.msra.mxu0 %v2478
        %3632 = vmatprep.subr.mxu0 0.0
        %3633 = vmatpush1.xpose.msra.mxu0 %v2481
        %3634 = vmatprep.subr.mxu0 0.0
        %3635 = vmatpush1.xpose.msra.mxu0 %v2484
        %3636 = vmatprep.subr.mxu0 0.0
        %3637 = vmatpush1.xpose.msra.mxu0 %v2487
        %3638 = vmatprep.subr.mxu0 0.0
        %3639 = vmatpush1.xpose.msra.mxu0 %v2490
        %3640 = vmatprep.subr.mxu0 0.0
        %3641 = vmatpush1.xpose.msra.mxu0 %v2493
        %3642 = vmatprep.subr.mxu0 0.0
        %3643 = vmatpush1.xpose.msra.mxu0 %v2496
        %3644 = vmatprep.subr.mxu0 0.0
        %3645 = vmatpush1.xpose.msra.mxu0 %v2499
        %3646 = vmatprep.subr.mxu0 0.0
        %3647 = vmatpush1.xpose.msra.mxu0 %v2502
        %3648 = vmatprep.subr.mxu0 0.0
        %3649 = vmatpush1.xpose.msra.mxu0 %v2505
        %3650 = vmatprep.subr.mxu0 0.0
        %3651 = vmatpush1.xpose.msra.mxu0 %v2508
        %3652 = vmatprep.subr.mxu0 0.0
        %3653 = vmatpush1.xpose.msra.mxu0 %v2511
        %3654 = vmatprep.subr.mxu0 0.0
        %3655 = vmatpush1.xpose.msra.mxu0 %v2514
        %3656 = vmatprep.subr.mxu0 0.0
        %3657 = vmatpush1.xpose.msra.mxu0 %v2517
        %3658 = vmatprep.subr.mxu0 0.0
        %3659 = vmatpush1.xpose.msra.mxu0 %v2520
        %3660 = vmatprep.subr.mxu0 0.0
        %3661 = vmatpush1.xpose.msra.mxu0 %v2523
        %3662 = vmatprep.subr.mxu0 0.0
        %3663 = vmatpush1.xpose.msra.mxu0 %v2526
        %3664 = vmatprep.subr.mxu0 0.0
        %3665 = vmatpush1.xpose.msra.mxu0 %v2529
        %3666 = vmatprep.subr.mxu0 0.0
        %3667 = vmatpush1.xpose.msra.mxu0 %v2532
        %3668 = vmatprep.subr.mxu0 0.0
        %3669 = vmatpush1.xpose.msra.mxu0 %v2535
        %3670 = vmatprep.subr.mxu0 0.0
        %3671 = vmatpush1.xpose.msra.mxu0 %v2538
        %3672 = vmatprep.subr.mxu0 0.0
        %3673 = vmatpush1.xpose.msra.mxu0 %v2541
        %3674 = vmatprep.subr.mxu0 0.0
        %3675 = vmatpush1.xpose.msra.mxu0 %v2544
        %3676 = vmatprep.subr.mxu0 0.0
        %3677 = vmatpush1.xpose.msra.mxu0 %v2547
        %3678 = vmatprep.subr.mxu0 0.0
        %3679 = vmatpush1.xpose.msra.mxu0 %v2550
        %3680 = vmatprep.subr.mxu0 0.0
        %3681 = vmatpush1.xpose.msra.mxu0 %v2553
        %3682 = vmatprep.subr.mxu0 0.0
        %3683 = vmatpush1.xpose.msra.mxu0 %v2556
        %3684 = vmatprep.subr.mxu0 0.0
        %3685 = vmatpush1.xpose.msra.mxu0 %v2559
        %3686 = vmatprep.mubr.f32.mxu0 0.0
        %3687 = vmatmul.mubr.f32.gmra.mrb[0].mxu0 %v2364
        %v3688 = vpop.f32.mrb[0].mxu0
        %v3689 = vadd.f32 %v2355, %v3688
        %v3690 = vpop.f32.mrb[0].mxu0
        %v3691 = vadd.f32 %v2355, %v3690
        %3692 = vmatprep.mubr.f32.mxu0 0.0
        %3693 = vmatmul.mubr.f32.gmra.mrb[0].mxu0 %v2367
        %v3694 = vpop.f32.mrb[0].mxu0
        %v3695 = vadd.f32 %v2360, %v3694
        %v3696 = vpop.f32.mrb[0].mxu0
        %v3697 = vadd.f32 %v2360, %v3696
        %3698 = vdwg.mxu0
        %3699 = vmatprep.subr.mxu0 0.0
        %3700 = vmatpush1.xpose.msra.mxu0 %v2562
        %3701 = vmatprep.subr.mxu0 0.0
        %3702 = vmatpush1.xpose.msra.mxu0 %v2565
        %3703 = vmatprep.subr.mxu0 0.0
        %3704 = vmatpush1.xpose.msra.mxu0 %v2568
        %3705 = vmatprep.subr.mxu0 0.0
        %3706 = vmatpush1.xpose.msra.mxu0 %v2571
        %3707 = vmatprep.subr.mxu0 0.0
        %3708 = vmatpush1.xpose.msra.mxu0 %v2574
        %3709 = vmatprep.subr.mxu0 0.0
        %3710 = vmatpush1.xpose.msra.mxu0 %v2577
        %3711 = vmatprep.subr.mxu0 0.0
        %3712 = vmatpush1.xpose.msra.mxu0 %v2580
        %3713 = vmatprep.subr.mxu0 0.0
        %3714 = vmatpush1.xpose.msra.mxu0 %v2583
        %3715 = vmatprep.subr.mxu0 0.0
        %3716 = vmatpush1.xpose.msra.mxu0 %v2586
        %3717 = vmatprep.subr.mxu0 0.0
        %3718 = vmatpush1.xpose.msra.mxu0 %v2589
        %3719 = vmatprep.subr.mxu0 0.0
        %3720 = vmatpush1.xpose.msra.mxu0 %v2592
        %3721 = vmatprep.subr.mxu0 0.0
        %3722 = vmatpush1.xpose.msra.mxu0 %v2595
        %3723 = vmatprep.subr.mxu0 0.0
        %3724 = vmatpush1.xpose.msra.mxu0 %v2598
        %3725 = vmatprep.subr.mxu0 0.0
        %3726 = vmatpush1.xpose.msra.mxu0 %v2601
        %3727 = vmatprep.subr.mxu0 0.0
        %3728 = vmatpush1.xpose.msra.mxu0 %v2604
        %3729 = vmatprep.subr.mxu0 0.0
        %3730 = vmatpush1.xpose.msra.mxu0 %v2607
        %3731 = vmatprep.subr.mxu0 0.0
        %3732 = vmatpush1.xpose.msra.mxu0 %v2610
        %3733 = vmatprep.subr.mxu0 0.0
        %3734 = vmatpush1.xpose.msra.mxu0 %v2613
        %3735 = vmatprep.subr.mxu0 0.0
        %3736 = vmatpush1.xpose.msra.mxu0 %v2616
        %3737 = vmatprep.subr.mxu0 0.0
        %3738 = vmatpush1.xpose.msra.mxu0 %v2619
        %3739 = vmatprep.subr.mxu0 0.0
        %3740 = vmatpush1.xpose.msra.mxu0 %v2622
        %3741 = vmatprep.subr.mxu0 0.0
        %3742 = vmatpush1.xpose.msra.mxu0 %v2625
        %3743 = vmatprep.subr.mxu0 0.0
        %3744 = vmatpush1.xpose.msra.mxu0 %v2628
        %3745 = vmatprep.subr.mxu0 0.0
        %3746 = vmatpush1.xpose.msra.mxu0 %v2631
        %3747 = vmatprep.subr.mxu0 0.0
        %3748 = vmatpush1.xpose.msra.mxu0 %v2634
        %3749 = vmatprep.subr.mxu0 0.0
        %3750 = vmatpush1.xpose.msra.mxu0 %v2637
        %3751 = vmatprep.subr.mxu0 0.0
        %3752 = vmatpush1.xpose.msra.mxu0 %v2640
        %3753 = vmatprep.subr.mxu0 0.0
        %3754 = vmatpush1.xpose.msra.mxu0 %v2643
        %3755 = vmatprep.subr.mxu0 0.0
        %3756 = vmatpush1.xpose.msra.mxu0 %v2646
        %3757 = vmatprep.subr.mxu0 0.0
        %3758 = vmatpush1.xpose.msra.mxu0 %v2649
        %3759 = vmatprep.subr.mxu0 0.0
        %3760 = vmatpush1.xpose.msra.mxu0 %v2652
        %3761 = vmatprep.subr.mxu0 0.0
        %3762 = vmatpush1.xpose.msra.mxu0 %v2655
        %3763 = vmatprep.mubr.f32.mxu0 0.0
        %3764 = vmatmul.mubr.f32.gmra.mrb[0].mxu0 %v2364
        %v3765 = vpop.f32.mrb[0].mxu0
        %v3766 = vadd.f32 %v2355, %v3765
        %v3767 = vpop.f32.mrb[0].mxu0
        %v3768 = vadd.f32 %v2355, %v3767
        %3769 = vmatprep.mubr.f32.mxu0 0.0
        %3770 = vmatmul.mubr.f32.gmra.mrb[0].mxu0 %v2367
        %v3771 = vpop.f32.mrb[0].mxu0
        %v3772 = vadd.f32 %v2360, %v3771
        %v3773 = vpop.f32.mrb[0].mxu0
        %v3774 = vadd.f32 %v2360, %v3773
        %3775 = vdwg.mxu0
        %3776 = vmatprep.subr.mxu0 0.0
        %3777 = vmatpush1.xpose.msra.mxu0 %v2658
        %3778 = vmatprep.subr.mxu0 0.0
        %3779 = vmatpush1.xpose.msra.mxu0 %v2661
        %3780 = vmatprep.subr.mxu0 0.0
        %3781 = vmatpush1.xpose.msra.mxu0 %v2664
        %3782 = vmatprep.subr.mxu0 0.0
        %3783 = vmatpush1.xpose.msra.mxu0 %v2667
        %3784 = vmatprep.subr.mxu0 0.0
        %3785 = vmatpush1.xpose.msra.mxu0 %v2670
        %3786 = vmatprep.subr.mxu0 0.0
        %3787 = vmatpush1.xpose.msra.mxu0 %v2673
        %3788 = vmatprep.subr.mxu0 0.0
        %3789 = vmatpush1.xpose.msra.mxu0 %v2676
        %3790 = vmatprep.subr.mxu0 0.0
        %3791 = vmatpush1.xpose.msra.mxu0 %v2679
        %3792 = vmatprep.subr.mxu0 0.0
        %3793 = vmatpush1.xpose.msra.mxu0 %v2682
        %3794 = vmatprep.subr.mxu0 0.0
        %3795 = vmatpush1.xpose.msra.mxu0 %v2685
        %3796 = vmatprep.subr.mxu0 0.0
        %3797 = vmatpush1.xpose.msra.mxu0 %v2688
        %3798 = vmatprep.subr.mxu0 0.0
        %3799 = vmatpush1.xpose.msra.mxu0 %v2691
        %3800 = vmatprep.subr.mxu0 0.0
        %3801 = vmatpush1.xpose.msra.mxu0 %v2694
        %3802 = vmatprep.subr.mxu0 0.0
        %3803 = vmatpush1.xpose.msra.mxu0 %v2697
        %3804 = vmatprep.subr.mxu0 0.0
        %3805 = vmatpush1.xpose.msra.mxu0 %v2700
        %3806 = vmatprep.subr.mxu0 0.0
        %3807 = vmatpush1.xpose.msra.mxu0 %v2703
        %3808 = vmatprep.subr.mxu0 0.0
        %3809 = vmatpush1.xpose.msra.mxu0 %v2706
        %3810 = vmatprep.subr.mxu0 0.0
        %3811 = vmatpush1.xpose.msra.mxu0 %v2709
        %3812 = vmatprep.subr.mxu0 0.0
        %3813 = vmatpush1.xpose.msra.mxu0 %v2712
        %3814 = vmatprep.subr.mxu0 0.0
        %3815 = vmatpush1.xpose.msra.mxu0 %v2715
        %3816 = vmatprep.subr.mxu0 0.0
        %3817 = vmatpush1.xpose.msra.mxu0 %v2718
        %3818 = vmatprep.subr.mxu0 0.0
        %3819 = vmatpush1.xpose.msra.mxu0 %v2721
        %3820 = vmatprep.subr.mxu0 0.0
        %3821 = vmatpush1.xpose.msra.mxu0 %v2724
        %3822 = vmatprep.subr.mxu0 0.0
        %3823 = vmatpush1.xpose.msra.mxu0 %v2727
        %3824 = vmatprep.subr.mxu0 0.0
        %3825 = vmatpush1.xpose.msra.mxu0 %v2730
        %3826 = vmatprep.subr.mxu0 0.0
        %3827 = vmatpush1.xpose.msra.mxu0 %v2733
        %3828 = vmatprep.subr.mxu0 0.0
        %3829 = vmatpush1.xpose.msra.mxu0 %v2736
        %3830 = vmatprep.subr.mxu0 0.0
        %3831 = vmatpush1.xpose.msra.mxu0 %v2739
        %3832 = vmatprep.subr.mxu0 0.0
        %3833 = vmatpush1.xpose.msra.mxu0 %v2742
        %3834 = vmatprep.subr.mxu0 0.0
        %3835 = vmatpush1.xpose.msra.mxu0 %v2745
        %3836 = vmatprep.subr.mxu0 0.0
        %3837 = vmatpush1.xpose.msra.mxu0 %v2748
        %3838 = vmatprep.subr.mxu0 0.0
        %3839 = vmatpush1.xpose.msra.mxu0 %v2751
        %3840 = vmatprep.mubr.f32.mxu0 0.0
        %3841 = vmatmul.mubr.f32.gmra.mrb[0].mxu0 %v2364
        %v3842 = vpop.f32.mrb[0].mxu0
        %v3843 = vadd.f32 %v2355, %v3842
        %v3844 = vpop.f32.mrb[0].mxu0
        %v3845 = vadd.f32 %v2355, %v3844
        %3846 = vmatprep.mubr.f32.mxu0 0.0
        %3847 = vmatmul.mubr.f32.gmra.mrb[0].mxu0 %v2367
        %v3848 = vpop.f32.mrb[0].mxu0
        %v3849 = vadd.f32 %v2360, %v3848
        %v3850 = vpop.f32.mrb[0].mxu0
        %v3851 = vadd.f32 %v2360, %v3850
        %3852 = vdwg.mxu0
        %3853 = vmatprep.subr.mxu0 0.0
        %3854 = vmatpush1.xpose.msra.mxu0 %v2754
        %3855 = vmatprep.subr.mxu0 0.0
        %3856 = vmatpush1.xpose.msra.mxu0 %v2757
        %3857 = vmatprep.subr.mxu0 0.0
        %3858 = vmatpush1.xpose.msra.mxu0 %v2760
        %3859 = vmatprep.subr.mxu0 0.0
        %3860 = vmatpush1.xpose.msra.mxu0 %v2763
        %3861 = vmatprep.subr.mxu0 0.0
        %3862 = vmatpush1.xpose.msra.mxu0 %v2766
        %3863 = vmatprep.subr.mxu0 0.0
        %3864 = vmatpush1.xpose.msra.mxu0 %v2769
        %3865 = vmatprep.subr.mxu0 0.0
        %3866 = vmatpush1.xpose.msra.mxu0 %v2772
        %3867 = vmatprep.subr.mxu0 0.0
        %3868 = vmatpush1.xpose.msra.mxu0 %v2775
        %3869 = vmatprep.subr.mxu0 0.0
        %3870 = vmatpush1.xpose.msra.mxu0 %v2778
        %3871 = vmatprep.subr.mxu0 0.0
        %3872 = vmatpush1.xpose.msra.mxu0 %v2781
        %3873 = vmatprep.subr.mxu0 0.0
        %3874 = vmatpush1.xpose.msra.mxu0 %v2784
        %3875 = vmatprep.subr.mxu0 0.0
        %3876 = vmatpush1.xpose.msra.mxu0 %v2787
        %3877 = vmatprep.subr.mxu0 0.0
        %3878 = vmatpush1.xpose.msra.mxu0 %v2790
        %3879 = vmatprep.subr.mxu0 0.0
        %3880 = vmatpush1.xpose.msra.mxu0 %v2793
        %3881 = vmatprep.subr.mxu0 0.0
        %3882 = vmatpush1.xpose.msra.mxu0 %v2796
        %3883 = vmatprep.subr.mxu0 0.0
        %3884 = vmatpush1.xpose.msra.mxu0 %v2799
        %3885 = vmatprep.subr.mxu0 0.0
        %3886 = vmatpush1.xpose.msra.mxu0 %v2802
        %3887 = vmatprep.subr.mxu0 0.0
        %3888 = vmatpush1.xpose.msra.mxu0 %v2805
        %3889 = vmatprep.subr.mxu0 0.0
        %3890 = vmatpush1.xpose.msra.mxu0 %v2808
        %3891 = vmatprep.subr.mxu0 0.0
        %3892 = vmatpush1.xpose.msra.mxu0 %v2811
        %3893 = vmatprep.subr.mxu0 0.0
        %3894 = vmatpush1.xpose.msra.mxu0 %v2814
        %3895 = vmatprep.subr.mxu0 0.0
        %3896 = vmatpush1.xpose.msra.mxu0 %v2817
        %3897 = vmatprep.subr.mxu0 0.0
        %3898 = vmatpush1.xpose.msra.mxu0 %v2820
        %3899 = vmatprep.subr.mxu0 0.0
        %3900 = vmatpush1.xpose.msra.mxu0 %v2823
        %3901 = vmatprep.subr.mxu0 0.0
        %3902 = vmatpush1.xpose.msra.mxu0 %v2826
        %3903 = vmatprep.subr.mxu0 0.0
        %3904 = vmatpush1.xpose.msra.mxu0 %v2829
        %3905 = vmatprep.subr.mxu0 0.0
        %3906 = vmatpush1.xpose.msra.mxu0 %v2832
        %3907 = vmatprep.subr.mxu0 0.0
        %3908 = vmatpush1.xpose.msra.mxu0 %v2835
        %3909 = vmatprep.subr.mxu0 0.0
        %3910 = vmatpush1.xpose.msra.mxu0 %v2838
        %3911 = vmatprep.subr.mxu0 0.0
        %3912 = vmatpush1.xpose.msra.mxu0 %v2841
        %3913 = vmatprep.subr.mxu0 0.0
        %3914 = vmatpush1.xpose.msra.mxu0 %v2844
        %3915 = vmatprep.subr.mxu0 0.0
        %3916 = vmatpush1.xpose.msra.mxu0 %v2847
        %3917 = vmatprep.mubr.f32.mxu0 0.0
        %3918 = vmatmul.mubr.f32.gmra.mrb[0].mxu0 %v2364
        %v3919 = vpop.f32.mrb[0].mxu0
        %v3920 = vadd.f32 %v2355, %v3919
        %v3921 = vpop.f32.mrb[0].mxu0
        %v3922 = vadd.f32 %v2355, %v3921
        %3923 = vmatprep.mubr.f32.mxu0 0.0
        %3924 = vmatmul.mubr.f32.gmra.mrb[0].mxu0 %v2367
        %v3925 = vpop.f32.mrb[0].mxu0
        %v3926 = vadd.f32 %v2360, %v3925
        %v3927 = vpop.f32.mrb[0].mxu0
        %v3928 = vadd.f32 %v2360, %v3927
        %3929 = vdwg.mxu0
        %3930 = vmatprep.subr.mxu0 0.0
        %3931 = vmatpush1.xpose.msra.mxu0 %v2850
        %3932 = vmatprep.subr.mxu0 0.0
        %3933 = vmatpush1.xpose.msra.mxu0 %v2853
        %3934 = vmatprep.subr.mxu0 0.0
        %3935 = vmatpush1.xpose.msra.mxu0 %v2856
        %3936 = vmatprep.subr.mxu0 0.0
        %3937 = vmatpush1.xpose.msra.mxu0 %v2859
        %3938 = vmatprep.subr.mxu0 0.0
        %3939 = vmatpush1.xpose.msra.mxu0 %v2862
        %3940 = vmatprep.subr.mxu0 0.0
        %3941 = vmatpush1.xpose.msra.mxu0 %v2865
        %3942 = vmatprep.subr.mxu0 0.0
        %3943 = vmatpush1.xpose.msra.mxu0 %v2868
        %3944 = vmatprep.subr.mxu0 0.0
        %3945 = vmatpush1.xpose.msra.mxu0 %v2871
        %3946 = vmatprep.subr.mxu0 0.0
        %3947 = vmatpush1.xpose.msra.mxu0 %v2874
        %3948 = vmatprep.subr.mxu0 0.0
        %3949 = vmatpush1.xpose.msra.mxu0 %v2877
        %3950 = vmatprep.subr.mxu0 0.0
        %3951 = vmatpush1.xpose.msra.mxu0 %v2880
        %3952 = vmatprep.subr.mxu0 0.0
        %3953 = vmatpush1.xpose.msra.mxu0 %v2883
        %3954 = vmatprep.subr.mxu0 0.0
        %3955 = vmatpush1.xpose.msra.mxu0 %v2886
        %3956 = vmatprep.subr.mxu0 0.0
        %3957 = vmatpush1.xpose.msra.mxu0 %v2889
        %3958 = vmatprep.subr.mxu0 0.0
        %3959 = vmatpush1.xpose.msra.mxu0 %v2892
        %3960 = vmatprep.subr.mxu0 0.0
        %3961 = vmatpush1.xpose.msra.mxu0 %v2895
        %3962 = vmatprep.subr.mxu0 0.0
        %3963 = vmatpush1.xpose.msra.mxu0 %v2898
        %3964 = vmatprep.subr.mxu0 0.0
        %3965 = vmatpush1.xpose.msra.mxu0 %v2901
        %3966 = vmatprep.subr.mxu0 0.0
        %3967 = vmatpush1.xpose.msra.mxu0 %v2904
        %3968 = vmatprep.subr.mxu0 0.0
        %3969 = vmatpush1.xpose.msra.mxu0 %v2907
        %3970 = vmatprep.subr.mxu0 0.0
        %3971 = vmatpush1.xpose.msra.mxu0 %v2910
        %3972 = vmatprep.subr.mxu0 0.0
        %3973 = vmatpush1.xpose.msra.mxu0 %v2913
        %3974 = vmatprep.subr.mxu0 0.0
        %3975 = vmatpush1.xpose.msra.mxu0 %v2916
        %3976 = vmatprep.subr.mxu0 0.0
        %3977 = vmatpush1.xpose.msra.mxu0 %v2919
        %3978 = vmatprep.subr.mxu0 0.0
        %3979 = vmatpush1.xpose.msra.mxu0 %v2922
        %3980 = vmatprep.subr.mxu0 0.0
        %3981 = vmatpush1.xpose.msra.mxu0 %v2925
        %3982 = vmatprep.subr.mxu0 0.0
        %3983 = vmatpush1.xpose.msra.mxu0 %v2928
        %3984 = vmatprep.subr.mxu0 0.0
        %3985 = vmatpush1.xpose.msra.mxu0 %v2931
        %3986 = vmatprep.subr.mxu0 0.0
        %3987 = vmatpush1.xpose.msra.mxu0 %v2934
        %3988 = vmatprep.subr.mxu0 0.0
        %3989 = vmatpush1.xpose.msra.mxu0 %v2937
        %3990 = vmatprep.subr.mxu0 0.0
        %3991 = vmatpush1.xpose.msra.mxu0 %v2940
        %3992 = vmatprep.subr.mxu0 0.0
        %3993 = vmatpush1.xpose.msra.mxu0 %v2943
        %3994 = vmatprep.mubr.f32.mxu0 0.0
        %3995 = vmatmul.mubr.f32.gmra.mrb[0].mxu0 %v2364
        %v3996 = vpop.f32.mrb[0].mxu0
        %v3997 = vadd.f32 %v2355, %v3996
        %v3998 = vpop.f32.mrb[0].mxu0
        %v3999 = vadd.f32 %v2355, %v3998
        %4000 = vmatprep.mubr.f32.mxu0 0.0
        %4001 = vmatmul.mubr.f32.gmra.mrb[0].mxu0 %v2367
        %v4002 = vpop.f32.mrb[0].mxu0
        %v4003 = vadd.f32 %v2360, %v4002
        %v4004 = vpop.f32.mrb[0].mxu0
        %v4005 = vadd.f32 %v2360, %v4004
        %4006 = vdwg.mxu0
        %4007 = vmatprep.subr.mxu0 0.0
        %4008 = vmatpush1.xpose.msra.mxu0 %v2946
        %4009 = vmatprep.subr.mxu0 0.0
        %4010 = vmatpush1.xpose.msra.mxu0 %v2949
        %4011 = vmatprep.subr.mxu0 0.0
        %4012 = vmatpush1.xpose.msra.mxu0 %v2952
        %4013 = vmatprep.subr.mxu0 0.0
        %4014 = vmatpush1.xpose.msra.mxu0 %v2955
        %4015 = vmatprep.subr.mxu0 0.0
        %4016 = vmatpush1.xpose.msra.mxu0 %v2958
        %4017 = vmatprep.subr.mxu0 0.0
        %4018 = vmatpush1.xpose.msra.mxu0 %v2961
        %4019 = vmatprep.subr.mxu0 0.0
        %4020 = vmatpush1.xpose.msra.mxu0 %v2964
        %4021 = vmatprep.subr.mxu0 0.0
        %4022 = vmatpush1.xpose.msra.mxu0 %v2967
        %4023 = vmatprep.subr.mxu0 0.0
        %4024 = vmatpush1.xpose.msra.mxu0 %v2970
        %4025 = vmatprep.subr.mxu0 0.0
        %4026 = vmatpush1.xpose.msra.mxu0 %v2973
        %4027 = vmatprep.subr.mxu0 0.0
        %4028 = vmatpush1.xpose.msra.mxu0 %v2976
        %4029 = vmatprep.subr.mxu0 0.0
        %4030 = vmatpush1.xpose.msra.mxu0 %v2979
        %4031 = vmatprep.subr.mxu0 0.0
        %4032 = vmatpush1.xpose.msra.mxu0 %v2982
        %4033 = vmatprep.subr.mxu0 0.0
        %4034 = vmatpush1.xpose.msra.mxu0 %v2985
        %4035 = vmatprep.subr.mxu0 0.0
        %4036 = vmatpush1.xpose.msra.mxu0 %v2988
        %4037 = vmatprep.subr.mxu0 0.0
        %4038 = vmatpush1.xpose.msra.mxu0 %v2991
        %4039 = vmatprep.subr.mxu0 0.0
        %4040 = vmatpush1.xpose.msra.mxu0 %v2994
        %4041 = vmatprep.subr.mxu0 0.0
        %4042 = vmatpush1.xpose.msra.mxu0 %v2997
        %4043 = vmatprep.subr.mxu0 0.0
        %4044 = vmatpush1.xpose.msra.mxu0 %v3000
        %4045 = vmatprep.subr.mxu0 0.0
        %4046 = vmatpush1.xpose.msra.mxu0 %v3003
        %4047 = vmatprep.subr.mxu0 0.0
        %4048 = vmatpush1.xpose.msra.mxu0 %v3006
        %4049 = vmatprep.subr.mxu0 0.0
        %4050 = vmatpush1.xpose.msra.mxu0 %v3009
        %4051 = vmatprep.subr.mxu0 0.0
        %4052 = vmatpush1.xpose.msra.mxu0 %v3012
        %4053 = vmatprep.subr.mxu0 0.0
        %4054 = vmatpush1.xpose.msra.mxu0 %v3015
        %4055 = vmatprep.subr.mxu0 0.0
        %4056 = vmatpush1.xpose.msra.mxu0 %v3018
        %4057 = vmatprep.subr.mxu0 0.0
        %4058 = vmatpush1.xpose.msra.mxu0 %v3021
        %4059 = vmatprep.subr.mxu0 0.0
        %4060 = vmatpush1.xpose.msra.mxu0 %v3024
        %4061 = vmatprep.subr.mxu0 0.0
        %4062 = vmatpush1.xpose.msra.mxu0 %v3027
        %4063 = vmatprep.subr.mxu0 0.0
        %4064 = vmatpush1.xpose.msra.mxu0 %v3030
        %4065 = vmatprep.subr.mxu0 0.0
        %4066 = vmatpush1.xpose.msra.mxu0 %v3033
        %4067 = vmatprep.subr.mxu0 0.0
        %4068 = vmatpush1.xpose.msra.mxu0 %v3036
        %4069 = vmatprep.subr.mxu0 0.0
        %4070 = vmatpush1.xpose.msra.mxu0 %v3039
        %4071 = vmatprep.mubr.f32.mxu0 0.0
        %4072 = vmatmul.mubr.f32.gmra.mrb[0].mxu0 %v2364
        %v4073 = vpop.f32.mrb[0].mxu0
        %v4074 = vadd.f32 %v2355, %v4073
        %v4075 = vpop.f32.mrb[0].mxu0
        %v4076 = vadd.f32 %v2355, %v4075
        %4077 = vmatprep.mubr.f32.mxu0 0.0
        %4078 = vmatmul.mubr.f32.gmra.mrb[0].mxu0 %v2367
        %v4079 = vpop.f32.mrb[0].mxu0
        %v4080 = vadd.f32 %v2360, %v4079
        %v4081 = vpop.f32.mrb[0].mxu0
        %v4082 = vadd.f32 %v2360, %v4081
        %4083 = vdwg.mxu0
        %4084 = vmatprep.subr.mxu0 0.0
        %4085 = vmatpush1.xpose.msra.mxu0 %v3042
        %4086 = vmatprep.subr.mxu0 0.0
        %4087 = vmatpush1.xpose.msra.mxu0 %v3045
        %4088 = vmatprep.subr.mxu0 0.0
        %4089 = vmatpush1.xpose.msra.mxu0 %v3048
        %4090 = vmatprep.subr.mxu0 0.0
        %4091 = vmatpush1.xpose.msra.mxu0 %v3051
        %4092 = vmatprep.subr.mxu0 0.0
        %4093 = vmatpush1.xpose.msra.mxu0 %v3054
        %4094 = vmatprep.subr.mxu0 0.0
        %4095 = vmatpush1.xpose.msra.mxu0 %v3057
        %4096 = vmatprep.subr.mxu0 0.0
        %4097 = vmatpush1.xpose.msra.mxu0 %v3060
        %4098 = vmatprep.subr.mxu0 0.0
        %4099 = vmatpush1.xpose.msra.mxu0 %v3063
        %4100 = vmatprep.subr.mxu0 0.0
        %4101 = vmatpush1.xpose.msra.mxu0 %v3066
        %4102 = vmatprep.subr.mxu0 0.0
        %4103 = vmatpush1.xpose.msra.mxu0 %v3069
        %4104 = vmatprep.subr.mxu0 0.0
        %4105 = vmatpush1.xpose.msra.mxu0 %v3072
        %4106 = vmatprep.subr.mxu0 0.0
        %4107 = vmatpush1.xpose.msra.mxu0 %v3075
        %4108 = vmatprep.subr.mxu0 0.0
        %4109 = vmatpush1.xpose.msra.mxu0 %v3078
        %4110 = vmatprep.subr.mxu0 0.0
        %4111 = vmatpush1.xpose.msra.mxu0 %v3081
        %4112 = vmatprep.subr.mxu0 0.0
        %4113 = vmatpush1.xpose.msra.mxu0 %v3084
        %4114 = vmatprep.subr.mxu0 0.0
        %4115 = vmatpush1.xpose.msra.mxu0 %v3087
        %4116 = vmatprep.subr.mxu0 0.0
        %4117 = vmatpush1.xpose.msra.mxu0 %v3090
        %4118 = vmatprep.subr.mxu0 0.0
        %4119 = vmatpush1.xpose.msra.mxu0 %v3093
        %4120 = vmatprep.subr.mxu0 0.0
        %4121 = vmatpush1.xpose.msra.mxu0 %v3096
        %4122 = vmatprep.subr.mxu0 0.0
        %4123 = vmatpush1.xpose.msra.mxu0 %v3099
        %4124 = vmatprep.subr.mxu0 0.0
        %4125 = vmatpush1.xpose.msra.mxu0 %v3102
        %4126 = vmatprep.subr.mxu0 0.0
        %4127 = vmatpush1.xpose.msra.mxu0 %v3105
        %4128 = vmatprep.subr.mxu0 0.0
        %4129 = vmatpush1.xpose.msra.mxu0 %v3108
        %4130 = vmatprep.subr.mxu0 0.0
        %4131 = vmatpush1.xpose.msra.mxu0 %v3111
        %4132 = vmatprep.subr.mxu0 0.0
        %4133 = vmatpush1.xpose.msra.mxu0 %v3114
        %4134 = vmatprep.subr.mxu0 0.0
        %4135 = vmatpush1.xpose.msra.mxu0 %v3117
        %4136 = vmatprep.subr.mxu0 0.0
        %4137 = vmatpush1.xpose.msra.mxu0 %v3120
        %4138 = vmatprep.subr.mxu0 0.0
        %4139 = vmatpush1.xpose.msra.mxu0 %v3123
        %4140 = vmatprep.subr.mxu0 0.0
        %4141 = vmatpush1.xpose.msra.mxu0 %v3126
        %4142 = vmatprep.subr.mxu0 0.0
        %4143 = vmatpush1.xpose.msra.mxu0 %v3129
        %4144 = vmatprep.subr.mxu0 0.0
        %4145 = vmatpush1.xpose.msra.mxu0 %v3132
        %4146 = vmatprep.subr.mxu0 0.0
        %4147 = vmatpush1.xpose.msra.mxu0 %v3135
        %4148 = vmatprep.mubr.f32.mxu0 0.0
        %4149 = vmatmul.mubr.f32.gmra.mrb[0].mxu0 %v2364
        %v4150 = vpop.f32.mrb[0].mxu0
        %v4151 = vadd.f32 %v2355, %v4150
        %v4152 = vpop.f32.mrb[0].mxu0
        %v4153 = vadd.f32 %v2355, %v4152
        %4154 = vmatprep.mubr.f32.mxu0 0.0
        %4155 = vmatmul.mubr.f32.gmra.mrb[0].mxu0 %v2367
        %v4156 = vpop.f32.mrb[0].mxu0
        %v4157 = vadd.f32 %v2360, %v4156
        %v4158 = vpop.f32.mrb[0].mxu0
        %v4159 = vadd.f32 %v2360, %v4158
        %4160 = vdwg.mxu0
        %4161 = vmatprep.subr.mxu0 0.0
        %4162 = vmatpush1.xpose.msra.mxu0 %v3138
        %4163 = vmatprep.subr.mxu0 0.0
        %4164 = vmatpush1.xpose.msra.mxu0 %v3141
        %4165 = vmatprep.subr.mxu0 0.0
        %4166 = vmatpush1.xpose.msra.mxu0 %v3144
        %4167 = vmatprep.subr.mxu0 0.0
        %4168 = vmatpush1.xpose.msra.mxu0 %v3147
        %4169 = vmatprep.subr.mxu0 0.0
        %4170 = vmatpush1.xpose.msra.mxu0 %v3150
        %4171 = vmatprep.subr.mxu0 0.0
        %4172 = vmatpush1.xpose.msra.mxu0 %v3153
        %4173 = vmatprep.subr.mxu0 0.0
        %4174 = vmatpush1.xpose.msra.mxu0 %v3156
        %4175 = vmatprep.subr.mxu0 0.0
        %4176 = vmatpush1.xpose.msra.mxu0 %v3159
        %4177 = vmatprep.subr.mxu0 0.0
        %4178 = vmatpush1.xpose.msra.mxu0 %v3162
        %4179 = vmatprep.subr.mxu0 0.0
        %4180 = vmatpush1.xpose.msra.mxu0 %v3165
        %4181 = vmatprep.subr.mxu0 0.0
        %4182 = vmatpush1.xpose.msra.mxu0 %v3168
        %4183 = vmatprep.subr.mxu0 0.0
        %4184 = vmatpush1.xpose.msra.mxu0 %v3171
        %4185 = vmatprep.subr.mxu0 0.0
        %4186 = vmatpush1.xpose.msra.mxu0 %v3174
        %4187 = vmatprep.subr.mxu0 0.0
        %4188 = vmatpush1.xpose.msra.mxu0 %v3177
        %4189 = vmatprep.subr.mxu0 0.0
        %4190 = vmatpush1.xpose.msra.mxu0 %v3180
        %4191 = vmatprep.subr.mxu0 0.0
        %4192 = vmatpush1.xpose.msra.mxu0 %v3183
        %4193 = vmatprep.subr.mxu0 0.0
        %4194 = vmatpush1.xpose.msra.mxu0 %v3186
        %4195 = vmatprep.subr.mxu0 0.0
        %4196 = vmatpush1.xpose.msra.mxu0 %v3189
        %4197 = vmatprep.subr.mxu0 0.0
        %4198 = vmatpush1.xpose.msra.mxu0 %v3192
        %4199 = vmatprep.subr.mxu0 0.0
        %4200 = vmatpush1.xpose.msra.mxu0 %v3195
        %4201 = vmatprep.subr.mxu0 0.0
        %4202 = vmatpush1.xpose.msra.mxu0 %v3198
        %4203 = vmatprep.subr.mxu0 0.0
        %4204 = vmatpush1.xpose.msra.mxu0 %v3201
        %4205 = vmatprep.subr.mxu0 0.0
        %4206 = vmatpush1.xpose.msra.mxu0 %v3204
        %4207 = vmatprep.subr.mxu0 0.0
        %4208 = vmatpush1.xpose.msra.mxu0 %v3207
        %4209 = vmatprep.subr.mxu0 0.0
        %4210 = vmatpush1.xpose.msra.mxu0 %v3210
        %4211 = vmatprep.subr.mxu0 0.0
        %4212 = vmatpush1.xpose.msra.mxu0 %v3213
        %4213 = vmatprep.subr.mxu0 0.0
        %4214 = vmatpush1.xpose.msra.mxu0 %v3216
        %4215 = vmatprep.subr.mxu0 0.0
        %4216 = vmatpush1.xpose.msra.mxu0 %v3219
        %4217 = vmatprep.subr.mxu0 0.0
        %4218 = vmatpush1.xpose.msra.mxu0 %v3222
        %4219 = vmatprep.subr.mxu0 0.0
        %4220 = vmatpush1.xpose.msra.mxu0 %v3225
        %4221 = vmatprep.subr.mxu0 0.0
        %4222 = vmatpush1.xpose.msra.mxu0 %v3228
        %4223 = vmatprep.subr.mxu0 0.0
        %4224 = vmatpush1.xpose.msra.mxu0 %v3231
        %4225 = vmatprep.mubr.f32.mxu0 0.0
        %4226 = vmatmul.mubr.f32.gmra.mrb[0].mxu0 %v2364
        %v4227 = vpop.f32.mrb[0].mxu0
        %v4228 = vadd.f32 %v2355, %v4227
        %v4229 = vpop.f32.mrb[0].mxu0
        %v4230 = vadd.f32 %v2355, %v4229
        %4231 = vmatprep.mubr.f32.mxu0 0.0
        %4232 = vmatmul.mubr.f32.gmra.mrb[0].mxu0 %v2367
        %v4233 = vpop.f32.mrb[0].mxu0
        %v4234 = vadd.f32 %v2360, %v4233
        %v4235 = vpop.f32.mrb[0].mxu0
        %v4236 = vadd.f32 %v2360, %v4235
        %4237 = vdwg.mxu0
        %4238 = vmatprep.subr.mxu0 0.0
        %4239 = vmatpush1.xpose.msra.mxu0 %v3234
        %4240 = vmatprep.subr.mxu0 0.0
        %4241 = vmatpush1.xpose.msra.mxu0 %v3237
        %4242 = vmatprep.subr.mxu0 0.0
        %4243 = vmatpush1.xpose.msra.mxu0 %v3240
        %4244 = vmatprep.subr.mxu0 0.0
        %4245 = vmatpush1.xpose.msra.mxu0 %v3243
        %4246 = vmatprep.subr.mxu0 0.0
        %4247 = vmatpush1.xpose.msra.mxu0 %v3246
        %4248 = vmatprep.subr.mxu0 0.0
        %4249 = vmatpush1.xpose.msra.mxu0 %v3249
        %4250 = vmatprep.subr.mxu0 0.0
        %4251 = vmatpush1.xpose.msra.mxu0 %v3252
        %4252 = vmatprep.subr.mxu0 0.0
        %4253 = vmatpush1.xpose.msra.mxu0 %v3255
        %4254 = vmatprep.subr.mxu0 0.0
        %4255 = vmatpush1.xpose.msra.mxu0 %v3258
        %4256 = vmatprep.subr.mxu0 0.0
        %4257 = vmatpush1.xpose.msra.mxu0 %v3261
        %4258 = vmatprep.subr.mxu0 0.0
        %4259 = vmatpush1.xpose.msra.mxu0 %v3264
        %4260 = vmatprep.subr.mxu0 0.0
        %4261 = vmatpush1.xpose.msra.mxu0 %v3267
        %4262 = vmatprep.subr.mxu0 0.0
        %4263 = vmatpush1.xpose.msra.mxu0 %v3270
        %4264 = vmatprep.subr.mxu0 0.0
        %4265 = vmatpush1.xpose.msra.mxu0 %v3273
        %4266 = vmatprep.subr.mxu0 0.0
        %4267 = vmatpush1.xpose.msra.mxu0 %v3276
        %4268 = vmatprep.subr.mxu0 0.0
        %4269 = vmatpush1.xpose.msra.mxu0 %v3279
        %4270 = vmatprep.subr.mxu0 0.0
        %4271 = vmatpush1.xpose.msra.mxu0 %v3282
        %4272 = vmatprep.subr.mxu0 0.0
        %4273 = vmatpush1.xpose.msra.mxu0 %v3285
        %4274 = vmatprep.subr.mxu0 0.0
        %4275 = vmatpush1.xpose.msra.mxu0 %v3288
        %4276 = vmatprep.subr.mxu0 0.0
        %4277 = vmatpush1.xpose.msra.mxu0 %v3291
        %4278 = vmatprep.subr.mxu0 0.0
        %4279 = vmatpush1.xpose.msra.mxu0 %v3294
        %4280 = vmatprep.subr.mxu0 0.0
        %4281 = vmatpush1.xpose.msra.mxu0 %v3297
        %4282 = vmatprep.subr.mxu0 0.0
        %4283 = vmatpush1.xpose.msra.mxu0 %v3300
        %4284 = vmatprep.subr.mxu0 0.0
        %4285 = vmatpush1.xpose.msra.mxu0 %v3303
        %4286 = vmatprep.subr.mxu0 0.0
        %4287 = vmatpush1.xpose.msra.mxu0 %v3306
        %4288 = vmatprep.subr.mxu0 0.0
        %4289 = vmatpush1.xpose.msra.mxu0 %v3309
        %4290 = vmatprep.subr.mxu0 0.0
        %4291 = vmatpush1.xpose.msra.mxu0 %v3312
        %4292 = vmatprep.subr.mxu0 0.0
        %4293 = vmatpush1.xpose.msra.mxu0 %v3315
        %4294 = vmatprep.subr.mxu0 0.0
        %4295 = vmatpush1.xpose.msra.mxu0 %v3318
        %4296 = vmatprep.subr.mxu0 0.0
        %4297 = vmatpush1.xpose.msra.mxu0 %v3321
        %4298 = vmatprep.subr.mxu0 0.0
        %4299 = vmatpush1.xpose.msra.mxu0 %v3324
        %4300 = vmatprep.subr.mxu0 0.0
        %4301 = vmatpush1.xpose.msra.mxu0 %v3327
        %4302 = vmatprep.mubr.f32.mxu0 0.0
        %4303 = vmatmul.mubr.f32.gmra.mrb[0].mxu0 %v2364
        %v4304 = vpop.f32.mrb[0].mxu0
        %v4305 = vadd.f32 %v2355, %v4304
        %v4306 = vpop.f32.mrb[0].mxu0
        %v4307 = vadd.f32 %v2355, %v4306
        %4308 = vmatprep.mubr.f32.mxu0 0.0
        %4309 = vmatmul.mubr.f32.gmra.mrb[0].mxu0 %v2367
        %v4310 = vpop.f32.mrb[0].mxu0
        %v4311 = vadd.f32 %v2360, %v4310
        %v4312 = vpop.f32.mrb[0].mxu0
        %v4313 = vadd.f32 %v2360, %v4312
        %4314 = vdwg.mxu0
        %4315 = vmatprep.subr.mxu0 0.0
        %4316 = vmatpush1.xpose.msra.mxu0 %v3330
        %4317 = vmatprep.subr.mxu0 0.0
        %4318 = vmatpush1.xpose.msra.mxu0 %v3333
        %4319 = vmatprep.subr.mxu0 0.0
        %4320 = vmatpush1.xpose.msra.mxu0 %v3336
        %4321 = vmatprep.subr.mxu0 0.0
        %4322 = vmatpush1.xpose.msra.mxu0 %v3339
        %4323 = vmatprep.subr.mxu0 0.0
        %4324 = vmatpush1.xpose.msra.mxu0 %v3342
        %4325 = vmatprep.subr.mxu0 0.0
        %4326 = vmatpush1.xpose.msra.mxu0 %v3345
        %4327 = vmatprep.subr.mxu0 0.0
        %4328 = vmatpush1.xpose.msra.mxu0 %v3348
        %4329 = vmatprep.subr.mxu0 0.0
        %4330 = vmatpush1.xpose.msra.mxu0 %v3351
        %4331 = vmatprep.subr.mxu0 0.0
        %4332 = vmatpush1.xpose.msra.mxu0 %v3354
        %4333 = vmatprep.subr.mxu0 0.0
        %4334 = vmatpush1.xpose.msra.mxu0 %v3357
        %4335 = vmatprep.subr.mxu0 0.0
        %4336 = vmatpush1.xpose.msra.mxu0 %v3360
        %4337 = vmatprep.subr.mxu0 0.0
        %4338 = vmatpush1.xpose.msra.mxu0 %v3363
        %4339 = vmatprep.subr.mxu0 0.0
        %4340 = vmatpush1.xpose.msra.mxu0 %v3366
        %4341 = vmatprep.subr.mxu0 0.0
        %4342 = vmatpush1.xpose.msra.mxu0 %v3369
        %4343 = vmatprep.subr.mxu0 0.0
        %4344 = vmatpush1.xpose.msra.mxu0 %v3372
        %4345 = vmatprep.subr.mxu0 0.0
        %4346 = vmatpush1.xpose.msra.mxu0 %v3375
        %4347 = vmatprep.subr.mxu0 0.0
        %4348 = vmatpush1.xpose.msra.mxu0 %v3378
        %4349 = vmatprep.subr.mxu0 0.0
        %4350 = vmatpush1.xpose.msra.mxu0 %v3381
        %4351 = vmatprep.subr.mxu0 0.0
        %4352 = vmatpush1.xpose.msra.mxu0 %v3384
        %4353 = vmatprep.subr.mxu0 0.0
        %4354 = vmatpush1.xpose.msra.mxu0 %v3387
        %4355 = vmatprep.subr.mxu0 0.0
        %4356 = vmatpush1.xpose.msra.mxu0 %v3390
        %4357 = vmatprep.subr.mxu0 0.0
        %4358 = vmatpush1.xpose.msra.mxu0 %v3393
        %4359 = vmatprep.subr.mxu0 0.0
        %4360 = vmatpush1.xpose.msra.mxu0 %v3396
        %4361 = vmatprep.subr.mxu0 0.0
        %4362 = vmatpush1.xpose.msra.mxu0 %v3399
        %4363 = vmatprep.subr.mxu0 0.0
        %4364 = vmatpush1.xpose.msra.mxu0 %v3402
        %4365 = vmatprep.subr.mxu0 0.0
        %4366 = vmatpush1.xpose.msra.mxu0 %v3405
        %4367 = vmatprep.subr.mxu0 0.0
        %4368 = vmatpush1.xpose.msra.mxu0 %v3408
        %4369 = vmatprep.subr.mxu0 0.0
        %4370 = vmatpush1.xpose.msra.mxu0 %v3411
        %4371 = vmatprep.subr.mxu0 0.0
        %4372 = vmatpush1.xpose.msra.mxu0 %v3414
        %4373 = vmatprep.subr.mxu0 0.0
        %4374 = vmatpush1.xpose.msra.mxu0 %v3417
        %4375 = vmatprep.subr.mxu0 0.0
        %4376 = vmatpush1.xpose.msra.mxu0 %v3420
        %4377 = vmatprep.subr.mxu0 0.0
        %4378 = vmatpush1.xpose.msra.mxu0 %v3423
        %4379 = vmatprep.mubr.f32.mxu0 0.0
        %4380 = vmatmul.mubr.f32.gmra.mrb[0].mxu0 %v2364
        %v4381 = vpop.f32.mrb[0].mxu0
        %v4382 = vadd.f32 %v2355, %v4381
        %v4383 = vpop.f32.mrb[0].mxu0
        %v4384 = vadd.f32 %v2355, %v4383
        %4385 = vmatprep.mubr.f32.mxu0 0.0
        %4386 = vmatmul.mubr.f32.gmra.mrb[0].mxu0 %v2367
        %v4387 = vpop.f32.mrb[0].mxu0
        %v4388 = vadd.f32 %v2360, %v4387
        %v4389 = vpop.f32.mrb[0].mxu0
        %v4390 = vadd.f32 %v2360, %v4389
        %4391 = vdwg.mxu0
        %4392 = vmatprep.subr.mxu0 0.0
        %4393 = vmatpush1.xpose.msra.mxu0 %v3426
        %4394 = vmatprep.subr.mxu0 0.0
        %4395 = vmatpush1.xpose.msra.mxu0 %v3429
        %4396 = vmatprep.subr.mxu0 0.0
        %4397 = vmatpush1.xpose.msra.mxu0 %v3432
        %4398 = vmatprep.subr.mxu0 0.0
        %4399 = vmatpush1.xpose.msra.mxu0 %v3435
        %4400 = vmatprep.subr.mxu0 0.0
        %4401 = vmatpush1.xpose.msra.mxu0 %v3438
        %4402 = vmatprep.subr.mxu0 0.0
        %4403 = vmatpush1.xpose.msra.mxu0 %v3441
        %4404 = vmatprep.subr.mxu0 0.0
        %4405 = vmatpush1.xpose.msra.mxu0 %v3444
        %4406 = vmatprep.subr.mxu0 0.0
        %4407 = vmatpush1.xpose.msra.mxu0 %v3447
        %4408 = vmatprep.subr.mxu0 0.0
        %4409 = vmatpush1.xpose.msra.mxu0 %v3450
        %4410 = vmatprep.subr.mxu0 0.0
        %4411 = vmatpush1.xpose.msra.mxu0 %v3453
        %4412 = vmatprep.subr.mxu0 0.0
        %4413 = vmatpush1.xpose.msra.mxu0 %v3456
        %4414 = vmatprep.subr.mxu0 0.0
        %4415 = vmatpush1.xpose.msra.mxu0 %v3459
        %4416 = vmatprep.subr.mxu0 0.0
        %4417 = vmatpush1.xpose.msra.mxu0 %v3462
        %4418 = vmatprep.subr.mxu0 0.0
        %4419 = vmatpush1.xpose.msra.mxu0 %v3465
        %4420 = vmatprep.subr.mxu0 0.0
        %4421 = vmatpush1.xpose.msra.mxu0 %v3468
        %4422 = vmatprep.subr.mxu0 0.0
        %4423 = vmatpush1.xpose.msra.mxu0 %v3471
        %4424 = vmatprep.subr.mxu0 0.0
        %4425 = vmatpush1.xpose.msra.mxu0 %v3474
        %4426 = vmatprep.subr.mxu0 0.0
        %4427 = vmatpush1.xpose.msra.mxu0 %v3477
        %4428 = vmatprep.subr.mxu0 0.0
        %4429 = vmatpush1.xpose.msra.mxu0 %v3480
        %4430 = vmatprep.subr.mxu0 0.0
        %4431 = vmatpush1.xpose.msra.mxu0 %v3483
        %4432 = vmatprep.subr.mxu0 0.0
        %4433 = vmatpush1.xpose.msra.mxu0 %v3486
        %4434 = vmatprep.subr.mxu0 0.0
        %4435 = vmatpush1.xpose.msra.mxu0 %v3489
        %4436 = vmatprep.subr.mxu0 0.0
        %4437 = vmatpush1.xpose.msra.mxu0 %v3492
        %4438 = vmatprep.subr.mxu0 0.0
        %4439 = vmatpush1.xpose.msra.mxu0 %v3495
        %4440 = vmatprep.subr.mxu0 0.0
        %4441 = vmatpush1.xpose.msra.mxu0 %v3498
        %4442 = vmatprep.subr.mxu0 0.0
        %4443 = vmatpush1.xpose.msra.mxu0 %v3501
        %4444 = vmatprep.subr.mxu0 0.0
        %4445 = vmatpush1.xpose.msra.mxu0 %v3504
        %4446 = vmatprep.subr.mxu0 0.0
        %4447 = vmatpush1.xpose.msra.mxu0 %v3507
        %4448 = vmatprep.subr.mxu0 0.0
        %4449 = vmatpush1.xpose.msra.mxu0 %v3510
        %4450 = vmatprep.subr.mxu0 0.0
        %4451 = vmatpush1.xpose.msra.mxu0 %v3513
        %4452 = vmatprep.subr.mxu0 0.0
        %4453 = vmatpush1.xpose.msra.mxu0 %v3516
        %4454 = vmatprep.subr.mxu0 0.0
        %4455 = vmatpush1.xpose.msra.mxu0 %v3519
        %4456 = vmatprep.mubr.f32.mxu0 0.0
        %4457 = vmatmul.mubr.f32.gmra.mrb[0].mxu0 %v2364
        %v4458 = vpop.f32.mrb[0].mxu0
        %v4459 = vadd.f32 %v2355, %v4458
        %v4460 = vpop.f32.mrb[0].mxu0
        %v4461 = vadd.f32 %v2355, %v4460
        %4462 = vmatprep.mubr.f32.mxu0 0.0
        %4463 = vmatmul.mubr.f32.gmra.mrb[0].mxu0 %v2367
        %v4464 = vpop.f32.mrb[0].mxu0
        %v4465 = vadd.f32 %v2360, %v4464
        %v4466 = vpop.f32.mrb[0].mxu0
        %v4467 = vadd.f32 %v2360, %v4466
        %4468 = vdwg.mxu0
        %4469 = vmatprep.subr.mxu0 0.0
        %4470 = vmatpush1.xpose.msra.mxu0 %v3522
        %4471 = vmatprep.subr.mxu0 0.0
        %4472 = vmatpush1.xpose.msra.mxu0 %v3525
        %4473 = vmatprep.subr.mxu0 0.0
        %4474 = vmatpush1.xpose.msra.mxu0 %v3528
        %4475 = vmatprep.subr.mxu0 0.0
        %4476 = vmatpush1.xpose.msra.mxu0 %v3531
        %4477 = vmatprep.subr.mxu0 0.0
        %4478 = vmatpush1.xpose.msra.mxu0 %v3534
        %4479 = vmatprep.subr.mxu0 0.0
        %4480 = vmatpush1.xpose.msra.mxu0 %v3537
        %4481 = vmatprep.subr.mxu0 0.0
        %4482 = vmatpush1.xpose.msra.mxu0 %v3540
        %4483 = vmatprep.subr.mxu0 0.0
        %4484 = vmatpush1.xpose.msra.mxu0 %v3543
        %4485 = vmatprep.subr.mxu0 0.0
        %4486 = vmatpush1.xpose.msra.mxu0 0.0
        %4487 = vmatprep.subr.mxu0 0.0
        %4488 = vmatpush1.xpose.msra.mxu0 0.0
        %4489 = vmatprep.subr.mxu0 0.0
        %4490 = vmatpush1.xpose.msra.mxu0 0.0
        %4491 = vmatprep.subr.mxu0 0.0
        %4492 = vmatpush1.xpose.msra.mxu0 0.0
        %4493 = vmatprep.subr.mxu0 0.0
        %4494 = vmatpush1.xpose.msra.mxu0 0.0
        %4495 = vmatprep.subr.mxu0 0.0
        %4496 = vmatpush1.xpose.msra.mxu0 0.0
        %4497 = vmatprep.subr.mxu0 0.0
        %4498 = vmatpush1.xpose.msra.mxu0 0.0
        %4499 = vmatprep.subr.mxu0 0.0
        %4500 = vmatpush1.xpose.msra.mxu0 0.0
        %4501 = vmatprep.subr.mxu0 0.0
        %4502 = vmatpush1.xpose.msra.mxu0 0.0
        %4503 = vmatprep.subr.mxu0 0.0
        %4504 = vmatpush1.xpose.msra.mxu0 0.0
        %4505 = vmatprep.subr.mxu0 0.0
        %4506 = vmatpush1.xpose.msra.mxu0 0.0
        %4507 = vmatprep.subr.mxu0 0.0
        %4508 = vmatpush1.xpose.msra.mxu0 0.0
        %4509 = vmatprep.subr.mxu0 0.0
        %4510 = vmatpush1.xpose.msra.mxu0 0.0
        %4511 = vmatprep.subr.mxu0 0.0
        %4512 = vmatpush1.xpose.msra.mxu0 0.0
        %4513 = vmatprep.subr.mxu0 0.0
        %4514 = vmatpush1.xpose.msra.mxu0 0.0
        %4515 = vmatprep.subr.mxu0 0.0
        %4516 = vmatpush1.xpose.msra.mxu0 0.0
        %4517 = vmatprep.subr.mxu0 0.0
        %4518 = vmatpush1.xpose.msra.mxu0 0.0
        %4519 = vmatprep.subr.mxu0 0.0
        %4520 = vmatpush1.xpose.msra.mxu0 0.0
        %4521 = vmatprep.subr.mxu0 0.0
        %4522 = vmatpush1.xpose.msra.mxu0 0.0
        %4523 = vmatprep.subr.mxu0 0.0
        %4524 = vmatpush1.xpose.msra.mxu0 0.0
        %4525 = vmatprep.subr.mxu0 0.0
        %4526 = vmatpush1.xpose.msra.mxu0 0.0
        %4527 = vmatprep.subr.mxu0 0.0
        %4528 = vmatpush1.xpose.msra.mxu0 0.0
        %4529 = vmatprep.subr.mxu0 0.0
        %4530 = vmatpush1.xpose.msra.mxu0 0.0
        %4531 = vmatprep.subr.mxu0 0.0
        %4532 = vmatpush1.xpose.msra.mxu0 0.0
        %4533 = vmatprep.mubr.f32.mxu0 0.0
        %4534 = vmatmul.mubr.f32.gmra.mrb[0].mxu0 %v2364
        %v4535 = vpop.f32.mrb[0].mxu0
        %v4536 = vadd.f32 %v2355, %v4535
        %v4537 = vpop.f32.mrb[0].mxu0
        %4538 = vmatprep.mubr.f32.mxu0 0.0
        %4539 = vmatmul.mubr.f32.gmra.mrb[0].mxu0 %v2367
        %v4540 = vpop.f32.mrb[0].mxu0
        %v4541 = vadd.f32 %v2360, %v4540
        %v4542 = vpop.f32.mrb[0].mxu0
        %4543 = vdwg.mxu0
        %v4544 = vmul.f32 %v3612, 0.70710677
        %v4545 = vmul.f32 %v3614, 0.70710677
        %v4546 = vmul.f32 %v3689, 0.70710677
        %v4547 = vmul.f32 %v3691, 0.70710677
        %v4548 = vmul.f32 %v3766, 0.70710677
        %v4549 = vmul.f32 %v3768, 0.70710677
        %v4550 = vmul.f32 %v3843, 0.70710677
        %v4551 = vmul.f32 %v3845, 0.70710677
        %v4552 = vmul.f32 %v3920, 0.70710677
        %v4553 = vmul.f32 %v3922, 0.70710677
        %v4554 = vmul.f32 %v3997, 0.70710677
        %v4555 = vmul.f32 %v3999, 0.70710677
        %v4556 = vmul.f32 %v4074, 0.70710677
        %v4557 = vmul.f32 %v4076, 0.70710677
        %v4558 = vmul.f32 %v4151, 0.70710677
        %v4559 = vmul.f32 %v4153, 0.70710677
        %v4560 = vmul.f32 %v4228, 0.70710677
        %v4561 = vmul.f32 %v4230, 0.70710677
        %v4562 = vmul.f32 %v4305, 0.70710677
        %v4563 = vmul.f32 %v4307, 0.70710677
        %v4564 = vmul.f32 %v4382, 0.70710677
        %v4565 = vmul.f32 %v4384, 0.70710677
        %v4566 = vmul.f32 %v4459, 0.70710677
        %v4567 = vmul.f32 %v4461, 0.70710677
        %v4568 = vmul.f32 %v4536, 0.70710677
        %v4569 = vmul.f32 %v3618, 0.70710677
        %v4570 = vmul.f32 %v3620, 0.70710677
        %v4571 = vmul.f32 %v3695, 0.70710677
        %v4572 = vmul.f32 %v3697, 0.70710677
        %v4573 = vmul.f32 %v3772, 0.70710677
        %v4574 = vmul.f32 %v3774, 0.70710677
        %v4575 = vmul.f32 %v3849, 0.70710677
        %v4576 = vmul.f32 %v3851, 0.70710677
        %v4577 = vmul.f32 %v3926, 0.70710677
        %v4578 = vmul.f32 %v3928, 0.70710677
        %v4579 = vmul.f32 %v4003, 0.70710677
        %v4580 = vmul.f32 %v4005, 0.70710677
        %v4581 = vmul.f32 %v4080, 0.70710677
        %v4582 = vmul.f32 %v4082, 0.70710677
        %v4583 = vmul.f32 %v4157, 0.70710677
        %v4584 = vmul.f32 %v4159, 0.70710677
        %v4585 = vmul.f32 %v4234, 0.70710677
        %v4586 = vmul.f32 %v4236, 0.70710677
        %v4587 = vmul.f32 %v4311, 0.70710677
        %v4588 = vmul.f32 %v4313, 0.70710677
        %v4589 = vmul.f32 %v4388, 0.70710677
        %v4590 = vmul.f32 %v4390, 0.70710677
        %v4591 = vmul.f32 %v4465, 0.70710677
        %v4592 = vmul.f32 %v4467, 0.70710677
        %v4593 = vmul.f32 %v4541, 0.70710677
        %v4594 = vand.u32 2147483647, %v4544
        %v4595 = vand.u32 2147483647, %v4545
        %v4596 = vand.u32 2147483647, %v4546
        %v4597 = vand.u32 2147483647, %v4547
        %v4598 = vand.u32 2147483647, %v4548
        %v4599 = vand.u32 2147483647, %v4549
        %v4600 = vand.u32 2147483647, %v4550
        %v4601 = vand.u32 2147483647, %v4551
        %v4602 = vand.u32 2147483647, %v4552
        %v4603 = vand.u32 2147483647, %v4553
        %v4604 = vand.u32 2147483647, %v4554
        %v4605 = vand.u32 2147483647, %v4555
        %v4606 = vand.u32 2147483647, %v4556
        %v4607 = vand.u32 2147483647, %v4557
        %v4608 = vand.u32 2147483647, %v4558
        %v4609 = vand.u32 2147483647, %v4559
        %v4610 = vand.u32 2147483647, %v4560
        %v4611 = vand.u32 2147483647, %v4561
        %v4612 = vand.u32 2147483647, %v4562
        %v4613 = vand.u32 2147483647, %v4563
        %v4614 = vand.u32 2147483647, %v4564
        %v4615 = vand.u32 2147483647, %v4565
        %v4616 = vand.u32 2147483647, %v4566
        %v4617 = vand.u32 2147483647, %v4567
        %v4618 = vand.u32 2147483647, %v4568
        %v4619 = vand.u32 2147483647, %v4569
        %v4620 = vand.u32 2147483647, %v4570
        %v4621 = vand.u32 2147483647, %v4571
        %v4622 = vand.u32 2147483647, %v4572
        %v4623 = vand.u32 2147483647, %v4573
        %v4624 = vand.u32 2147483647, %v4574
        %v4625 = vand.u32 2147483647, %v4575
        %v4626 = vand.u32 2147483647, %v4576
        %v4627 = vand.u32 2147483647, %v4577
        %v4628 = vand.u32 2147483647, %v4578
        %v4629 = vand.u32 2147483647, %v4579
        %v4630 = vand.u32 2147483647, %v4580
        %v4631 = vand.u32 2147483647, %v4581
        %v4632 = vand.u32 2147483647, %v4582
        %v4633 = vand.u32 2147483647, %v4583
        %v4634 = vand.u32 2147483647, %v4584
        %v4635 = vand.u32 2147483647, %v4585
        %v4636 = vand.u32 2147483647, %v4586
        %v4637 = vand.u32 2147483647, %v4587
        %v4638 = vand.u32 2147483647, %v4588
        %v4639 = vand.u32 2147483647, %v4589
        %v4640 = vand.u32 2147483647, %v4590
        %v4641 = vand.u32 2147483647, %v4591
        %v4642 = vand.u32 2147483647, %v4592
        %v4643 = vand.u32 2147483647, %v4593
        %v4644 = vmul.f32 %v4594, 0.3275911
        %v4645 = vmul.f32 %v4595, 0.3275911
        %v4646 = vmul.f32 %v4596, 0.3275911
        %v4647 = vmul.f32 %v4597, 0.3275911
        %v4648 = vmul.f32 %v4598, 0.3275911
        %v4649 = vmul.f32 %v4599, 0.3275911
        %v4650 = vmul.f32 %v4600, 0.3275911
        %v4651 = vmul.f32 %v4601, 0.3275911
        %v4652 = vmul.f32 %v4602, 0.3275911
        %v4653 = vmul.f32 %v4603, 0.3275911
        %v4654 = vmul.f32 %v4604, 0.3275911
        %v4655 = vmul.f32 %v4605, 0.3275911
        %v4656 = vmul.f32 %v4606, 0.3275911
        %v4657 = vmul.f32 %v4607, 0.3275911
        %v4658 = vmul.f32 %v4608, 0.3275911
        %v4659 = vmul.f32 %v4609, 0.3275911
        %v4660 = vmul.f32 %v4610, 0.3275911
        %v4661 = vmul.f32 %v4611, 0.3275911
        %v4662 = vmul.f32 %v4612, 0.3275911
        %v4663 = vmul.f32 %v4613, 0.3275911
        %v4664 = vmul.f32 %v4614, 0.3275911
        %v4665 = vmul.f32 %v4615, 0.3275911
        %v4666 = vmul.f32 %v4616, 0.3275911
        %v4667 = vmul.f32 %v4617, 0.3275911
        %v4668 = vmul.f32 %v4618, 0.3275911
        %v4669 = vmul.f32 %v4619, 0.3275911
        %v4670 = vmul.f32 %v4620, 0.3275911
        %v4671 = vmul.f32 %v4621, 0.3275911
        %v4672 = vmul.f32 %v4622, 0.3275911
        %v4673 = vmul.f32 %v4623, 0.3275911
        %v4674 = vmul.f32 %v4624, 0.3275911
        %v4675 = vmul.f32 %v4625, 0.3275911
        %v4676 = vmul.f32 %v4626, 0.3275911
        %v4677 = vmul.f32 %v4627, 0.3275911
        %v4678 = vmul.f32 %v4628, 0.3275911
        %v4679 = vmul.f32 %v4629, 0.3275911
        %v4680 = vmul.f32 %v4630, 0.3275911
        %v4681 = vmul.f32 %v4631, 0.3275911
        %v4682 = vmul.f32 %v4632, 0.3275911
        %v4683 = vmul.f32 %v4633, 0.3275911
        %v4684 = vmul.f32 %v4634, 0.3275911
        %v4685 = vmul.f32 %v4635, 0.3275911
        %v4686 = vmul.f32 %v4636, 0.3275911
        %v4687 = vmul.f32 %v4637, 0.3275911
        %v4688 = vmul.f32 %v4638, 0.3275911
        %v4689 = vmul.f32 %v4639, 0.3275911
        %v4690 = vmul.f32 %v4640, 0.3275911
        %v4691 = vmul.f32 %v4641, 0.3275911
        %v4692 = vmul.f32 %v4642, 0.3275911
        %v4693 = vmul.f32 %v4643, 0.3275911
        %v4694 = vadd.f32 %v4644, 1.0
        %v4695 = vadd.f32 %v4645, 1.0
        %v4696 = vadd.f32 %v4646, 1.0
        %v4697 = vadd.f32 %v4647, 1.0
        %v4698 = vadd.f32 %v4648, 1.0
        %v4699 = vadd.f32 %v4649, 1.0
        %v4700 = vadd.f32 %v4650, 1.0
        %v4701 = vadd.f32 %v4651, 1.0
        %v4702 = vadd.f32 %v4652, 1.0
        %v4703 = vadd.f32 %v4653, 1.0
        %v4704 = vadd.f32 %v4654, 1.0
        %v4705 = vadd.f32 %v4655, 1.0
        %v4706 = vadd.f32 %v4656, 1.0
        %v4707 = vadd.f32 %v4657, 1.0
        %v4708 = vadd.f32 %v4658, 1.0
        %v4709 = vadd.f32 %v4659, 1.0
        %v4710 = vadd.f32 %v4660, 1.0
        %v4711 = vadd.f32 %v4661, 1.0
        %v4712 = vadd.f32 %v4662, 1.0
        %v4713 = vadd.f32 %v4663, 1.0
        %v4714 = vadd.f32 %v4664, 1.0
        %v4715 = vadd.f32 %v4665, 1.0
        %v4716 = vadd.f32 %v4666, 1.0
        %v4717 = vadd.f32 %v4667, 1.0
        %v4718 = vadd.f32 %v4668, 1.0
        %v4719 = vadd.f32 %v4669, 1.0
        %v4720 = vadd.f32 %v4670, 1.0
        %v4721 = vadd.f32 %v4671, 1.0
        %v4722 = vadd.f32 %v4672, 1.0
        %v4723 = vadd.f32 %v4673, 1.0
        %v4724 = vadd.f32 %v4674, 1.0
        %v4725 = vadd.f32 %v4675, 1.0
        %v4726 = vadd.f32 %v4676, 1.0
        %v4727 = vadd.f32 %v4677, 1.0
        %v4728 = vadd.f32 %v4678, 1.0
        %v4729 = vadd.f32 %v4679, 1.0
        %v4730 = vadd.f32 %v4680, 1.0
        %v4731 = vadd.f32 %v4681, 1.0
        %v4732 = vadd.f32 %v4682, 1.0
        %v4733 = vadd.f32 %v4683, 1.0
        %v4734 = vadd.f32 %v4684, 1.0
        %v4735 = vadd.f32 %v4685, 1.0
        %v4736 = vadd.f32 %v4686, 1.0
        %v4737 = vadd.f32 %v4687, 1.0
        %v4738 = vadd.f32 %v4688, 1.0
        %v4739 = vadd.f32 %v4689, 1.0
        %v4740 = vadd.f32 %v4690, 1.0
        %v4741 = vadd.f32 %v4691, 1.0
        %v4742 = vadd.f32 %v4692, 1.0
        %v4743 = vadd.f32 %v4693, 1.0
        %v4744 = vrcp.pop %v4694
        %v4745 = vmul.f32 1.0, %v4744
        %v4746 = vrcp.pop %v4695
        %v4747 = vmul.f32 1.0, %v4746
        %v4748 = vrcp.pop %v4696
        %v4749 = vmul.f32 1.0, %v4748
        %v4750 = vrcp.pop %v4697
        %v4751 = vmul.f32 1.0, %v4750
        %v4752 = vrcp.pop %v4698
        %v4753 = vmul.f32 1.0, %v4752
        %v4754 = vrcp.pop %v4699
        %v4755 = vmul.f32 1.0, %v4754
        %v4756 = vrcp.pop %v4700
        %v4757 = vmul.f32 1.0, %v4756
        %v4758 = vrcp.pop %v4701
        %v4759 = vmul.f32 1.0, %v4758
        %v4760 = vrcp.pop %v4702
        %v4761 = vmul.f32 1.0, %v4760
        %v4762 = vrcp.pop %v4703
        %v4763 = vmul.f32 1.0, %v4762
        %v4764 = vrcp.pop %v4704
        %v4765 = vmul.f32 1.0, %v4764
        %v4766 = vrcp.pop %v4705
        %v4767 = vmul.f32 1.0, %v4766
        %v4768 = vrcp.pop %v4706
        %v4769 = vmul.f32 1.0, %v4768
        %v4770 = vrcp.pop %v4707
        %v4771 = vmul.f32 1.0, %v4770
        %v4772 = vrcp.pop %v4708
        %v4773 = vmul.f32 1.0, %v4772
        %v4774 = vrcp.pop %v4709
        %v4775 = vmul.f32 1.0, %v4774
        %v4776 = vrcp.pop %v4710
        %v4777 = vmul.f32 1.0, %v4776
        %v4778 = vrcp.pop %v4711
        %v4779 = vmul.f32 1.0, %v4778
        %v4780 = vrcp.pop %v4712
        %v4781 = vmul.f32 1.0, %v4780
        %v4782 = vrcp.pop %v4713
        %v4783 = vmul.f32 1.0, %v4782
        %v4784 = vrcp.pop %v4714
        %v4785 = vmul.f32 1.0, %v4784
        %v4786 = vrcp.pop %v4715
        %v4787 = vmul.f32 1.0, %v4786
        %v4788 = vrcp.pop %v4716
        %v4789 = vmul.f32 1.0, %v4788
        %v4790 = vrcp.pop %v4717
        %v4791 = vmul.f32 1.0, %v4790
        %v4792 = vrcp.pop %v4718
        %v4793 = vmul.f32 1.0, %v4792
        %v4794 = vrcp.pop %v4719
        %v4795 = vmul.f32 1.0, %v4794
        %v4796 = vrcp.pop %v4720
        %v4797 = vmul.f32 1.0, %v4796
        %v4798 = vrcp.pop %v4721
        %v4799 = vmul.f32 1.0, %v4798
        %v4800 = vrcp.pop %v4722
        %v4801 = vmul.f32 1.0, %v4800
        %v4802 = vrcp.pop %v4723
        %v4803 = vmul.f32 1.0, %v4802
        %v4804 = vrcp.pop %v4724
        %v4805 = vmul.f32 1.0, %v4804
        %v4806 = vrcp.pop %v4725
        %v4807 = vmul.f32 1.0, %v4806
        %v4808 = vrcp.pop %v4726
        %v4809 = vmul.f32 1.0, %v4808
        %v4810 = vrcp.pop %v4727
        %v4811 = vmul.f32 1.0, %v4810
        %v4812 = vrcp.pop %v4728
        %v4813 = vmul.f32 1.0, %v4812
        %v4814 = vrcp.pop %v4729
        %v4815 = vmul.f32 1.0, %v4814
        %v4816 = vrcp.pop %v4730
        %v4817 = vmul.f32 1.0, %v4816
        %v4818 = vrcp.pop %v4731
        %v4819 = vmul.f32 1.0, %v4818
        %v4820 = vrcp.pop %v4732
        %v4821 = vmul.f32 1.0, %v4820
        %v4822 = vrcp.pop %v4733
        %v4823 = vmul.f32 1.0, %v4822
        %v4824 = vrcp.pop %v4734
        %v4825 = vmul.f32 1.0, %v4824
        %v4826 = vrcp.pop %v4735
        %v4827 = vmul.f32 1.0, %v4826
        %v4828 = vrcp.pop %v4736
        %v4829 = vmul.f32 1.0, %v4828
        %v4830 = vrcp.pop %v4737
        %v4831 = vmul.f32 1.0, %v4830
        %v4832 = vrcp.pop %v4738
        %v4833 = vmul.f32 1.0, %v4832
        %v4834 = vrcp.pop %v4739
        %v4835 = vmul.f32 1.0, %v4834
        %v4836 = vrcp.pop %v4740
        %v4837 = vmul.f32 1.0, %v4836
        %v4838 = vrcp.pop %v4741
        %v4839 = vmul.f32 1.0, %v4838
        %v4840 = vrcp.pop %v4742
        %v4841 = vmul.f32 1.0, %v4840
        %v4842 = vrcp.pop %v4743
        %v4843 = vmul.f32 1.0, %v4842
        %v4844 = vmul.f32 %v4745, 1.0614054
        %v4845 = vmul.f32 %v4747, 1.0614054
        %v4846 = vmul.f32 %v4749, 1.0614054
        %v4847 = vmul.f32 %v4751, 1.0614054
        %v4848 = vmul.f32 %v4753, 1.0614054
        %v4849 = vmul.f32 %v4755, 1.0614054
        %v4850 = vmul.f32 %v4757, 1.0614054
        %v4851 = vmul.f32 %v4759, 1.0614054
        %v4852 = vmul.f32 %v4761, 1.0614054
        %v4853 = vmul.f32 %v4763, 1.0614054
        %v4854 = vmul.f32 %v4765, 1.0614054
        %v4855 = vmul.f32 %v4767, 1.0614054
        %v4856 = vmul.f32 %v4769, 1.0614054
        %v4857 = vmul.f32 %v4771, 1.0614054
        %v4858 = vmul.f32 %v4773, 1.0614054
        %v4859 = vmul.f32 %v4775, 1.0614054
        %v4860 = vmul.f32 %v4777, 1.0614054
        %v4861 = vmul.f32 %v4779, 1.0614054
        %v4862 = vmul.f32 %v4781, 1.0614054
        %v4863 = vmul.f32 %v4783, 1.0614054
        %v4864 = vmul.f32 %v4785, 1.0614054
        %v4865 = vmul.f32 %v4787, 1.0614054
        %v4866 = vmul.f32 %v4789, 1.0614054
        %v4867 = vmul.f32 %v4791, 1.0614054
        %v4868 = vmul.f32 %v4793, 1.0614054
        %v4869 = vmul.f32 %v4795, 1.0614054
        %v4870 = vmul.f32 %v4797, 1.0614054
        %v4871 = vmul.f32 %v4799, 1.0614054
        %v4872 = vmul.f32 %v4801, 1.0614054
        %v4873 = vmul.f32 %v4803, 1.0614054
        %v4874 = vmul.f32 %v4805, 1.0614054
        %v4875 = vmul.f32 %v4807, 1.0614054
        %v4876 = vmul.f32 %v4809, 1.0614054
        %v4877 = vmul.f32 %v4811, 1.0614054
        %v4878 = vmul.f32 %v4813, 1.0614054
        %v4879 = vmul.f32 %v4815, 1.0614054
        %v4880 = vmul.f32 %v4817, 1.0614054
        %v4881 = vmul.f32 %v4819, 1.0614054
        %v4882 = vmul.f32 %v4821, 1.0614054
        %v4883 = vmul.f32 %v4823, 1.0614054
        %v4884 = vmul.f32 %v4825, 1.0614054
        %v4885 = vmul.f32 %v4827, 1.0614054
        %v4886 = vmul.f32 %v4829, 1.0614054
        %v4887 = vmul.f32 %v4831, 1.0614054
        %v4888 = vmul.f32 %v4833, 1.0614054
        %v4889 = vmul.f32 %v4835, 1.0614054
        %v4890 = vmul.f32 %v4837, 1.0614054
        %v4891 = vmul.f32 %v4839, 1.0614054
        %v4892 = vmul.f32 %v4841, 1.0614054
        %v4893 = vmul.f32 %v4843, 1.0614054
        %v4894 = vadd.f32 %v4844, -1.4531521
        %v4895 = vadd.f32 %v4845, -1.4531521
        %v4896 = vadd.f32 %v4846, -1.4531521
        %v4897 = vadd.f32 %v4847, -1.4531521
        %v4898 = vadd.f32 %v4848, -1.4531521
        %v4899 = vadd.f32 %v4849, -1.4531521
        %v4900 = vadd.f32 %v4850, -1.4531521
        %v4901 = vadd.f32 %v4851, -1.4531521
        %v4902 = vadd.f32 %v4852, -1.4531521
        %v4903 = vadd.f32 %v4853, -1.4531521
        %v4904 = vadd.f32 %v4854, -1.4531521
        %v4905 = vadd.f32 %v4855, -1.4531521
        %v4906 = vadd.f32 %v4856, -1.4531521
        %v4907 = vadd.f32 %v4857, -1.4531521
        %v4908 = vadd.f32 %v4858, -1.4531521
        %v4909 = vadd.f32 %v4859, -1.4531521
        %v4910 = vadd.f32 %v4860, -1.4531521
        %v4911 = vadd.f32 %v4861, -1.4531521
        %v4912 = vadd.f32 %v4862, -1.4531521
        %v4913 = vadd.f32 %v4863, -1.4531521
        %v4914 = vadd.f32 %v4864, -1.4531521
        %v4915 = vadd.f32 %v4865, -1.4531521
        %v4916 = vadd.f32 %v4866, -1.4531521
        %v4917 = vadd.f32 %v4867, -1.4531521
        %v4918 = vadd.f32 %v4868, -1.4531521
        %v4919 = vadd.f32 %v4869, -1.4531521
        %v4920 = vadd.f32 %v4870, -1.4531521
        %v4921 = vadd.f32 %v4871, -1.4531521
        %v4922 = vadd.f32 %v4872, -1.4531521
        %v4923 = vadd.f32 %v4873, -1.4531521
        %v4924 = vadd.f32 %v4874, -1.4531521
        %v4925 = vadd.f32 %v4875, -1.4531521
        %v4926 = vadd.f32 %v4876, -1.4531521
        %v4927 = vadd.f32 %v4877, -1.4531521
        %v4928 = vadd.f32 %v4878, -1.4531521
        %v4929 = vadd.f32 %v4879, -1.4531521
        %v4930 = vadd.f32 %v4880, -1.4531521
        %v4931 = vadd.f32 %v4881, -1.4531521
        %v4932 = vadd.f32 %v4882, -1.4531521
        %v4933 = vadd.f32 %v4883, -1.4531521
        %v4934 = vadd.f32 %v4884, -1.4531521
        %v4935 = vadd.f32 %v4885, -1.4531521
        %v4936 = vadd.f32 %v4886, -1.4531521
        %v4937 = vadd.f32 %v4887, -1.4531521
        %v4938 = vadd.f32 %v4888, -1.4531521
        %v4939 = vadd.f32 %v4889, -1.4531521
        %v4940 = vadd.f32 %v4890, -1.4531521
        %v4941 = vadd.f32 %v4891, -1.4531521
        %v4942 = vadd.f32 %v4892, -1.4531521
        %v4943 = vadd.f32 %v4893, -1.4531521
        %v4944 = vmul.f32 %v4745, %v4894
        %v4945 = vmul.f32 %v4747, %v4895
        %v4946 = vmul.f32 %v4749, %v4896
        %v4947 = vmul.f32 %v4751, %v4897
        %v4948 = vmul.f32 %v4753, %v4898
        %v4949 = vmul.f32 %v4755, %v4899
        %v4950 = vmul.f32 %v4757, %v4900
        %v4951 = vmul.f32 %v4759, %v4901
        %v4952 = vmul.f32 %v4761, %v4902
        %v4953 = vmul.f32 %v4763, %v4903
        %v4954 = vmul.f32 %v4765, %v4904
        %v4955 = vmul.f32 %v4767, %v4905
        %v4956 = vmul.f32 %v4769, %v4906
        %v4957 = vmul.f32 %v4771, %v4907
        %v4958 = vmul.f32 %v4773, %v4908
        %v4959 = vmul.f32 %v4775, %v4909
        %v4960 = vmul.f32 %v4777, %v4910
        %v4961 = vmul.f32 %v4779, %v4911
        %v4962 = vmul.f32 %v4781, %v4912
        %v4963 = vmul.f32 %v4783, %v4913
        %v4964 = vmul.f32 %v4785, %v4914
        %v4965 = vmul.f32 %v4787, %v4915
        %v4966 = vmul.f32 %v4789, %v4916
        %v4967 = vmul.f32 %v4791, %v4917
        %v4968 = vmul.f32 %v4793, %v4918
        %v4969 = vmul.f32 %v4795, %v4919
        %v4970 = vmul.f32 %v4797, %v4920
        %v4971 = vmul.f32 %v4799, %v4921
        %v4972 = vmul.f32 %v4801, %v4922
        %v4973 = vmul.f32 %v4803, %v4923
        %v4974 = vmul.f32 %v4805, %v4924
        %v4975 = vmul.f32 %v4807, %v4925
        %v4976 = vmul.f32 %v4809, %v4926
        %v4977 = vmul.f32 %v4811, %v4927
        %v4978 = vmul.f32 %v4813, %v4928
        %v4979 = vmul.f32 %v4815, %v4929
        %v4980 = vmul.f32 %v4817, %v4930
        %v4981 = vmul.f32 %v4819, %v4931
        %v4982 = vmul.f32 %v4821, %v4932
        %v4983 = vmul.f32 %v4823, %v4933
        %v4984 = vmul.f32 %v4825, %v4934
        %v4985 = vmul.f32 %v4827, %v4935
        %v4986 = vmul.f32 %v4829, %v4936
        %v4987 = vmul.f32 %v4831, %v4937
        %v4988 = vmul.f32 %v4833, %v4938
        %v4989 = vmul.f32 %v4835, %v4939
        %v4990 = vmul.f32 %v4837, %v4940
        %v4991 = vmul.f32 %v4839, %v4941
        %v4992 = vmul.f32 %v4841, %v4942
        %v4993 = vmul.f32 %v4843, %v4943
        %v4994 = vadd.f32 %v4944, 1.4214138
        %v4995 = vadd.f32 %v4945, 1.4214138
        %v4996 = vadd.f32 %v4946, 1.4214138
        %v4997 = vadd.f32 %v4947, 1.4214138
        %v4998 = vadd.f32 %v4948, 1.4214138
        %v4999 = vadd.f32 %v4949, 1.4214138
        %v5000 = vadd.f32 %v4950, 1.4214138
        %v5001 = vadd.f32 %v4951, 1.4214138
        %v5002 = vadd.f32 %v4952, 1.4214138
        %v5003 = vadd.f32 %v4953, 1.4214138
        %v5004 = vadd.f32 %v4954, 1.4214138
        %v5005 = vadd.f32 %v4955, 1.4214138
        %v5006 = vadd.f32 %v4956, 1.4214138
        %v5007 = vadd.f32 %v4957, 1.4214138
        %v5008 = vadd.f32 %v4958, 1.4214138
        %v5009 = vadd.f32 %v4959, 1.4214138
        %v5010 = vadd.f32 %v4960, 1.4214138
        %v5011 = vadd.f32 %v4961, 1.4214138
        %v5012 = vadd.f32 %v4962, 1.4214138
        %v5013 = vadd.f32 %v4963, 1.4214138
        %v5014 = vadd.f32 %v4964, 1.4214138
        %v5015 = vadd.f32 %v4965, 1.4214138
        %v5016 = vadd.f32 %v4966, 1.4214138
        %v5017 = vadd.f32 %v4967, 1.4214138
        %v5018 = vadd.f32 %v4968, 1.4214138
        %v5019 = vadd.f32 %v4969, 1.4214138
        %v5020 = vadd.f32 %v4970, 1.4214138
        %v5021 = vadd.f32 %v4971, 1.4214138
        %v5022 = vadd.f32 %v4972, 1.4214138
        %v5023 = vadd.f32 %v4973, 1.4214138
        %v5024 = vadd.f32 %v4974, 1.4214138
        %v5025 = vadd.f32 %v4975, 1.4214138
        %v5026 = vadd.f32 %v4976, 1.4214138
        %v5027 = vadd.f32 %v4977, 1.4214138
        %v5028 = vadd.f32 %v4978, 1.4214138
        %v5029 = vadd.f32 %v4979, 1.4214138
        %v5030 = vadd.f32 %v4980, 1.4214138
        %v5031 = vadd.f32 %v4981, 1.4214138
        %v5032 = vadd.f32 %v4982, 1.4214138
        %v5033 = vadd.f32 %v4983, 1.4214138
        %v5034 = vadd.f32 %v4984, 1.4214138
        %v5035 = vadd.f32 %v4985, 1.4214138
        %v5036 = vadd.f32 %v4986, 1.4214138
        %v5037 = vadd.f32 %v4987, 1.4214138
        %v5038 = vadd.f32 %v4988, 1.4214138
        %v5039 = vadd.f32 %v4989, 1.4214138
        %v5040 = vadd.f32 %v4990, 1.4214138
        %v5041 = vadd.f32 %v4991, 1.4214138
        %v5042 = vadd.f32 %v4992, 1.4214138
        %v5043 = vadd.f32 %v4993, 1.4214138
        %v5044 = vmul.f32 %v4745, %v4994
        %v5045 = vmul.f32 %v4747, %v4995
        %v5046 = vmul.f32 %v4749, %v4996
        %v5047 = vmul.f32 %v4751, %v4997
        %v5048 = vmul.f32 %v4753, %v4998
        %v5049 = vmul.f32 %v4755, %v4999
        %v5050 = vmul.f32 %v4757, %v5000
        %v5051 = vmul.f32 %v4759, %v5001
        %v5052 = vmul.f32 %v4761, %v5002
        %v5053 = vmul.f32 %v4763, %v5003
        %v5054 = vmul.f32 %v4765, %v5004
        %v5055 = vmul.f32 %v4767, %v5005
        %v5056 = vmul.f32 %v4769, %v5006
        %v5057 = vmul.f32 %v4771, %v5007
        %v5058 = vmul.f32 %v4773, %v5008
        %v5059 = vmul.f32 %v4775, %v5009
        %v5060 = vmul.f32 %v4777, %v5010
        %v5061 = vmul.f32 %v4779, %v5011
        %v5062 = vmul.f32 %v4781, %v5012
        %v5063 = vmul.f32 %v4783, %v5013
        %v5064 = vmul.f32 %v4785, %v5014
        %v5065 = vmul.f32 %v4787, %v5015
        %v5066 = vmul.f32 %v4789, %v5016
        %v5067 = vmul.f32 %v4791, %v5017
        %v5068 = vmul.f32 %v4793, %v5018
        %v5069 = vmul.f32 %v4795, %v5019
        %v5070 = vmul.f32 %v4797, %v5020
        %v5071 = vmul.f32 %v4799, %v5021
        %v5072 = vmul.f32 %v4801, %v5022
        %v5073 = vmul.f32 %v4803, %v5023
        %v5074 = vmul.f32 %v4805, %v5024
        %v5075 = vmul.f32 %v4807, %v5025
        %v5076 = vmul.f32 %v4809, %v5026
        %v5077 = vmul.f32 %v4811, %v5027
        %v5078 = vmul.f32 %v4813, %v5028
        %v5079 = vmul.f32 %v4815, %v5029
        %v5080 = vmul.f32 %v4817, %v5030
        %v5081 = vmul.f32 %v4819, %v5031
        %v5082 = vmul.f32 %v4821, %v5032
        %v5083 = vmul.f32 %v4823, %v5033
        %v5084 = vmul.f32 %v4825, %v5034
        %v5085 = vmul.f32 %v4827, %v5035
        %v5086 = vmul.f32 %v4829, %v5036
        %v5087 = vmul.f32 %v4831, %v5037
        %v5088 = vmul.f32 %v4833, %v5038
        %v5089 = vmul.f32 %v4835, %v5039
        %v5090 = vmul.f32 %v4837, %v5040
        %v5091 = vmul.f32 %v4839, %v5041
        %v5092 = vmul.f32 %v4841, %v5042
        %v5093 = vmul.f32 %v4843, %v5043
        %v5094 = vadd.f32 %v5044, -0.28449672
        %v5095 = vadd.f32 %v5045, -0.28449672
        %v5096 = vadd.f32 %v5046, -0.28449672
        %v5097 = vadd.f32 %v5047, -0.28449672
        %v5098 = vadd.f32 %v5048, -0.28449672
        %v5099 = vadd.f32 %v5049, -0.28449672
        %v5100 = vadd.f32 %v5050, -0.28449672
        %v5101 = vadd.f32 %v5051, -0.28449672
        %v5102 = vadd.f32 %v5052, -0.28449672
        %v5103 = vadd.f32 %v5053, -0.28449672
        %v5104 = vadd.f32 %v5054, -0.28449672
        %v5105 = vadd.f32 %v5055, -0.28449672
        %v5106 = vadd.f32 %v5056, -0.28449672
        %v5107 = vadd.f32 %v5057, -0.28449672
        %v5108 = vadd.f32 %v5058, -0.28449672
        %v5109 = vadd.f32 %v5059, -0.28449672
        %v5110 = vadd.f32 %v5060, -0.28449672
        %v5111 = vadd.f32 %v5061, -0.28449672
        %v5112 = vadd.f32 %v5062, -0.28449672
        %v5113 = vadd.f32 %v5063, -0.28449672
        %v5114 = vadd.f32 %v5064, -0.28449672
        %v5115 = vadd.f32 %v5065, -0.28449672
        %v5116 = vadd.f32 %v5066, -0.28449672
        %v5117 = vadd.f32 %v5067, -0.28449672
        %v5118 = vadd.f32 %v5068, -0.28449672
        %v5119 = vadd.f32 %v5069, -0.28449672
        %v5120 = vadd.f32 %v5070, -0.28449672
        %v5121 = vadd.f32 %v5071, -0.28449672
        %v5122 = vadd.f32 %v5072, -0.28449672
        %v5123 = vadd.f32 %v5073, -0.28449672
        %v5124 = vadd.f32 %v5074, -0.28449672
        %v5125 = vadd.f32 %v5075, -0.28449672
        %v5126 = vadd.f32 %v5076, -0.28449672
        %v5127 = vadd.f32 %v5077, -0.28449672
        %v5128 = vadd.f32 %v5078, -0.28449672
        %v5129 = vadd.f32 %v5079, -0.28449672
        %v5130 = vadd.f32 %v5080, -0.28449672
        %v5131 = vadd.f32 %v5081, -0.28449672
        %v5132 = vadd.f32 %v5082, -0.28449672
        %v5133 = vadd.f32 %v5083, -0.28449672
        %v5134 = vadd.f32 %v5084, -0.28449672
        %v5135 = vadd.f32 %v5085, -0.28449672
        %v5136 = vadd.f32 %v5086, -0.28449672
        %v5137 = vadd.f32 %v5087, -0.28449672
        %v5138 = vadd.f32 %v5088, -0.28449672
        %v5139 = vadd.f32 %v5089, -0.28449672
        %v5140 = vadd.f32 %v5090, -0.28449672
        %v5141 = vadd.f32 %v5091, -0.28449672
        %v5142 = vadd.f32 %v5092, -0.28449672
        %v5143 = vadd.f32 %v5093, -0.28449672
        %v5144 = vmul.f32 %v4745, %v5094
        %v5145 = vmul.f32 %v4747, %v5095
        %v5146 = vmul.f32 %v4749, %v5096
        %v5147 = vmul.f32 %v4751, %v5097
        %v5148 = vmul.f32 %v4753, %v5098
        %v5149 = vmul.f32 %v4755, %v5099
        %v5150 = vmul.f32 %v4757, %v5100
        %v5151 = vmul.f32 %v4759, %v5101
        %v5152 = vmul.f32 %v4761, %v5102
        %v5153 = vmul.f32 %v4763, %v5103
        %v5154 = vmul.f32 %v4765, %v5104
        %v5155 = vmul.f32 %v4767, %v5105
        %v5156 = vmul.f32 %v4769, %v5106
        %v5157 = vmul.f32 %v4771, %v5107
        %v5158 = vmul.f32 %v4773, %v5108
        %v5159 = vmul.f32 %v4775, %v5109
        %v5160 = vmul.f32 %v4777, %v5110
        %v5161 = vmul.f32 %v4779, %v5111
        %v5162 = vmul.f32 %v4781, %v5112
        %v5163 = vmul.f32 %v4783, %v5113
        %v5164 = vmul.f32 %v4785, %v5114
        %v5165 = vmul.f32 %v4787, %v5115
        %v5166 = vmul.f32 %v4789, %v5116
        %v5167 = vmul.f32 %v4791, %v5117
        %v5168 = vmul.f32 %v4793, %v5118
        %v5169 = vmul.f32 %v4795, %v5119
        %v5170 = vmul.f32 %v4797, %v5120
        %v5171 = vmul.f32 %v4799, %v5121
        %v5172 = vmul.f32 %v4801, %v5122
        %v5173 = vmul.f32 %v4803, %v5123
        %v5174 = vmul.f32 %v4805, %v5124
        %v5175 = vmul.f32 %v4807, %v5125
        %v5176 = vmul.f32 %v4809, %v5126
        %v5177 = vmul.f32 %v4811, %v5127
        %v5178 = vmul.f32 %v4813, %v5128
        %v5179 = vmul.f32 %v4815, %v5129
        %v5180 = vmul.f32 %v4817, %v5130
        %v5181 = vmul.f32 %v4819, %v5131
        %v5182 = vmul.f32 %v4821, %v5132
        %v5183 = vmul.f32 %v4823, %v5133
        %v5184 = vmul.f32 %v4825, %v5134
        %v5185 = vmul.f32 %v4827, %v5135
        %v5186 = vmul.f32 %v4829, %v5136
        %v5187 = vmul.f32 %v4831, %v5137
        %v5188 = vmul.f32 %v4833, %v5138
        %v5189 = vmul.f32 %v4835, %v5139
        %v5190 = vmul.f32 %v4837, %v5140
        %v5191 = vmul.f32 %v4839, %v5141
        %v5192 = vmul.f32 %v4841, %v5142
        %v5193 = vmul.f32 %v4843, %v5143
        %v5194 = vadd.f32 %v5144, 0.2548296
        %v5195 = vadd.f32 %v5145, 0.2548296
        %v5196 = vadd.f32 %v5146, 0.2548296
        %v5197 = vadd.f32 %v5147, 0.2548296
        %v5198 = vadd.f32 %v5148, 0.2548296
        %v5199 = vadd.f32 %v5149, 0.2548296
        %v5200 = vadd.f32 %v5150, 0.2548296
        %v5201 = vadd.f32 %v5151, 0.2548296
        %v5202 = vadd.f32 %v5152, 0.2548296
        %v5203 = vadd.f32 %v5153, 0.2548296
        %v5204 = vadd.f32 %v5154, 0.2548296
        %v5205 = vadd.f32 %v5155, 0.2548296
        %v5206 = vadd.f32 %v5156, 0.2548296
        %v5207 = vadd.f32 %v5157, 0.2548296
        %v5208 = vadd.f32 %v5158, 0.2548296
        %v5209 = vadd.f32 %v5159, 0.2548296
        %v5210 = vadd.f32 %v5160, 0.2548296
        %v5211 = vadd.f32 %v5161, 0.2548296
        %v5212 = vadd.f32 %v5162, 0.2548296
        %v5213 = vadd.f32 %v5163, 0.2548296
        %v5214 = vadd.f32 %v5164, 0.2548296
        %v5215 = vadd.f32 %v5165, 0.2548296
        %v5216 = vadd.f32 %v5166, 0.2548296
        %v5217 = vadd.f32 %v5167, 0.2548296
        %v5218 = vadd.f32 %v5168, 0.2548296
        %v5219 = vadd.f32 %v5169, 0.2548296
        %v5220 = vadd.f32 %v5170, 0.2548296
        %v5221 = vadd.f32 %v5171, 0.2548296
        %v5222 = vadd.f32 %v5172, 0.2548296
        %v5223 = vadd.f32 %v5173, 0.2548296
        %v5224 = vadd.f32 %v5174, 0.2548296
        %v5225 = vadd.f32 %v5175, 0.2548296
        %v5226 = vadd.f32 %v5176, 0.2548296
        %v5227 = vadd.f32 %v5177, 0.2548296
        %v5228 = vadd.f32 %v5178, 0.2548296
        %v5229 = vadd.f32 %v5179, 0.2548296
        %v5230 = vadd.f32 %v5180, 0.2548296
        %v5231 = vadd.f32 %v5181, 0.2548296
        %v5232 = vadd.f32 %v5182, 0.2548296
        %v5233 = vadd.f32 %v5183, 0.2548296
        %v5234 = vadd.f32 %v5184, 0.2548296
        %v5235 = vadd.f32 %v5185, 0.2548296
        %v5236 = vadd.f32 %v5186, 0.2548296
        %v5237 = vadd.f32 %v5187, 0.2548296
        %v5238 = vadd.f32 %v5188, 0.2548296
        %v5239 = vadd.f32 %v5189, 0.2548296
        %v5240 = vadd.f32 %v5190, 0.2548296
        %v5241 = vadd.f32 %v5191, 0.2548296
        %v5242 = vadd.f32 %v5192, 0.2548296
        %v5243 = vadd.f32 %v5193, 0.2548296
        %v5244 = vmul.f32 %v4745, %v5194
        %v5245 = vmul.f32 %v4747, %v5195
        %v5246 = vmul.f32 %v4749, %v5196
        %v5247 = vmul.f32 %v4751, %v5197
        %v5248 = vmul.f32 %v4753, %v5198
        %v5249 = vmul.f32 %v4755, %v5199
        %v5250 = vmul.f32 %v4757, %v5200
        %v5251 = vmul.f32 %v4759, %v5201
        %v5252 = vmul.f32 %v4761, %v5202
        %v5253 = vmul.f32 %v4763, %v5203
        %v5254 = vmul.f32 %v4765, %v5204
        %v5255 = vmul.f32 %v4767, %v5205
        %v5256 = vmul.f32 %v4769, %v5206
        %v5257 = vmul.f32 %v4771, %v5207
        %v5258 = vmul.f32 %v4773, %v5208
        %v5259 = vmul.f32 %v4775, %v5209
        %v5260 = vmul.f32 %v4777, %v5210
        %v5261 = vmul.f32 %v4779, %v5211
        %v5262 = vmul.f32 %v4781, %v5212
        %v5263 = vmul.f32 %v4783, %v5213
        %v5264 = vmul.f32 %v4785, %v5214
        %v5265 = vmul.f32 %v4787, %v5215
        %v5266 = vmul.f32 %v4789, %v5216
        %v5267 = vmul.f32 %v4791, %v5217
        %v5268 = vmul.f32 %v4793, %v5218
        %v5269 = vmul.f32 %v4795, %v5219
        %v5270 = vmul.f32 %v4797, %v5220
        %v5271 = vmul.f32 %v4799, %v5221
        %v5272 = vmul.f32 %v4801, %v5222
        %v5273 = vmul.f32 %v4803, %v5223
        %v5274 = vmul.f32 %v4805, %v5224
        %v5275 = vmul.f32 %v4807, %v5225
        %v5276 = vmul.f32 %v4809, %v5226
        %v5277 = vmul.f32 %v4811, %v5227
        %v5278 = vmul.f32 %v4813, %v5228
        %v5279 = vmul.f32 %v4815, %v5229
        %v5280 = vmul.f32 %v4817, %v5230
        %v5281 = vmul.f32 %v4819, %v5231
        %v5282 = vmul.f32 %v4821, %v5232
        %v5283 = vmul.f32 %v4823, %v5233
        %v5284 = vmul.f32 %v4825, %v5234
        %v5285 = vmul.f32 %v4827, %v5235
        %v5286 = vmul.f32 %v4829, %v5236
        %v5287 = vmul.f32 %v4831, %v5237
        %v5288 = vmul.f32 %v4833, %v5238
        %v5289 = vmul.f32 %v4835, %v5239
        %v5290 = vmul.f32 %v4837, %v5240
        %v5291 = vmul.f32 %v4839, %v5241
        %v5292 = vmul.f32 %v4841, %v5242
        %v5293 = vmul.f32 %v4843, %v5243
        %v5294 = vsub.f32 0.0, %v4594
        %v5295 = vsub.f32 0.0, %v4595
        %v5296 = vsub.f32 0.0, %v4596
        %v5297 = vsub.f32 0.0, %v4597
        %v5298 = vsub.f32 0.0, %v4598
        %v5299 = vsub.f32 0.0, %v4599
        %v5300 = vsub.f32 0.0, %v4600
        %v5301 = vsub.f32 0.0, %v4601
        %v5302 = vsub.f32 0.0, %v4602
        %v5303 = vsub.f32 0.0, %v4603
        %v5304 = vsub.f32 0.0, %v4604
        %v5305 = vsub.f32 0.0, %v4605
        %v5306 = vsub.f32 0.0, %v4606
        %v5307 = vsub.f32 0.0, %v4607
        %v5308 = vsub.f32 0.0, %v4608
        %v5309 = vsub.f32 0.0, %v4609
        %v5310 = vsub.f32 0.0, %v4610
        %v5311 = vsub.f32 0.0, %v4611
        %v5312 = vsub.f32 0.0, %v4612
        %v5313 = vsub.f32 0.0, %v4613
        %v5314 = vsub.f32 0.0, %v4614
        %v5315 = vsub.f32 0.0, %v4615
        %v5316 = vsub.f32 0.0, %v4616
        %v5317 = vsub.f32 0.0, %v4617
        %v5318 = vsub.f32 0.0, %v4618
        %v5319 = vsub.f32 0.0, %v4619
        %v5320 = vsub.f32 0.0, %v4620
        %v5321 = vsub.f32 0.0, %v4621
        %v5322 = vsub.f32 0.0, %v4622
        %v5323 = vsub.f32 0.0, %v4623
        %v5324 = vsub.f32 0.0, %v4624
        %v5325 = vsub.f32 0.0, %v4625
        %v5326 = vsub.f32 0.0, %v4626
        %v5327 = vsub.f32 0.0, %v4627
        %v5328 = vsub.f32 0.0, %v4628
        %v5329 = vsub.f32 0.0, %v4629
        %v5330 = vsub.f32 0.0, %v4630
        %v5331 = vsub.f32 0.0, %v4631
        %v5332 = vsub.f32 0.0, %v4632
        %v5333 = vsub.f32 0.0, %v4633
        %v5334 = vsub.f32 0.0, %v4634
        %v5335 = vsub.f32 0.0, %v4635
        %v5336 = vsub.f32 0.0, %v4636
        %v5337 = vsub.f32 0.0, %v4637
        %v5338 = vsub.f32 0.0, %v4638
        %v5339 = vsub.f32 0.0, %v4639
        %v5340 = vsub.f32 0.0, %v4640
        %v5341 = vsub.f32 0.0, %v4641
        %v5342 = vsub.f32 0.0, %v4642
        %v5343 = vsub.f32 0.0, %v4643
        %v5344 = vmul.f32 %v5294, %v4594
        %v5345 = vmul.f32 %v5295, %v4595
        %v5346 = vmul.f32 %v5296, %v4596
        %v5347 = vmul.f32 %v5297, %v4597
        %v5348 = vmul.f32 %v5298, %v4598
        %v5349 = vmul.f32 %v5299, %v4599
        %v5350 = vmul.f32 %v5300, %v4600
        %v5351 = vmul.f32 %v5301, %v4601
        %v5352 = vmul.f32 %v5302, %v4602
        %v5353 = vmul.f32 %v5303, %v4603
        %v5354 = vmul.f32 %v5304, %v4604
        %v5355 = vmul.f32 %v5305, %v4605
        %v5356 = vmul.f32 %v5306, %v4606
        %v5357 = vmul.f32 %v5307, %v4607
        %v5358 = vmul.f32 %v5308, %v4608
        %v5359 = vmul.f32 %v5309, %v4609
        %v5360 = vmul.f32 %v5310, %v4610
        %v5361 = vmul.f32 %v5311, %v4611
        %v5362 = vmul.f32 %v5312, %v4612
        %v5363 = vmul.f32 %v5313, %v4613
        %v5364 = vmul.f32 %v5314, %v4614
        %v5365 = vmul.f32 %v5315, %v4615
        %v5366 = vmul.f32 %v5316, %v4616
        %v5367 = vmul.f32 %v5317, %v4617
        %v5368 = vmul.f32 %v5318, %v4618
        %v5369 = vmul.f32 %v5319, %v4619
        %v5370 = vmul.f32 %v5320, %v4620
        %v5371 = vmul.f32 %v5321, %v4621
        %v5372 = vmul.f32 %v5322, %v4622
        %v5373 = vmul.f32 %v5323, %v4623
        %v5374 = vmul.f32 %v5324, %v4624
        %v5375 = vmul.f32 %v5325, %v4625
        %v5376 = vmul.f32 %v5326, %v4626
        %v5377 = vmul.f32 %v5327, %v4627
        %v5378 = vmul.f32 %v5328, %v4628
        %v5379 = vmul.f32 %v5329, %v4629
        %v5380 = vmul.f32 %v5330, %v4630
        %v5381 = vmul.f32 %v5331, %v4631
        %v5382 = vmul.f32 %v5332, %v4632
        %v5383 = vmul.f32 %v5333, %v4633
        %v5384 = vmul.f32 %v5334, %v4634
        %v5385 = vmul.f32 %v5335, %v4635
        %v5386 = vmul.f32 %v5336, %v4636
        %v5387 = vmul.f32 %v5337, %v4637
        %v5388 = vmul.f32 %v5338, %v4638
        %v5389 = vmul.f32 %v5339, %v4639
        %v5390 = vmul.f32 %v5340, %v4640
        %v5391 = vmul.f32 %v5341, %v4641
        %v5392 = vmul.f32 %v5342, %v4642
        %v5393 = vmul.f32 %v5343, %v4643
        %v5394 = vmul.f32 %v5344, 1.442695
        %v5395 = vpow.pop %v5394
        %v5396 = vmul.f32 %v5345, 1.442695
        %v5397 = vpow.pop %v5396
        %v5398 = vmul.f32 %v5346, 1.442695
        %v5399 = vpow.pop %v5398
        %v5400 = vmul.f32 %v5347, 1.442695
        %v5401 = vpow.pop %v5400
        %v5402 = vmul.f32 %v5348, 1.442695
        %v5403 = vpow.pop %v5402
        %v5404 = vmul.f32 %v5349, 1.442695
        %v5405 = vpow.pop %v5404
        %v5406 = vmul.f32 %v5350, 1.442695
        %v5407 = vpow.pop %v5406
        %v5408 = vmul.f32 %v5351, 1.442695
        %v5409 = vpow.pop %v5408
        %v5410 = vmul.f32 %v5352, 1.442695
        %v5411 = vpow.pop %v5410
        %v5412 = vmul.f32 %v5353, 1.442695
        %v5413 = vpow.pop %v5412
        %v5414 = vmul.f32 %v5354, 1.442695
        %v5415 = vpow.pop %v5414
        %v5416 = vmul.f32 %v5355, 1.442695
        %v5417 = vpow.pop %v5416
        %v5418 = vmul.f32 %v5356, 1.442695
        %v5419 = vpow.pop %v5418
        %v5420 = vmul.f32 %v5357, 1.442695
        %v5421 = vpow.pop %v5420
        %v5422 = vmul.f32 %v5358, 1.442695
        %v5423 = vpow.pop %v5422
        %v5424 = vmul.f32 %v5359, 1.442695
        %v5425 = vpow.pop %v5424
        %v5426 = vmul.f32 %v5360, 1.442695
        %v5427 = vpow.pop %v5426
        %v5428 = vmul.f32 %v5361, 1.442695
        %v5429 = vpow.pop %v5428
        %v5430 = vmul.f32 %v5362, 1.442695
        %v5431 = vpow.pop %v5430
        %v5432 = vmul.f32 %v5363, 1.442695
        %v5433 = vpow.pop %v5432
        %v5434 = vmul.f32 %v5364, 1.442695
        %v5435 = vpow.pop %v5434
        %v5436 = vmul.f32 %v5365, 1.442695
        %v5437 = vpow.pop %v5436
        %v5438 = vmul.f32 %v5366, 1.442695
        %v5439 = vpow.pop %v5438
        %v5440 = vmul.f32 %v5367, 1.442695
        %v5441 = vpow.pop %v5440
        %v5442 = vmul.f32 %v5368, 1.442695
        %v5443 = vpow.pop %v5442
        %v5444 = vmul.f32 %v5369, 1.442695
        %v5445 = vpow.pop %v5444
        %v5446 = vmul.f32 %v5370, 1.442695
        %v5447 = vpow.pop %v5446
        %v5448 = vmul.f32 %v5371, 1.442695
        %v5449 = vpow.pop %v5448
        %v5450 = vmul.f32 %v5372, 1.442695
        %v5451 = vpow.pop %v5450
        %v5452 = vmul.f32 %v5373, 1.442695
        %v5453 = vpow.pop %v5452
        %v5454 = vmul.f32 %v5374, 1.442695
        %v5455 = vpow.pop %v5454
        %v5456 = vmul.f32 %v5375, 1.442695
        %v5457 = vpow.pop %v5456
        %v5458 = vmul.f32 %v5376, 1.442695
        %v5459 = vpow.pop %v5458
        %v5460 = vmul.f32 %v5377, 1.442695
        %v5461 = vpow.pop %v5460
        %v5462 = vmul.f32 %v5378, 1.442695
        %v5463 = vpow.pop %v5462
        %v5464 = vmul.f32 %v5379, 1.442695
        %v5465 = vpow.pop %v5464
        %v5466 = vmul.f32 %v5380, 1.442695
        %v5467 = vpow.pop %v5466
        %v5468 = vmul.f32 %v5381, 1.442695
        %v5469 = vpow.pop %v5468
        %v5470 = vmul.f32 %v5382, 1.442695
        %v5471 = vpow.pop %v5470
        %v5472 = vmul.f32 %v5383, 1.442695
        %v5473 = vpow.pop %v5472
        %v5474 = vmul.f32 %v5384, 1.442695
        %v5475 = vpow.pop %v5474
        %v5476 = vmul.f32 %v5385, 1.442695
        %v5477 = vpow.pop %v5476
        %v5478 = vmul.f32 %v5386, 1.442695
        %v5479 = vpow.pop %v5478
        %v5480 = vmul.f32 %v5387, 1.442695
        %v5481 = vpow.pop %v5480
        %v5482 = vmul.f32 %v5388, 1.442695
        %v5483 = vpow.pop %v5482
        %v5484 = vmul.f32 %v5389, 1.442695
        %v5485 = vpow.pop %v5484
        %v5486 = vmul.f32 %v5390, 1.442695
        %v5487 = vpow.pop %v5486
        %v5488 = vmul.f32 %v5391, 1.442695
        %v5489 = vpow.pop %v5488
        %v5490 = vmul.f32 %v5392, 1.442695
        %v5491 = vpow.pop %v5490
        %v5492 = vmul.f32 %v5393, 1.442695
        %v5493 = vpow.pop %v5492
        %v5494 = vmul.f32 %v5244, %v5395
        %v5495 = vmul.f32 %v5245, %v5397
        %v5496 = vmul.f32 %v5246, %v5399
        %v5497 = vmul.f32 %v5247, %v5401
        %v5498 = vmul.f32 %v5248, %v5403
        %v5499 = vmul.f32 %v5249, %v5405
        %v5500 = vmul.f32 %v5250, %v5407
        %v5501 = vmul.f32 %v5251, %v5409
        %v5502 = vmul.f32 %v5252, %v5411
        %v5503 = vmul.f32 %v5253, %v5413
        %v5504 = vmul.f32 %v5254, %v5415
        %v5505 = vmul.f32 %v5255, %v5417
        %v5506 = vmul.f32 %v5256, %v5419
        %v5507 = vmul.f32 %v5257, %v5421
        %v5508 = vmul.f32 %v5258, %v5423
        %v5509 = vmul.f32 %v5259, %v5425
        %v5510 = vmul.f32 %v5260, %v5427
        %v5511 = vmul.f32 %v5261, %v5429
        %v5512 = vmul.f32 %v5262, %v5431
        %v5513 = vmul.f32 %v5263, %v5433
        %v5514 = vmul.f32 %v5264, %v5435
        %v5515 = vmul.f32 %v5265, %v5437
        %v5516 = vmul.f32 %v5266, %v5439
        %v5517 = vmul.f32 %v5267, %v5441
        %v5518 = vmul.f32 %v5268, %v5443
        %v5519 = vmul.f32 %v5269, %v5445
        %v5520 = vmul.f32 %v5270, %v5447
        %v5521 = vmul.f32 %v5271, %v5449
        %v5522 = vmul.f32 %v5272, %v5451
        %v5523 = vmul.f32 %v5273, %v5453
        %v5524 = vmul.f32 %v5274, %v5455
        %v5525 = vmul.f32 %v5275, %v5457
        %v5526 = vmul.f32 %v5276, %v5459
        %v5527 = vmul.f32 %v5277, %v5461
        %v5528 = vmul.f32 %v5278, %v5463
        %v5529 = vmul.f32 %v5279, %v5465
        %v5530 = vmul.f32 %v5280, %v5467
        %v5531 = vmul.f32 %v5281, %v5469
        %v5532 = vmul.f32 %v5282, %v5471
        %v5533 = vmul.f32 %v5283, %v5473
        %v5534 = vmul.f32 %v5284, %v5475
        %v5535 = vmul.f32 %v5285, %v5477
        %v5536 = vmul.f32 %v5286, %v5479
        %v5537 = vmul.f32 %v5287, %v5481
        %v5538 = vmul.f32 %v5288, %v5483
        %v5539 = vmul.f32 %v5289, %v5485
        %v5540 = vmul.f32 %v5290, %v5487
        %v5541 = vmul.f32 %v5291, %v5489
        %v5542 = vmul.f32 %v5292, %v5491
        %v5543 = vmul.f32 %v5293, %v5493
        %v5544 = vsub.f32 1.0, %v5494
        %v5545 = vsub.f32 1.0, %v5495
        %v5546 = vsub.f32 1.0, %v5496
        %v5547 = vsub.f32 1.0, %v5497
        %v5548 = vsub.f32 1.0, %v5498
        %v5549 = vsub.f32 1.0, %v5499
        %v5550 = vsub.f32 1.0, %v5500
        %v5551 = vsub.f32 1.0, %v5501
        %v5552 = vsub.f32 1.0, %v5502
        %v5553 = vsub.f32 1.0, %v5503
        %v5554 = vsub.f32 1.0, %v5504
        %v5555 = vsub.f32 1.0, %v5505
        %v5556 = vsub.f32 1.0, %v5506
        %v5557 = vsub.f32 1.0, %v5507
        %v5558 = vsub.f32 1.0, %v5508
        %v5559 = vsub.f32 1.0, %v5509
        %v5560 = vsub.f32 1.0, %v5510
        %v5561 = vsub.f32 1.0, %v5511
        %v5562 = vsub.f32 1.0, %v5512
        %v5563 = vsub.f32 1.0, %v5513
        %v5564 = vsub.f32 1.0, %v5514
        %v5565 = vsub.f32 1.0, %v5515
        %v5566 = vsub.f32 1.0, %v5516
        %v5567 = vsub.f32 1.0, %v5517
        %v5568 = vsub.f32 1.0, %v5518
        %v5569 = vsub.f32 1.0, %v5519
        %v5570 = vsub.f32 1.0, %v5520
        %v5571 = vsub.f32 1.0, %v5521
        %v5572 = vsub.f32 1.0, %v5522
        %v5573 = vsub.f32 1.0, %v5523
        %v5574 = vsub.f32 1.0, %v5524
        %v5575 = vsub.f32 1.0, %v5525
        %v5576 = vsub.f32 1.0, %v5526
        %v5577 = vsub.f32 1.0, %v5527
        %v5578 = vsub.f32 1.0, %v5528
        %v5579 = vsub.f32 1.0, %v5529
        %v5580 = vsub.f32 1.0, %v5530
        %v5581 = vsub.f32 1.0, %v5531
        %v5582 = vsub.f32 1.0, %v5532
        %v5583 = vsub.f32 1.0, %v5533
        %v5584 = vsub.f32 1.0, %v5534
        %v5585 = vsub.f32 1.0, %v5535
        %v5586 = vsub.f32 1.0, %v5536
        %v5587 = vsub.f32 1.0, %v5537
        %v5588 = vsub.f32 1.0, %v5538
        %v5589 = vsub.f32 1.0, %v5539
        %v5590 = vsub.f32 1.0, %v5540
        %v5591 = vsub.f32 1.0, %v5541
        %v5592 = vsub.f32 1.0, %v5542
        %v5593 = vsub.f32 1.0, %v5543
        %vm5594 = vcmp.lt.f32.partialorder %v4544, 0.0
        %vm5595 = vcmp.lt.f32.partialorder %v4545, 0.0
        %vm5596 = vcmp.lt.f32.partialorder %v4546, 0.0
        %vm5597 = vcmp.lt.f32.partialorder %v4547, 0.0
        %vm5598 = vcmp.lt.f32.partialorder %v4548, 0.0
        %vm5599 = vcmp.lt.f32.partialorder %v4549, 0.0
        %vm5600 = vcmp.lt.f32.partialorder %v4550, 0.0
        %vm5601 = vcmp.lt.f32.partialorder %v4551, 0.0
        %vm5602 = vcmp.lt.f32.partialorder %v4552, 0.0
        %vm5603 = vcmp.lt.f32.partialorder %v4553, 0.0
        %vm5604 = vcmp.lt.f32.partialorder %v4554, 0.0
        %vm5605 = vcmp.lt.f32.partialorder %v4555, 0.0
        %vm5606 = vcmp.lt.f32.partialorder %v4556, 0.0
        %vm5607 = vcmp.lt.f32.partialorder %v4557, 0.0
        %vm5608 = vcmp.lt.f32.partialorder %v4558, 0.0
        %vm5609 = vcmp.lt.f32.partialorder %v4559, 0.0
        %vm5610 = vcmp.lt.f32.partialorder %v4560, 0.0
        %vm5611 = vcmp.lt.f32.partialorder %v4561, 0.0
        %vm5612 = vcmp.lt.f32.partialorder %v4562, 0.0
        %vm5613 = vcmp.lt.f32.partialorder %v4563, 0.0
        %vm5614 = vcmp.lt.f32.partialorder %v4564, 0.0
        %vm5615 = vcmp.lt.f32.partialorder %v4565, 0.0
        %vm5616 = vcmp.lt.f32.partialorder %v4566, 0.0
        %vm5617 = vcmp.lt.f32.partialorder %v4567, 0.0
        %vm5618 = vcmp.lt.f32.partialorder %v4568, 0.0
        %vm5619 = vcmp.lt.f32.partialorder %v4569, 0.0
        %vm5620 = vcmp.lt.f32.partialorder %v4570, 0.0
        %vm5621 = vcmp.lt.f32.partialorder %v4571, 0.0
        %vm5622 = vcmp.lt.f32.partialorder %v4572, 0.0
        %vm5623 = vcmp.lt.f32.partialorder %v4573, 0.0
        %vm5624 = vcmp.lt.f32.partialorder %v4574, 0.0
        %vm5625 = vcmp.lt.f32.partialorder %v4575, 0.0
        %vm5626 = vcmp.lt.f32.partialorder %v4576, 0.0
        %vm5627 = vcmp.lt.f32.partialorder %v4577, 0.0
        %vm5628 = vcmp.lt.f32.partialorder %v4578, 0.0
        %vm5629 = vcmp.lt.f32.partialorder %v4579, 0.0
        %vm5630 = vcmp.lt.f32.partialorder %v4580, 0.0
        %vm5631 = vcmp.lt.f32.partialorder %v4581, 0.0
        %vm5632 = vcmp.lt.f32.partialorder %v4582, 0.0
        %vm5633 = vcmp.lt.f32.partialorder %v4583, 0.0
        %vm5634 = vcmp.lt.f32.partialorder %v4584, 0.0
        %vm5635 = vcmp.lt.f32.partialorder %v4585, 0.0
        %vm5636 = vcmp.lt.f32.partialorder %v4586, 0.0
        %vm5637 = vcmp.lt.f32.partialorder %v4587, 0.0
        %vm5638 = vcmp.lt.f32.partialorder %v4588, 0.0
        %vm5639 = vcmp.lt.f32.partialorder %v4589, 0.0
        %vm5640 = vcmp.lt.f32.partialorder %v4590, 0.0
        %vm5641 = vcmp.lt.f32.partialorder %v4591, 0.0
        %vm5642 = vcmp.lt.f32.partialorder %v4592, 0.0
        %vm5643 = vcmp.lt.f32.partialorder %v4593, 0.0
        %v5644 = vsub.f32 0.0, %v5544
        %v5645 = vsub.f32 0.0, %v5545
        %v5646 = vsub.f32 0.0, %v5546
        %v5647 = vsub.f32 0.0, %v5547
        %v5648 = vsub.f32 0.0, %v5548
        %v5649 = vsub.f32 0.0, %v5549
        %v5650 = vsub.f32 0.0, %v5550
        %v5651 = vsub.f32 0.0, %v5551
        %v5652 = vsub.f32 0.0, %v5552
        %v5653 = vsub.f32 0.0, %v5553
        %v5654 = vsub.f32 0.0, %v5554
        %v5655 = vsub.f32 0.0, %v5555
        %v5656 = vsub.f32 0.0, %v5556
        %v5657 = vsub.f32 0.0, %v5557
        %v5658 = vsub.f32 0.0, %v5558
        %v5659 = vsub.f32 0.0, %v5559
        %v5660 = vsub.f32 0.0, %v5560
        %v5661 = vsub.f32 0.0, %v5561
        %v5662 = vsub.f32 0.0, %v5562
        %v5663 = vsub.f32 0.0, %v5563
        %v5664 = vsub.f32 0.0, %v5564
        %v5665 = vsub.f32 0.0, %v5565
        %v5666 = vsub.f32 0.0, %v5566
        %v5667 = vsub.f32 0.0, %v5567
        %v5668 = vsub.f32 0.0, %v5568
        %v5669 = vsub.f32 0.0, %v5569
        %v5670 = vsub.f32 0.0, %v5570
        %v5671 = vsub.f32 0.0, %v5571
        %v5672 = vsub.f32 0.0, %v5572
        %v5673 = vsub.f32 0.0, %v5573
        %v5674 = vsub.f32 0.0, %v5574
        %v5675 = vsub.f32 0.0, %v5575
        %v5676 = vsub.f32 0.0, %v5576
        %v5677 = vsub.f32 0.0, %v5577
        %v5678 = vsub.f32 0.0, %v5578
        %v5679 = vsub.f32 0.0, %v5579
        %v5680 = vsub.f32 0.0, %v5580
        %v5681 = vsub.f32 0.0, %v5581
        %v5682 = vsub.f32 0.0, %v5582
        %v5683 = vsub.f32 0.0, %v5583
        %v5684 = vsub.f32 0.0, %v5584
        %v5685 = vsub.f32 0.0, %v5585
        %v5686 = vsub.f32 0.0, %v5586
        %v5687 = vsub.f32 0.0, %v5587
        %v5688 = vsub.f32 0.0, %v5588
        %v5689 = vsub.f32 0.0, %v5589
        %v5690 = vsub.f32 0.0, %v5590
        %v5691 = vsub.f32 0.0, %v5591
        %v5692 = vsub.f32 0.0, %v5592
        %v5693 = vsub.f32 0.0, %v5593
        %v5694 = vsel %vm5594, %v5644, %v5544
        %v5695 = vsel %vm5595, %v5645, %v5545
        %v5696 = vsel %vm5596, %v5646, %v5546
        %v5697 = vsel %vm5597, %v5647, %v5547
        %v5698 = vsel %vm5598, %v5648, %v5548
        %v5699 = vsel %vm5599, %v5649, %v5549
        %v5700 = vsel %vm5600, %v5650, %v5550
        %v5701 = vsel %vm5601, %v5651, %v5551
        %v5702 = vsel %vm5602, %v5652, %v5552
        %v5703 = vsel %vm5603, %v5653, %v5553
        %v5704 = vsel %vm5604, %v5654, %v5554
        %v5705 = vsel %vm5605, %v5655, %v5555
        %v5706 = vsel %vm5606, %v5656, %v5556
        %v5707 = vsel %vm5607, %v5657, %v5557
        %v5708 = vsel %vm5608, %v5658, %v5558
        %v5709 = vsel %vm5609, %v5659, %v5559
        %v5710 = vsel %vm5610, %v5660, %v5560
        %v5711 = vsel %vm5611, %v5661, %v5561
        %v5712 = vsel %vm5612, %v5662, %v5562
        %v5713 = vsel %vm5613, %v5663, %v5563
        %v5714 = vsel %vm5614, %v5664, %v5564
        %v5715 = vsel %vm5615, %v5665, %v5565
        %v5716 = vsel %vm5616, %v5666, %v5566
        %v5717 = vsel %vm5617, %v5667, %v5567
        %v5718 = vsel %vm5618, %v5668, %v5568
        %v5719 = vsel %vm5619, %v5669, %v5569
        %v5720 = vsel %vm5620, %v5670, %v5570
        %v5721 = vsel %vm5621, %v5671, %v5571
        %v5722 = vsel %vm5622, %v5672, %v5572
        %v5723 = vsel %vm5623, %v5673, %v5573
        %v5724 = vsel %vm5624, %v5674, %v5574
        %v5725 = vsel %vm5625, %v5675, %v5575
        %v5726 = vsel %vm5626, %v5676, %v5576
        %v5727 = vsel %vm5627, %v5677, %v5577
        %v5728 = vsel %vm5628, %v5678, %v5578
        %v5729 = vsel %vm5629, %v5679, %v5579
        %v5730 = vsel %vm5630, %v5680, %v5580
        %v5731 = vsel %vm5631, %v5681, %v5581
        %v5732 = vsel %vm5632, %v5682, %v5582
        %v5733 = vsel %vm5633, %v5683, %v5583
        %v5734 = vsel %vm5634, %v5684, %v5584
        %v5735 = vsel %vm5635, %v5685, %v5585
        %v5736 = vsel %vm5636, %v5686, %v5586
        %v5737 = vsel %vm5637, %v5687, %v5587
        %v5738 = vsel %vm5638, %v5688, %v5588
        %v5739 = vsel %vm5639, %v5689, %v5589
        %v5740 = vsel %vm5640, %v5690, %v5590
        %v5741 = vsel %vm5641, %v5691, %v5591
        %v5742 = vsel %vm5642, %v5692, %v5592
        %v5743 = vsel %vm5643, %v5693, %v5593
        %v5744 = vmul.f32 %v3612, 0.5
        %v5745 = vmul.f32 %v3614, 0.5
        %v5746 = vmul.f32 %v3689, 0.5
        %v5747 = vmul.f32 %v3691, 0.5
        %v5748 = vmul.f32 %v3766, 0.5
        %v5749 = vmul.f32 %v3768, 0.5
        %v5750 = vmul.f32 %v3843, 0.5
        %v5751 = vmul.f32 %v3845, 0.5
        %v5752 = vmul.f32 %v3920, 0.5
        %v5753 = vmul.f32 %v3922, 0.5
        %v5754 = vmul.f32 %v3997, 0.5
        %v5755 = vmul.f32 %v3999, 0.5
        %v5756 = vmul.f32 %v4074, 0.5
        %v5757 = vmul.f32 %v4076, 0.5
        %v5758 = vmul.f32 %v4151, 0.5
        %v5759 = vmul.f32 %v4153, 0.5
        %v5760 = vmul.f32 %v4228, 0.5
        %v5761 = vmul.f32 %v4230, 0.5
        %v5762 = vmul.f32 %v4305, 0.5
        %v5763 = vmul.f32 %v4307, 0.5
        %v5764 = vmul.f32 %v4382, 0.5
        %v5765 = vmul.f32 %v4384, 0.5
        %v5766 = vmul.f32 %v4459, 0.5
        %v5767 = vmul.f32 %v4461, 0.5
        %v5768 = vmul.f32 %v4536, 0.5
        %v5769 = vmul.f32 %v3618, 0.5
        %v5770 = vmul.f32 %v3620, 0.5
        %v5771 = vmul.f32 %v3695, 0.5
        %v5772 = vmul.f32 %v3697, 0.5
        %v5773 = vmul.f32 %v3772, 0.5
        %v5774 = vmul.f32 %v3774, 0.5
        %v5775 = vmul.f32 %v3849, 0.5
        %v5776 = vmul.f32 %v3851, 0.5
        %v5777 = vmul.f32 %v3926, 0.5
        %v5778 = vmul.f32 %v3928, 0.5
        %v5779 = vmul.f32 %v4003, 0.5
        %v5780 = vmul.f32 %v4005, 0.5
        %v5781 = vmul.f32 %v4080, 0.5
        %v5782 = vmul.f32 %v4082, 0.5
        %v5783 = vmul.f32 %v4157, 0.5
        %v5784 = vmul.f32 %v4159, 0.5
        %v5785 = vmul.f32 %v4234, 0.5
        %v5786 = vmul.f32 %v4236, 0.5
        %v5787 = vmul.f32 %v4311, 0.5
        %v5788 = vmul.f32 %v4313, 0.5
        %v5789 = vmul.f32 %v4388, 0.5
        %v5790 = vmul.f32 %v4390, 0.5
        %v5791 = vmul.f32 %v4465, 0.5
        %v5792 = vmul.f32 %v4467, 0.5
        %v5793 = vmul.f32 %v4541, 0.5
        %v5794 = vadd.f32 %v5694, 1.0
        %v5795 = vadd.f32 %v5695, 1.0
        %v5796 = vadd.f32 %v5696, 1.0
        %v5797 = vadd.f32 %v5697, 1.0
        %v5798 = vadd.f32 %v5698, 1.0
        %v5799 = vadd.f32 %v5699, 1.0
        %v5800 = vadd.f32 %v5700, 1.0
        %v5801 = vadd.f32 %v5701, 1.0
        %v5802 = vadd.f32 %v5702, 1.0
        %v5803 = vadd.f32 %v5703, 1.0
        %v5804 = vadd.f32 %v5704, 1.0
        %v5805 = vadd.f32 %v5705, 1.0
        %v5806 = vadd.f32 %v5706, 1.0
        %v5807 = vadd.f32 %v5707, 1.0
        %v5808 = vadd.f32 %v5708, 1.0
        %v5809 = vadd.f32 %v5709, 1.0
        %v5810 = vadd.f32 %v5710, 1.0
        %v5811 = vadd.f32 %v5711, 1.0
        %v5812 = vadd.f32 %v5712, 1.0
        %v5813 = vadd.f32 %v5713, 1.0
        %v5814 = vadd.f32 %v5714, 1.0
        %v5815 = vadd.f32 %v5715, 1.0
        %v5816 = vadd.f32 %v5716, 1.0
        %v5817 = vadd.f32 %v5717, 1.0
        %v5818 = vadd.f32 %v5718, 1.0
        %v5819 = vadd.f32 %v5719, 1.0
        %v5820 = vadd.f32 %v5720, 1.0
        %v5821 = vadd.f32 %v5721, 1.0
        %v5822 = vadd.f32 %v5722, 1.0
        %v5823 = vadd.f32 %v5723, 1.0
        %v5824 = vadd.f32 %v5724, 1.0
        %v5825 = vadd.f32 %v5725, 1.0
        %v5826 = vadd.f32 %v5726, 1.0
        %v5827 = vadd.f32 %v5727, 1.0
        %v5828 = vadd.f32 %v5728, 1.0
        %v5829 = vadd.f32 %v5729, 1.0
        %v5830 = vadd.f32 %v5730, 1.0
        %v5831 = vadd.f32 %v5731, 1.0
        %v5832 = vadd.f32 %v5732, 1.0
        %v5833 = vadd.f32 %v5733, 1.0
        %v5834 = vadd.f32 %v5734, 1.0
        %v5835 = vadd.f32 %v5735, 1.0
        %v5836 = vadd.f32 %v5736, 1.0
        %v5837 = vadd.f32 %v5737, 1.0
        %v5838 = vadd.f32 %v5738, 1.0
        %v5839 = vadd.f32 %v5739, 1.0
        %v5840 = vadd.f32 %v5740, 1.0
        %v5841 = vadd.f32 %v5741, 1.0
        %v5842 = vadd.f32 %v5742, 1.0
        %v5843 = vadd.f32 %v5743, 1.0
        %v5844 = vmul.f32 %v5744, %v5794
        %v5845 = vmul.f32 %v5745, %v5795
        %v5846 = vmul.f32 %v5746, %v5796
        %v5847 = vmul.f32 %v5747, %v5797
        %v5848 = vmul.f32 %v5748, %v5798
        %v5849 = vmul.f32 %v5749, %v5799
        %v5850 = vmul.f32 %v5750, %v5800
        %v5851 = vmul.f32 %v5751, %v5801
        %v5852 = vmul.f32 %v5752, %v5802
        %v5853 = vmul.f32 %v5753, %v5803
        %v5854 = vmul.f32 %v5754, %v5804
        %v5855 = vmul.f32 %v5755, %v5805
        %v5856 = vmul.f32 %v5756, %v5806
        %v5857 = vmul.f32 %v5757, %v5807
        %v5858 = vmul.f32 %v5758, %v5808
        %v5859 = vmul.f32 %v5759, %v5809
        %v5860 = vmul.f32 %v5760, %v5810
        %v5861 = vmul.f32 %v5761, %v5811
        %v5862 = vmul.f32 %v5762, %v5812
        %v5863 = vmul.f32 %v5763, %v5813
        %v5864 = vmul.f32 %v5764, %v5814
        %v5865 = vmul.f32 %v5765, %v5815
        %v5866 = vmul.f32 %v5766, %v5816
        %v5867 = vmul.f32 %v5767, %v5817
        %v5868 = vmul.f32 %v5768, %v5818
        %v5869 = vmul.f32 %v5769, %v5819
        %v5870 = vmul.f32 %v5770, %v5820
        %v5871 = vmul.f32 %v5771, %v5821
        %v5872 = vmul.f32 %v5772, %v5822
        %v5873 = vmul.f32 %v5773, %v5823
        %v5874 = vmul.f32 %v5774, %v5824
        %v5875 = vmul.f32 %v5775, %v5825
        %v5876 = vmul.f32 %v5776, %v5826
        %v5877 = vmul.f32 %v5777, %v5827
        %v5878 = vmul.f32 %v5778, %v5828
        %v5879 = vmul.f32 %v5779, %v5829
        %v5880 = vmul.f32 %v5780, %v5830
        %v5881 = vmul.f32 %v5781, %v5831
        %v5882 = vmul.f32 %v5782, %v5832
        %v5883 = vmul.f32 %v5783, %v5833
        %v5884 = vmul.f32 %v5784, %v5834
        %v5885 = vmul.f32 %v5785, %v5835
        %v5886 = vmul.f32 %v5786, %v5836
        %v5887 = vmul.f32 %v5787, %v5837
        %v5888 = vmul.f32 %v5788, %v5838
        %v5889 = vmul.f32 %v5789, %v5839
        %v5890 = vmul.f32 %v5790, %v5840
        %v5891 = vmul.f32 %v5791, %v5841
        %v5892 = vmul.f32 %v5792, %v5842
        %v5893 = vmul.f32 %v5793, %v5843
        %s5894 = sld [smem:[#allocation2 + $0x2]]
        %v5895 = vstv %s5894
        %v5896 = vmul.f32 %v5844, %v5895
        %v5897 = vmul.f32 %v5845, %v5895
        %v5898 = vmul.f32 %v5846, %v5895
        %v5899 = vmul.f32 %v5847, %v5895
        %v5900 = vmul.f32 %v5848, %v5895
        %v5901 = vmul.f32 %v5849, %v5895
        %v5902 = vmul.f32 %v5850, %v5895
        %v5903 = vmul.f32 %v5851, %v5895
        %v5904 = vmul.f32 %v5852, %v5895
        %v5905 = vmul.f32 %v5853, %v5895
        %v5906 = vmul.f32 %v5854, %v5895
        %v5907 = vmul.f32 %v5855, %v5895
        %v5908 = vmul.f32 %v5856, %v5895
        %v5909 = vmul.f32 %v5857, %v5895
        %v5910 = vmul.f32 %v5858, %v5895
        %v5911 = vmul.f32 %v5859, %v5895
        %v5912 = vmul.f32 %v5860, %v5895
        %v5913 = vmul.f32 %v5861, %v5895
        %v5914 = vmul.f32 %v5862, %v5895
        %v5915 = vmul.f32 %v5863, %v5895
        %v5916 = vmul.f32 %v5864, %v5895
        %v5917 = vmul.f32 %v5865, %v5895
        %v5918 = vmul.f32 %v5866, %v5895
        %v5919 = vmul.f32 %v5867, %v5895
        %v5920 = vmul.f32 %v5868, %v5895
        %v5921 = vmul.f32 %v5869, %v5895
        %v5922 = vmul.f32 %v5870, %v5895
        %v5923 = vmul.f32 %v5871, %v5895
        %v5924 = vmul.f32 %v5872, %v5895
        %v5925 = vmul.f32 %v5873, %v5895
        %v5926 = vmul.f32 %v5874, %v5895
        %v5927 = vmul.f32 %v5875, %v5895
        %v5928 = vmul.f32 %v5876, %v5895
        %v5929 = vmul.f32 %v5877, %v5895
        %v5930 = vmul.f32 %v5878, %v5895
        %v5931 = vmul.f32 %v5879, %v5895
        %v5932 = vmul.f32 %v5880, %v5895
        %v5933 = vmul.f32 %v5881, %v5895
        %v5934 = vmul.f32 %v5882, %v5895
        %v5935 = vmul.f32 %v5883, %v5895
        %v5936 = vmul.f32 %v5884, %v5895
        %v5937 = vmul.f32 %v5885, %v5895
        %v5938 = vmul.f32 %v5886, %v5895
        %v5939 = vmul.f32 %v5887, %v5895
        %v5940 = vmul.f32 %v5888, %v5895
        %v5941 = vmul.f32 %v5889, %v5895
        %v5942 = vmul.f32 %v5890, %v5895
        %v5943 = vmul.f32 %v5891, %v5895
        %v5944 = vmul.f32 %v5892, %v5895
        %v5945 = vmul.f32 %v5893, %v5895
        %5946 = vst [vmem:[%s468] sm:$0xff] %v5896
        %5947 = vst [vmem:[%s468 + $0x8] sm:$0xff] %v5897
        %5948 = vst [vmem:[%s468 + $0x10] sm:$0xff] %v5898
        %5949 = vst [vmem:[%s468 + $0x18] sm:$0xff] %v5899
        %5950 = vst [vmem:[%s468 + $0x20] sm:$0xff] %v5900
        %5951 = vst [vmem:[%s468 + $0x28] sm:$0xff] %v5901
        %5952 = vst [vmem:[%s468 + $0x30] sm:$0xff] %v5902
        %5953 = vst [vmem:[%s468 + $0x38] sm:$0xff] %v5903
        %5954 = vst [vmem:[%s468 + $0x40] sm:$0xff] %v5904
        %5955 = vst [vmem:[%s468 + $0x48] sm:$0xff] %v5905
        %5956 = vst [vmem:[%s468 + $0x50] sm:$0xff] %v5906
        %5957 = vst [vmem:[%s468 + $0x58] sm:$0xff] %v5907
        %5958 = vst [vmem:[%s468 + $0x60] sm:$0xff] %v5908
        %5959 = vst [vmem:[%s468 + $0x68] sm:$0xff] %v5909
        %5960 = vst [vmem:[%s468 + $0x70] sm:$0xff] %v5910
        %5961 = vst [vmem:[%s468 + $0x78] sm:$0xff] %v5911
        %5962 = vst [vmem:[%s468 + $0x80] sm:$0xff] %v5912
        %5963 = vst [vmem:[%s468 + $0x88] sm:$0xff] %v5913
        %5964 = vst [vmem:[%s468 + $0x90] sm:$0xff] %v5914
        %5965 = vst [vmem:[%s468 + $0x98] sm:$0xff] %v5915
        %5966 = vst [vmem:[%s468 + $0xa0] sm:$0xff] %v5916
        %5967 = vst [vmem:[%s468 + $0xa8] sm:$0xff] %v5917
        %5968 = vst [vmem:[%s468 + $0xb0] sm:$0xff] %v5918
        %5969 = vst [vmem:[%s468 + $0xb8] sm:$0xff] %v5919
        %5970 = vst.msk [vmem:[%s468 + $0xc0] sm:$0xff] %vm550, %v5920
        %5971 = vst [vmem:[%s468 + $0xc8] sm:$0xff] %v5921
        %5972 = vst [vmem:[%s468 + $0xd0] sm:$0xff] %v5922
        %5973 = vst [vmem:[%s468 + $0xd8] sm:$0xff] %v5923
        %5974 = vst [vmem:[%s468 + $0xe0] sm:$0xff] %v5924
        %5975 = vst [vmem:[%s468 + $0xe8] sm:$0xff] %v5925
        %5976 = vst [vmem:[%s468 + $0xf0] sm:$0xff] %v5926
        %5977 = vst [vmem:[%s468 + $0xf8] sm:$0xff] %v5927
        %5978 = vst [vmem:[%s468 + $0x100] sm:$0xff] %v5928
        %5979 = vst [vmem:[%s468 + $0x108] sm:$0xff] %v5929
        %5980 = vst [vmem:[%s468 + $0x110] sm:$0xff] %v5930
        %5981 = vst [vmem:[%s468 + $0x118] sm:$0xff] %v5931
        %5982 = vst [vmem:[%s468 + $0x120] sm:$0xff] %v5932
        %5983 = vst [vmem:[%s468 + $0x128] sm:$0xff] %v5933
        %5984 = vst [vmem:[%s468 + $0x130] sm:$0xff] %v5934
        %5985 = vst [vmem:[%s468 + $0x138] sm:$0xff] %v5935
        %5986 = vst [vmem:[%s468 + $0x140] sm:$0xff] %v5936
        %5987 = vst [vmem:[%s468 + $0x148] sm:$0xff] %v5937
        %5988 = vst [vmem:[%s468 + $0x150] sm:$0xff] %v5938
        %5989 = vst [vmem:[%s468 + $0x158] sm:$0xff] %v5939
        %5990 = vst [vmem:[%s468 + $0x160] sm:$0xff] %v5940
        %5991 = vst [vmem:[%s468 + $0x168] sm:$0xff] %v5941
        %5992 = vst [vmem:[%s468 + $0x170] sm:$0xff] %v5942
        %5993 = vst [vmem:[%s468 + $0x178] sm:$0xff] %v5943
        %5994 = vst [vmem:[%s468 + $0x180] sm:$0xff] %v5944
        %5995 = vst.msk [vmem:[%s468 + $0x188] sm:$0xff] %vm550, %v5945
        %s5996 = sand.u32 %s264, 1
        %s5997 = scalar_lea.sflag [#allocation3], %s5996
        %s5998 = sand.u32 %s264, 1
        %s5999 = smul.addr %s5998, 32
        %s6000 = scalar_lea.vmem [#allocation5], %s5999
        %s6001 = sand.u32 %s31, 1
        %s6002 = scalar_lea.sflag [#allocation7], %s6001
        %s6003 = sand.u32 %s290, 1
        %s6004 = smul.addr %s6003, 112
        %s6005 = scalar_lea.vmem [#allocation6], %s6004
        %s6006 = sand.u32 %s31, 1
        %s6007 = scalar_lea.sflag [#allocation7], %s6006
        %s6008 = sand.u32 %s316, 1
        %s6009 = smul.addr %s6008, 400
        %s6010 = scalar_lea.vmem [#allocation8], %s6009
        // Predicated region
        $region65: #{tpu_custom_call.1} parent=59 // pred_check
          %p6011 = pneg %p274
        $region66: #{tpu_custom_call.1} parent=59 // pred_check_branch
          %6013 = sbr.rel (%p6011) target = $region68
        $region67: #{tpu_custom_call.1} parent=59 // pred_region
          %s6015 = ssub.s32 512, 512
          %6016 = vsyncadd %s5997, %s6015
          %s6017 = smul.addr %s31, 4
          %s6018 = smul.addr %s6017, 128
          %s6019 = scalar_lea.hbm %s10, %s6018
          %s6020 = sshll.u32 %s6000, 4
          %s6021 = int_to_ptr.vmem [resolvable:$true] %s6020
          %6026 = dma.vmem_to_hbm [thread:$0]  %s6021, 512, %s6019, %s5997, 256, 256, 16
        $region68: #{tpu_custom_call.1} parent=59 // pred_fallthru
          _
        // Predicated region
        $region69: #{tpu_custom_call.1} parent=59 // pred_check
          %p6027 = pneg %p300
        $region70: #{tpu_custom_call.1} parent=59 // pred_check_branch
          %6029 = sbr.rel (%p6027) target = $region72
        $region71: #{tpu_custom_call.1} parent=59 // pred_region
          %s6031 = ssub.s32 1792, 1792
          %6032 = vsyncadd %s6002, %s6031
          %s6033 = smul.addr %s31, 14
          %s6034 = smul.addr %s6033, 128
          %s6035 = scalar_lea.hbm %s11, %s6034
          %s6036 = sshll.u32 %s6005, 4
          %s6037 = int_to_ptr.vmem [resolvable:$true] %s6036
          %6042 = dma.vmem_to_hbm [thread:$0]  %s6037, 1792, %s6035, %s6002, 896, 896, 56
        $region72: #{tpu_custom_call.1} parent=59 // pred_fallthru
          _
        // Predicated region
        $region73: #{tpu_custom_call.1} parent=59 // pred_check
          %p6043 = pneg %p326
        $region74: #{tpu_custom_call.1} parent=59 // pred_check_branch
          %6045 = sbr.rel (%p6043) target = $region76
        $region75: #{tpu_custom_call.1} parent=59 // pred_region
          %s6047 = ssub.s32 6400, 6400
          %6048 = vsyncadd %s6007, %s6047
          %s6049 = smul.addr %s31, 50
          %s6050 = smul.addr %s6049, 128
          %s6051 = scalar_lea.hbm %s12, %s6050
          %s6052 = sshll.u32 %s6010, 4
          %s6053 = int_to_ptr.vmem [resolvable:$true] %s6052
          %6058 = dma.vmem_to_hbm [thread:$0]  %s6053, 6400, %s6051, %s6007, 3200, 3200, 200
        $region76: #{tpu_custom_call.1} parent=59 // pred_fallthru
          _
      $region60: #{tpu_custom_call.1} parent=5 // pred_fallthru
        _
      %p6059 = scmp.le.s32.totalorder 2, %s26
      // Predicated region
      $region77: #{tpu_custom_call.1} parent=5 // pred_check
        %p6060 = pneg %p6059
      $region78: #{tpu_custom_call.1} parent=5 // pred_check_branch
        %6062 = sbr.rel (%p6060) target = $region80
      $region79: #{tpu_custom_call.1} parent=5 // pred_region
        %s6063 = ssub.s32 %s26, 2
        // Predicated region
        $region81: #{tpu_custom_call.1} parent=79 // pred_check
          %p6064 = pneg %p280
        $region82: #{tpu_custom_call.1} parent=79 // pred_check_branch
          %6066 = sbr.rel (%p6064) target = $region84
        $region83: #{tpu_custom_call.1} parent=79 // pred_region
          %s6067 = sand.u32 %s265, 1
          %s6068 = scalar_lea.sflag [#allocation3], %s6067
          %s6069 = sand.u32 %s265, 1
          %s6070 = smul.addr %s6069, 32
          %s6071 = scalar_lea.vmem [#allocation5], %s6070
          %6072 = dma.done %s6068, 512
        $region84: #{tpu_custom_call.1} parent=79 // pred_fallthru
          _
        // Predicated region
        $region85: #{tpu_custom_call.1} parent=79 // pred_check
          %p6073 = pneg %p306
        $region86: #{tpu_custom_call.1} parent=79 // pred_check_branch
          %6075 = sbr.rel (%p6073) target = $region88
        $region87: #{tpu_custom_call.1} parent=79 // pred_region
          %s6076 = sand.u32 %s32, 1
          %s6077 = scalar_lea.sflag [#allocation7], %s6076
          %s6078 = sand.u32 %s291, 1
          %s6079 = smul.addr %s6078, 112
          %s6080 = scalar_lea.vmem [#allocation6], %s6079
          %6081 = dma.done %s6077, 1792
        $region88: #{tpu_custom_call.1} parent=79 // pred_fallthru
          _
        // Predicated region
        $region89: #{tpu_custom_call.1} parent=79 // pred_check
          %p6082 = pneg %p332
        $region90: #{tpu_custom_call.1} parent=79 // pred_check_branch
          %6084 = sbr.rel (%p6082) target = $region92
        $region91: #{tpu_custom_call.1} parent=79 // pred_region
          %s6085 = sand.u32 %s32, 1
          %s6086 = scalar_lea.sflag [#allocation7], %s6085
          %s6087 = sand.u32 %s317, 1
          %s6088 = smul.addr %s6087, 400
          %s6089 = scalar_lea.vmem [#allocation8], %s6088
          %6090 = dma.done %s6086, 6400
        $region92: #{tpu_custom_call.1} parent=79 // pred_fallthru
          _
      $region80: #{tpu_custom_call.1} parent=5 // pred_fallthru
        _
    $region6: #{tpu_custom_call.1} parent=1 // loop_footer
      %s30 = sadd.s32 1, %s26
    $region7: #{tpu_custom_call.1} parent=1 // loop_footer_branch
      %25 = sbr.rel target = $region3
    $region8: #{tpu_custom_call.1} parent=1 // loop_exit
      _
    %6091 = vsyncpa [#allocation3], 1
    %s6092 = scalar_lea.sflag [#allocation3], 1
    %6093 = vsyncpa %s6092, 1
    %6094 = vsyncpa [#allocation7], 1
    %s6095 = scalar_lea.sflag [#allocation7], 1
    %6096 = vsyncpa %s6095, 1
    %6097 = vsyncpa [#allocation4], 1
    %s6098 = scalar_lea.sflag [#allocation4], 1
    %6099 = vsyncpa %s6098, 1

</llo_original>
